<compile_context>
chip_gen: v5e
topology: v5e:2x2
jax: 0.10.0
libtpu: 0.0.40
codegen_flags: <defaults>
</compile_context>

<pallas_src>
import functools

import numpy as np
import jax
import jax.numpy as jnp
from jax import lax
from jax.experimental import pallas as pl
from jax.experimental.pallas import tpu as pltpu

NUM_GRID = 16                      # module's self.num_grid
IMG = 128                          # spatial size implied by rect_mask_temp
GRID_SIZE = IMG // NUM_GRID        # 8
MAX_NODES_PER_IMAGE = NUM_GRID     # train threshold admits at most 16 cells/img
VMEM_LIMIT = 32 * 1024 * 1024      # < v7x's 64 MiB physical VMEM, ample headroom


# ----------------------------------------------------------------------------
# Kernel 1: 3x3 "valid" conv + folded BatchNorm(eval) + ReLU  (layers 1-3)
#   weights are pre-stacked as (3, 3*Cin, Cout): dx taps along the K axis.
# ----------------------------------------------------------------------------
def _conv3x3_kernel(x_ref, w_ref, sc_ref, bi_ref, o_ref, *, tm, wout, cout):
    # x_ref: (1, Hin, Win, Cin)   w_ref: (3, 3*Cin, Cout)   sc/bi: (1, Cout)
    # o_ref: (1, tm, wout, Cout)  -> output rows [row0, row0 + tm)
    cin = w_ref.shape[1] // 3
    row0 = pl.program_id(1) * tm
    scale = sc_ref[...]
    bias = bi_ref[...]
    w_all = w_ref[...]                                   # hoisted weight load

    def row_body(hh, carry):
        h = row0 + hh
        acc = jnp.zeros((wout, cout), jnp.float32)
        for dy in range(3):
            xrow = x_ref[0, h + dy]                      # (Win, Cin)
            if cin == 1:
                # K==1: broadcasted outer products on the VPU (no MXU waste).
                for dx in range(3):
                    acc = acc + xrow[dx:dx + wout, :] * w_all[dy, dx:dx + 1, :]
            else:
                # K-stack the 3 dx taps: one (wout, 3*Cin) x (3*Cin, Cout) MXU call.
                lhs = jnp.concatenate(
                    [xrow[0:wout, :], xrow[1:1 + wout, :], xrow[2:2 + wout, :]],
                    axis=1)
                acc = acc + jnp.dot(lhs, w_all[dy],
                                    preferred_element_type=jnp.float32)
        y = jnp.maximum(acc * scale + bias, 0.0)         # folded BN + ReLU
        o_ref[0, hh, :, :] = y
        return carry

    lax.fori_loop(0, tm, row_body, 0)


def conv3x3_bn_relu(x, w, scale, bias):
    b, hin, win, cin = x.shape
    cout = w.shape[-1]
    hout, wout = hin - 2, win - 2
    n_row_tiles = 2                    # >=2 parallel steps per image (v7x megacore)
    tm = hout // n_row_tiles
    assert tm * n_row_tiles == hout
    kernel = functools.partial(_conv3x3_kernel, tm=tm, wout=wout, cout=cout)
    return pl.pallas_call(
        kernel,
        out_shape=jax.ShapeDtypeStruct((b, hout, wout, cout), jnp.float32),
        grid=(b, n_row_tiles),
        in_specs=[
            # full image resident per b: no re-DMA across the row-tile axis
            pl.BlockSpec((1, hin, win, cin), lambda i, r: (i, 0, 0, 0)),
            pl.BlockSpec(w.shape, lambda i, r: (0, 0, 0)),
            pl.BlockSpec((1, cout), lambda i, r: (0, 0)),
            pl.BlockSpec((1, cout), lambda i, r: (0, 0)),
        ],
        out_specs=pl.BlockSpec((1, tm, wout, cout), lambda i, r: (i, r, 0, 0)),
        compiler_params=pltpu.CompilerParams(
            dimension_semantics=("parallel", "parallel"),
            vmem_limit_bytes=VMEM_LIMIT),
    )(x, w, scale, bias)


# ----------------------------------------------------------------------------
# Kernel 2: fused final conv (32->1) + sigmoid + 8x8/stride-8 max pool.
#   Heat rows are produced lane-dense ((1,128) with W on lanes) via a
#   (1, 9*Cin) x (128, 9*Cin)^T contraction; the sigmoid map never leaves VMEM
#   before the pool is computed.
# ----------------------------------------------------------------------------
def _final_conv_sigmoid_pool_kernel(x_ref, w_ref, b_ref, heat_ref, sig_ref,
                                    pool_ref):
    # x_ref: (1, 130, 130, 32)  w_ref: (1, 288)  b_ref: (1, 1)
    # heat_ref/sig_ref: (1, 128, 128)   pool_ref: (1, 16, 16)
    w4 = w_ref[...]                                       # (1, 9*Cin)
    bias = b_ref[...]                                     # (1, 1)

    def row_body(h, carry):
        pieces = []
        for dy in range(3):
            xrow = x_ref[0, h + dy]                       # (130, 32)
            for dx in range(3):
                pieces.append(xrow[dx:dx + IMG, :])       # (128, 32)
        lhs = jnp.concatenate(pieces, axis=1)             # (128, 9*Cin)
        # contract over K with the image as (transposed) RHS -> (1, 128):
        y = lax.dot_general(w4, lhs, (((1,), (1,)), ((), ())),
                            preferred_element_type=jnp.float32) + bias
        heat_ref[0, pl.ds(h, 1), :] = y                   # lane-dense raw heat row
        sig_ref[0, pl.ds(h, 1), :] = jax.nn.sigmoid(y)
        return carry

    lax.fori_loop(0, IMG, row_body, 0)

    # 8x8 / stride-8 max-pool of the sigmoid map (still resident in VMEM).
    s = sig_ref[0]                                                   # (128, 128)
    rmax = jnp.max(s.reshape(NUM_GRID, GRID_SIZE, IMG), axis=1)      # (16, 128)
    rmax_t = jnp.transpose(rmax)                                     # (128, 16)
    pool_t = jnp.max(rmax_t.reshape(NUM_GRID, GRID_SIZE, NUM_GRID), axis=1)
    pool_ref[0] = jnp.transpose(pool_t)                              # (16, 16)


def final_conv_sigmoid_pool(x, w4, b4):
    b = x.shape[0]
    return pl.pallas_call(
        _final_conv_sigmoid_pool_kernel,
        out_shape=(jax.ShapeDtypeStruct((b, IMG, IMG), jnp.float32),   # raw heat
                   jax.ShapeDtypeStruct((b, IMG, IMG), jnp.float32),   # sigmoid
                   jax.ShapeDtypeStruct((b, NUM_GRID, NUM_GRID), jnp.float32)),
        grid=(b,),
        in_specs=[
            pl.BlockSpec((1,) + x.shape[1:], lambda i: (i, 0, 0, 0)),
            pl.BlockSpec(w4.shape, lambda i: (0, 0)),
            pl.BlockSpec(b4.shape, lambda i: (0, 0)),
        ],
        out_specs=(pl.BlockSpec((1, IMG, IMG), lambda i: (i, 0, 0)),
                   pl.BlockSpec((1, IMG, IMG), lambda i: (i, 0, 0)),
                   pl.BlockSpec((1, NUM_GRID, NUM_GRID), lambda i: (i, 0, 0))),
        compiler_params=pltpu.CompilerParams(
            dimension_semantics=("parallel",),
            vmem_limit_bytes=VMEM_LIMIT),
    )(x, w4, b4)


# ----------------------------------------------------------------------------
# Kernel 3: masked-heat normalization + DiffCoordinatesTrans per grid cell.
#   Only the 8x128 row band of the selected cell is touched; the per-image
#   sigmoid map is gathered via a scalar-prefetch index_map.
# ----------------------------------------------------------------------------
def _coord_kernel(bidx_ref, gy_ref, gx_ref, sig_ref, out_ref):
    del bidx_ref                              # consumed by the gather index_map
    n = pl.program_id(0)
    gi = gy_ref[n]
    gj = gx_ref[n]

    r0 = pl.multiple_of(gi * GRID_SIZE, GRID_SIZE)
    band = sig_ref[0, pl.ds(r0, GRID_SIZE), :]               # (8, 128)

    col = lax.broadcasted_iota(jnp.int32, (GRID_SIZE, IMG), 1)
    row = lax.broadcasted_iota(jnp.int32, (GRID_SIZE, IMG), 0)
    inside = (col >= gj * GRID_SIZE) & (col < (gj + 1) * GRID_SIZE)
    masked = jnp.where(inside, band, 0.0)                    # atts * grid_msks

    xr = col.astype(jnp.float32) * (1.0 / (IMG - 1))         # linspace(0,1,W)
    yr = (row + gi * GRID_SIZE).astype(jnp.float32) * (1.0 / (IMG - 1))

    def tot(a):                                              # sum -> (1, 1)
        return jnp.sum(jnp.sum(a, axis=1, keepdims=True), axis=0, keepdims=True)

    inv = pl.reciprocal(tot(masked), approx=False)           # sigmoid>0 => safe
    xc = tot(xr * masked) * inv
    yc = tot(yr * masked) * inv

    lane = lax.broadcasted_iota(jnp.int32, (1, IMG), 1)
    out_ref[0] = (jnp.where(lane == 0, xc, 0.0) +
                  jnp.where(lane == 1, yc, 0.0))             # lane-dense (1,128)


def coord_transform(sig, bidx, gy, gx):
    n = bidx.shape[0]
    b, h, w = sig.shape
    packed = pl.pallas_call(
        _coord_kernel,
        out_shape=jax.ShapeDtypeStruct((n, 1, IMG), jnp.float32),
        grid_spec=pltpu.PrefetchScalarGridSpec(
            num_scalar_prefetch=3,
            grid=(n,),
            in_specs=[pl.BlockSpec((1, h, w),
                                   lambda i, bidx, gy, gx: (bidx[i], 0, 0))],
            out_specs=pl.BlockSpec((1, 1, IMG),
                                   lambda i, bidx, gy, gx: (i, 0, 0))),
        compiler_params=pltpu.CompilerParams(
            dimension_semantics=("parallel",)),
    )(bidx, gy, gx, sig)
    return packed[:, 0, 0:2]                                 # (n, 2) = (x, y)


# ----------------------------------------------------------------------------
# Parameter init (deterministic, synthetic)
# ----------------------------------------------------------------------------
def init_params(key):
    # node_att: Conv(1,64,3,p=4)-BN-ReLU, Conv(64,32,3)-BN-ReLU,
    #           Conv(32,32,3)-BN-ReLU, Conv(32,1,3)
    # TODO(synk): BatchNorm is folded in eval mode (running stats); train-mode
    # batch statistics of the PyTorch module are not reproduced.
    layer_io = [(1, 64), (64, 32), (32, 32), (32, 1)]
    keys = jax.random.split(key, 2 * len(layer_io))
    eps = 1e-5
    params = []
    for li, (cin, cout) in enumerate(layer_io):
        kw, kb = keys[2 * li], keys[2 * li + 1]
        std = (2.0 / (9 * cin)) ** 0.5
        w = jax.random.normal(kw, (3, 3, cin, cout), jnp.float32) * std
        conv_b = jax.random.normal(kb, (cout,), jnp.float32) * 0.01
        if li < 3:
            bn_scale = jnp.full((cout,), 1.0 / np.sqrt(1.0 + eps), jnp.float32)
            params.append((w.reshape(3, 3 * cin, cout),         # dx-stacked K
                           bn_scale.reshape(1, cout),
                           (conv_b * bn_scale).reshape(1, cout)))
        else:
            params.append((w.reshape(1, 9 * cin),               # (dy,dx,c) stacked
                           (conv_b + 2.5).reshape(1, 1)))        # heat above 0.9
    return params


# ----------------------------------------------------------------------------
# Device-side forward: conv stack + fused head + on-device cell selection +
# coordinate extraction.  Everything is static-shaped, so it jits as one unit.
# ----------------------------------------------------------------------------
@jax.jit
def _device_forward(x_nchw, params):
    b = x_nchw.shape[0]
    (w1, s1, b1), (w2, s2, b2), (w3, s3, b3), (w4, b4) = params

    h = jnp.transpose(x_nchw, (0, 2, 3, 1))                 # NHWC
    h = jnp.pad(h, ((0, 0), (4, 4), (4, 4), (0, 0)))        # Conv2d(1,64,3,padding=4)
    h = conv3x3_bn_relu(h, w1, s1, b1)                      # (B, 134, 134, 64)
    h = conv3x3_bn_relu(h, w2, s2, b2)                      # (B, 132, 132, 32)
    h = conv3x3_bn_relu(h, w3, s3, b3)                      # (B, 130, 130, 32)
    heat_raw, sig, pooled = final_conv_sigmoid_pool(h, w4, b4)

    # --- on-device grid-cell selection (replaces the mid-pipeline host sync) ---
    flat = pooled.reshape(b, NUM_GRID * NUM_GRID)
    top_vals, top_idx = lax.top_k(flat, 17)
    thresh = jnp.maximum(top_vals[:, 16], 0.9)              # per-image train thresh
    vals = top_vals[:, :MAX_NODES_PER_IMAGE]
    idxs = top_idx[:, :MAX_NODES_PER_IMAGE]
    valid = vals > thresh[:, None]                          # at most 16 cells/image
    # Order valid cells by flat cell index == torch.nonzero row-major order.
    # Batch-major, cell-ascending slots also let consecutive coord-kernel steps
    # reuse the resident sigmoid map of the same image.
    sort_key = jnp.where(valid, idxs, NUM_GRID * NUM_GRID + 1)
    order = jnp.argsort(sort_key, axis=1)
    sorted_idx = jnp.take_along_axis(idxs, order, axis=1)
    sorted_valid = jnp.take_along_axis(valid, order, axis=1)
    gy = jnp.where(sorted_valid, sorted_idx // NUM_GRID, 0).astype(jnp.int32)
    gx = jnp.where(sorted_valid, sorted_idx % NUM_GRID, 0).astype(jnp.int32)
    bidx = jnp.broadcast_to(jnp.arange(b, dtype=jnp.int32)[:, None],
                            (b, MAX_NODES_PER_IMAGE))
    nodes_per_image = jnp.sum(sorted_valid.astype(jnp.int32), axis=1)

    coords = coord_transform(sig, bidx.reshape(-1), gy.reshape(-1),
                             gx.reshape(-1))                # (B*16, 2) (x, y)
    return heat_raw, coords, sorted_valid.reshape(-1), nodes_per_image


# ----------------------------------------------------------------------------
# Full forward pass (phase == 'train')
# ----------------------------------------------------------------------------
def encoder_attention_nodes_forward(x_nchw, params, phase="train"):
    assert phase == "train", "phase='val' requires torchvision nms (see TODO)"
    # TODO(synk): phase == 'val' branch (box construction + torchvision nms +
    # node filtering) has no clean Pallas equivalent and is not implemented.
    heat_raw, coords, valid, nodes_per_image = _device_forward(x_nchw, params)

    # Single device->host sync at the very end: compact the fixed 16-slot/image
    # array into the dynamic (num_valid, 2) node list (torch.nonzero semantics).
    valid_np, coords_np = jax.device_get((valid, coords))
    nodes = jnp.asarray(np.asarray(coords_np)[np.asarray(valid_np)])

    nodes_heat_raw_nchw = heat_raw[:, None, :, :]           # (B, 1, 128, 128)
    return nodes, nodes_heat_raw_nchw, nodes_per_image


if __name__ == "__main__":
    key = jax.random.PRNGKey(0)
    k_x, k_p = jax.random.split(key)
    batch = 2
    x = jax.random.normal(k_x, (batch, 1, IMG, IMG), jnp.float32)
    params = init_params(k_p)

    nodes, nodes_heat_raw, nodes_per_image = encoder_attention_nodes_forward(
        x, params, phase="train")

    jax.block_until_ready(nodes)
    jax.block_until_ready(nodes_heat_raw)
    jax.block_until_ready(nodes_per_image)
    print("KERNEL_OK")
</pallas_src>

<mosaic_0001>
module attributes {stable_mosaic.version = 11 : i64} {
  func.func @_conv3x3_kernel(%arg0: i32, %arg1: i32, %arg2: memref<1x136x136x1xf32, #tpu.memory_space<vmem>>, %arg3: memref<3x3x64xf32, #tpu.memory_space<vmem>>, %arg4: memref<1x64xf32, #tpu.memory_space<vmem>>, %arg5: memref<1x64xf32, #tpu.memory_space<vmem>>, %arg6: memref<1x67x134x64xf32, #tpu.memory_space<vmem>>) attributes {dimension_semantics = [#tpu.dimension_semantics<parallel>, #tpu.dimension_semantics<parallel>], iteration_bounds = array<i64: 2, 2>, scalar_prefetch = 0 : i64, scratch_operands = 0 : i64, tpu.core_type = #tpu.core_type<tc>, window_params = [{transform_indices = @transform_0, window_bounds = array<i64: 1, 136, 136, 1>}, {pipeline_mode = #tpu.pipeline_mode<synchronous>, transform_indices = @transform_1, window_bounds = array<i64: 3, 3, 64>}, {pipeline_mode = #tpu.pipeline_mode<synchronous>, transform_indices = @transform_2, window_bounds = array<i64: 1, 64>}, {pipeline_mode = #tpu.pipeline_mode<synchronous>, transform_indices = @transform_3, window_bounds = array<i64: 1, 64>}, {transform_indices = @transform_4, window_bounds = array<i64: 1, 67, 134, 64>}]} {
    %c67_i32 = arith.constant 67 : i32
    %0 = arith.muli %arg1, %c67_i32 : i32
    %c0 = arith.constant 0 : index
    %c0_0 = arith.constant 0 : index
    %1 = vector.load %arg4[%c0, %c0_0] : memref<1x64xf32, #tpu.memory_space<vmem>>, vector<1x64xf32>
    %c0_1 = arith.constant 0 : index
    %c0_2 = arith.constant 0 : index
    %2 = vector.load %arg5[%c0_1, %c0_2] : memref<1x64xf32, #tpu.memory_space<vmem>>, vector<1x64xf32>
    %c0_3 = arith.constant 0 : index
    %c0_4 = arith.constant 0 : index
    %c0_5 = arith.constant 0 : index
    %3 = vector.load %arg3[%c0_3, %c0_4, %c0_5] : memref<3x3x64xf32, #tpu.memory_space<vmem>>, vector<3x3x64xf32>
    %c0_i32 = arith.constant 0 : i32
    %c67_i32_6 = arith.constant 67 : i32
    %4 = arith.addi %c0_i32, %c67_i32_6 : i32
    %c1_i32 = arith.constant 1 : i32
    scf.for %arg7 = %c0_i32 to %4 step %c1_i32  : i32 {
      %5 = arith.addi %0, %arg7 : i32
      %cst = arith.constant 0.000000e+00 : f32
      %6 = vector.broadcast %cst : f32 to vector<134x64xf32>
      %c0_i32_8 = arith.constant 0 : i32
      %7 = arith.addi %5, %c0_i32_8 : i32
      %c0_9 = arith.constant 0 : index
      %8 = arith.index_cast %7 : i32 to index
      %c0_10 = arith.constant 0 : index
      %c0_11 = arith.constant 0 : index
      %9 = vector.load %arg2[%c0_9, %8, %c0_10, %c0_11] : memref<1x136x136x1xf32, #tpu.memory_space<vmem>>, vector<1x1x136x1xf32>
      %10 = vector.shape_cast %9 : vector<1x1x136x1xf32> to vector<136x1xf32>
      %11 = vector.extract_strided_slice %10 {offsets = [0, 0], sizes = [134, 1], strides = [1, 1]} : vector<136x1xf32> to vector<134x1xf32>
      %12 = vector.extract_strided_slice %3 {offsets = [0, 0, 0], sizes = [1, 1, 64], strides = [1, 1, 1]} : vector<3x3x64xf32> to vector<1x1x64xf32>
      %13 = vector.shape_cast %12 : vector<1x1x64xf32> to vector<1x64xf32>
      %14 = vector.broadcast %11 : vector<134x1xf32> to vector<134x64xf32>
      %15 = vector.broadcast %13 : vector<1x64xf32> to vector<134x64xf32>
      %16 = arith.mulf %14, %15 : vector<134x64xf32>
      %17 = arith.addf %6, %16 : vector<134x64xf32>
      %18 = vector.extract_strided_slice %10 {offsets = [1, 0], sizes = [134, 1], strides = [1, 1]} : vector<136x1xf32> to vector<134x1xf32>
      %19 = vector.extract_strided_slice %3 {offsets = [0, 1, 0], sizes = [1, 1, 64], strides = [1, 1, 1]} : vector<3x3x64xf32> to vector<1x1x64xf32>
      %20 = vector.shape_cast %19 : vector<1x1x64xf32> to vector<1x64xf32>
      %21 = vector.broadcast %18 : vector<134x1xf32> to vector<134x64xf32>
      %22 = vector.broadcast %20 : vector<1x64xf32> to vector<134x64xf32>
      %23 = arith.mulf %21, %22 : vector<134x64xf32>
      %24 = arith.addf %17, %23 : vector<134x64xf32>
      %25 = vector.extract_strided_slice %10 {offsets = [2, 0], sizes = [134, 1], strides = [1, 1]} : vector<136x1xf32> to vector<134x1xf32>
      %26 = vector.extract_strided_slice %3 {offsets = [0, 2, 0], sizes = [1, 1, 64], strides = [1, 1, 1]} : vector<3x3x64xf32> to vector<1x1x64xf32>
      %27 = vector.shape_cast %26 : vector<1x1x64xf32> to vector<1x64xf32>
      %28 = vector.broadcast %25 : vector<134x1xf32> to vector<134x64xf32>
      %29 = vector.broadcast %27 : vector<1x64xf32> to vector<134x64xf32>
      %30 = arith.mulf %28, %29 : vector<134x64xf32>
      %31 = arith.addf %24, %30 : vector<134x64xf32>
      %c1_i32_12 = arith.constant 1 : i32
      %32 = arith.addi %5, %c1_i32_12 : i32
      %c0_13 = arith.constant 0 : index
      %33 = arith.index_cast %32 : i32 to index
      %c0_14 = arith.constant 0 : index
      %c0_15 = arith.constant 0 : index
      %34 = vector.load %arg2[%c0_13, %33, %c0_14, %c0_15] : memref<1x136x136x1xf32, #tpu.memory_space<vmem>>, vector<1x1x136x1xf32>
      %35 = vector.shape_cast %34 : vector<1x1x136x1xf32> to vector<136x1xf32>
      %36 = vector.extract_strided_slice %35 {offsets = [0, 0], sizes = [134, 1], strides = [1, 1]} : vector<136x1xf32> to vector<134x1xf32>
      %37 = vector.extract_strided_slice %3 {offsets = [1, 0, 0], sizes = [1, 1, 64], strides = [1, 1, 1]} : vector<3x3x64xf32> to vector<1x1x64xf32>
      %38 = vector.shape_cast %37 : vector<1x1x64xf32> to vector<1x64xf32>
      %39 = vector.broadcast %36 : vector<134x1xf32> to vector<134x64xf32>
      %40 = vector.broadcast %38 : vector<1x64xf32> to vector<134x64xf32>
      %41 = arith.mulf %39, %40 : vector<134x64xf32>
      %42 = arith.addf %31, %41 : vector<134x64xf32>
      %43 = vector.extract_strided_slice %35 {offsets = [1, 0], sizes = [134, 1], strides = [1, 1]} : vector<136x1xf32> to vector<134x1xf32>
      %44 = vector.extract_strided_slice %3 {offsets = [1, 1, 0], sizes = [1, 1, 64], strides = [1, 1, 1]} : vector<3x3x64xf32> to vector<1x1x64xf32>
      %45 = vector.shape_cast %44 : vector<1x1x64xf32> to vector<1x64xf32>
      %46 = vector.broadcast %43 : vector<134x1xf32> to vector<134x64xf32>
      %47 = vector.broadcast %45 : vector<1x64xf32> to vector<134x64xf32>
      %48 = arith.mulf %46, %47 : vector<134x64xf32>
      %49 = arith.addf %42, %48 : vector<134x64xf32>
      %50 = vector.extract_strided_slice %35 {offsets = [2, 0], sizes = [134, 1], strides = [1, 1]} : vector<136x1xf32> to vector<134x1xf32>
      %51 = vector.extract_strided_slice %3 {offsets = [1, 2, 0], sizes = [1, 1, 64], strides = [1, 1, 1]} : vector<3x3x64xf32> to vector<1x1x64xf32>
      %52 = vector.shape_cast %51 : vector<1x1x64xf32> to vector<1x64xf32>
      %53 = vector.broadcast %50 : vector<134x1xf32> to vector<134x64xf32>
      %54 = vector.broadcast %52 : vector<1x64xf32> to vector<134x64xf32>
      %55 = arith.mulf %53, %54 : vector<134x64xf32>
      %56 = arith.addf %49, %55 : vector<134x64xf32>
      %c2_i32 = arith.constant 2 : i32
      %57 = arith.addi %5, %c2_i32 : i32
      %c0_16 = arith.constant 0 : index
      %58 = arith.index_cast %57 : i32 to index
      %c0_17 = arith.constant 0 : index
      %c0_18 = arith.constant 0 : index
      %59 = vector.load %arg2[%c0_16, %58, %c0_17, %c0_18] : memref<1x136x136x1xf32, #tpu.memory_space<vmem>>, vector<1x1x136x1xf32>
      %60 = vector.shape_cast %59 : vector<1x1x136x1xf32> to vector<136x1xf32>
      %61 = vector.extract_strided_slice %60 {offsets = [0, 0], sizes = [134, 1], strides = [1, 1]} : vector<136x1xf32> to vector<134x1xf32>
      %62 = vector.extract_strided_slice %3 {offsets = [2, 0, 0], sizes = [1, 1, 64], strides = [1, 1, 1]} : vector<3x3x64xf32> to vector<1x1x64xf32>
      %63 = vector.shape_cast %62 : vector<1x1x64xf32> to vector<1x64xf32>
      %64 = vector.broadcast %61 : vector<134x1xf32> to vector<134x64xf32>
      %65 = vector.broadcast %63 : vector<1x64xf32> to vector<134x64xf32>
      %66 = arith.mulf %64, %65 : vector<134x64xf32>
      %67 = arith.addf %56, %66 : vector<134x64xf32>
      %68 = vector.extract_strided_slice %60 {offsets = [1, 0], sizes = [134, 1], strides = [1, 1]} : vector<136x1xf32> to vector<134x1xf32>
      %69 = vector.extract_strided_slice %3 {offsets = [2, 1, 0], sizes = [1, 1, 64], strides = [1, 1, 1]} : vector<3x3x64xf32> to vector<1x1x64xf32>
      %70 = vector.shape_cast %69 : vector<1x1x64xf32> to vector<1x64xf32>
      %71 = vector.broadcast %68 : vector<134x1xf32> to vector<134x64xf32>
      %72 = vector.broadcast %70 : vector<1x64xf32> to vector<134x64xf32>
      %73 = arith.mulf %71, %72 : vector<134x64xf32>
      %74 = arith.addf %67, %73 : vector<134x64xf32>
      %75 = vector.extract_strided_slice %60 {offsets = [2, 0], sizes = [134, 1], strides = [1, 1]} : vector<136x1xf32> to vector<134x1xf32>
      %76 = vector.extract_strided_slice %3 {offsets = [2, 2, 0], sizes = [1, 1, 64], strides = [1, 1, 1]} : vector<3x3x64xf32> to vector<1x1x64xf32>
      %77 = vector.shape_cast %76 : vector<1x1x64xf32> to vector<1x64xf32>
      %78 = vector.broadcast %75 : vector<134x1xf32> to vector<134x64xf32>
      %79 = vector.broadcast %77 : vector<1x64xf32> to vector<134x64xf32>
      %80 = arith.mulf %78, %79 : vector<134x64xf32>
      %81 = arith.addf %74, %80 : vector<134x64xf32>
      %82 = vector.broadcast %1 : vector<1x64xf32> to vector<134x64xf32>
      %83 = arith.mulf %81, %82 : vector<134x64xf32>
      %84 = vector.broadcast %2 : vector<1x64xf32> to vector<134x64xf32>
      %85 = arith.addf %83, %84 : vector<134x64xf32>
      %cst_19 = arith.constant 0.000000e+00 : f32
      %86 = vector.broadcast %cst_19 : f32 to vector<134x64xf32>
      %87 = arith.maximumf %85, %86 : vector<134x64xf32>
      %c0_20 = arith.constant 0 : index
      %88 = arith.index_cast %arg7 : i32 to index
      %c0_21 = arith.constant 0 : index
      %c0_22 = arith.constant 0 : index
      %89 = vector.load %arg6[%c0_20, %88, %c0_21, %c0_22] : memref<1x67x134x64xf32, #tpu.memory_space<vmem>>, vector<1x1x134x64xf32>
      %90 = vector.shape_cast %89 : vector<1x1x134x64xf32> to vector<134x64xf32>
      %91 = vector.shape_cast %87 : vector<134x64xf32> to vector<1x1x134x64xf32>
      tpu.vector_store %arg6[%c0_20, %88, %c0_21, %c0_22], %91 {strides = array<i32>} : memref<1x67x134x64xf32, #tpu.memory_space<vmem>>, vector<1x1x134x64xf32>,
    }
    %c67_i32_7 = arith.constant 67 : i32
    return
  }
  func.func @transform_0(%arg0: i32, %arg1: i32) -> (i32, i32, i32, i32) {
    %c0_i32 = arith.constant 0 : i32
    %c0_i32_0 = arith.constant 0 : i32
    %c0_i32_1 = arith.constant 0 : i32
    %c0_i32_2 = arith.constant 0 : i32
    return %arg0, %c0_i32, %c0_i32_0, %c0_i32_1 : i32, i32, i32, i32
  }
  func.func @transform_1(%arg0: i32, %arg1: i32) -> (i32, i32, i32) {
    %c0_i32 = arith.constant 0 : i32
    %c0_i32_0 = arith.constant 0 : i32
    %c0_i32_1 = arith.constant 0 : i32
    %c0_i32_2 = arith.constant 0 : i32
    return %c0_i32, %c0_i32_0, %c0_i32_1 : i32, i32, i32
  }
  func.func @transform_2(%arg0: i32, %arg1: i32) -> (i32, i32) {
    %c0_i32 = arith.constant 0 : i32
    %c0_i32_0 = arith.constant 0 : i32
    %c0_i32_1 = arith.constant 0 : i32
    return %c0_i32, %c0_i32_0 : i32, i32
  }
  func.func @transform_3(%arg0: i32, %arg1: i32) -> (i32, i32) {
    %c0_i32 = arith.constant 0 : i32
    %c0_i32_0 = arith.constant 0 : i32
    %c0_i32_1 = arith.constant 0 : i32
    return %c0_i32, %c0_i32_0 : i32, i32
  }
  func.func @transform_4(%arg0: i32, %arg1: i32) -> (i32, i32, i32, i32) {
    %c0_i32 = arith.constant 0 : i32
    %c0_i32_0 = arith.constant 0 : i32
    %c0_i32_1 = arith.constant 0 : i32
    return %arg0, %arg1, %c0_i32, %c0_i32_0 : i32, i32, i32, i32
  }
}

module attributes {stable_mosaic.version = 11 : i64} {
  func.func @_conv3x3_kernel(%arg0: i32, %arg1: i32, %arg2: memref<1x134x134x64xf32, #tpu.memory_space<vmem>>, %arg3: memref<3x192x32xf32, #tpu.memory_space<vmem>>, %arg4: memref<1x32xf32, #tpu.memory_space<vmem>>, %arg5: memref<1x32xf32, #tpu.memory_space<vmem>>, %arg6: memref<1x66x132x32xf32, #tpu.memory_space<vmem>>) attributes {dimension_semantics = [#tpu.dimension_semantics<parallel>, #tpu.dimension_semantics<parallel>], iteration_bounds = array<i64: 2, 2>, scalar_prefetch = 0 : i64, scratch_operands = 0 : i64, tpu.core_type = #tpu.core_type<tc>, window_params = [{transform_indices = @transform_0, window_bounds = array<i64: 1, 134, 134, 64>}, {pipeline_mode = #tpu.pipeline_mode<synchronous>, transform_indices = @transform_1, window_bounds = array<i64: 3, 192, 32>}, {pipeline_mode = #tpu.pipeline_mode<synchronous>, transform_indices = @transform_2, window_bounds = array<i64: 1, 32>}, {pipeline_mode = #tpu.pipeline_mode<synchronous>, transform_indices = @transform_3, window_bounds = array<i64: 1, 32>}, {transform_indices = @transform_4, window_bounds = array<i64: 1, 66, 132, 32>}]} {
    %c66_i32 = arith.constant 66 : i32
    %0 = arith.muli %arg1, %c66_i32 : i32
    %c0 = arith.constant 0 : index
    %c0_0 = arith.constant 0 : index
    %1 = vector.load %arg4[%c0, %c0_0] : memref<1x32xf32, #tpu.memory_space<vmem>>, vector<1x32xf32>
    %c0_1 = arith.constant 0 : index
    %c0_2 = arith.constant 0 : index
    %2 = vector.load %arg5[%c0_1, %c0_2] : memref<1x32xf32, #tpu.memory_space<vmem>>, vector<1x32xf32>
    %c0_3 = arith.constant 0 : index
    %c0_4 = arith.constant 0 : index
    %c0_5 = arith.constant 0 : index
    %3 = vector.load %arg3[%c0_3, %c0_4, %c0_5] : memref<3x192x32xf32, #tpu.memory_space<vmem>>, vector<3x192x32xf32>
    %c0_i32 = arith.constant 0 : i32
    %c66_i32_6 = arith.constant 66 : i32
    %4 = arith.addi %c0_i32, %c66_i32_6 : i32
    %c1_i32 = arith.constant 1 : i32
    scf.for %arg7 = %c0_i32 to %4 step %c1_i32  : i32 {
      %5 = arith.addi %0, %arg7 : i32
      %cst = arith.constant 0.000000e+00 : f32
      %6 = vector.broadcast %cst : f32 to vector<132x32xf32>
      %c0_i32_8 = arith.constant 0 : i32
      %7 = arith.addi %5, %c0_i32_8 : i32
      %c0_9 = arith.constant 0 : index
      %8 = arith.index_cast %7 : i32 to index
      %c0_10 = arith.constant 0 : index
      %c0_11 = arith.constant 0 : index
      %9 = vector.load %arg2[%c0_9, %8, %c0_10, %c0_11] : memref<1x134x134x64xf32, #tpu.memory_space<vmem>>, vector<1x1x134x64xf32>
      %10 = vector.shape_cast %9 : vector<1x1x134x64xf32> to vector<134x64xf32>
      %11 = vector.extract_strided_slice %10 {offsets = [0, 0], sizes = [132, 64], strides = [1, 1]} : vector<134x64xf32> to vector<132x64xf32>
      %12 = vector.extract_strided_slice %10 {offsets = [1, 0], sizes = [132, 64], strides = [1, 1]} : vector<134x64xf32> to vector<132x64xf32>
      %13 = vector.extract_strided_slice %10 {offsets = [2, 0], sizes = [132, 64], strides = [1, 1]} : vector<134x64xf32> to vector<132x64xf32>
      %14 = tpu.concatenate %11, %12, %13 in 1 : vector<132x64xf32>, vector<132x64xf32>, vector<132x64xf32> -> vector<132x192xf32>
      %15 = vector.extract_strided_slice %3 {offsets = [0, 0, 0], sizes = [1, 192, 32], strides = [1, 1, 1]} : vector<3x192x32xf32> to vector<1x192x32xf32>
      %16 = vector.shape_cast %15 : vector<1x192x32xf32> to vector<192x32xf32>
      %cst_12 = arith.constant dense<0.000000e+00> : vector<132x32xf32>
      %17 = tpu.matmul %14, %16, %cst_12 {dimension_numbers = #tpu.dot_dimension_numbers<[1], [0], [0], [1], [0, 0, 1, 1], [], []>} : vector<132x192xf32>, vector<192x32xf32>, vector<132x32xf32> -> vector<132x32xf32>
      %18 = arith.addf %6, %17 : vector<132x32xf32>
      %c1_i32_13 = arith.constant 1 : i32
      %19 = arith.addi %5, %c1_i32_13 : i32
      %c0_14 = arith.constant 0 : index
      %20 = arith.index_cast %19 : i32 to index
      %c0_15 = arith.constant 0 : index
      %c0_16 = arith.constant 0 : index
      %21 = vector.load %arg2[%c0_14, %20, %c0_15, %c0_16] : memref<1x134x134x64xf32, #tpu.memory_space<vmem>>, vector<1x1x134x64xf32>
      %22 = vector.shape_cast %21 : vector<1x1x134x64xf32> to vector<134x64xf32>
      %23 = vector.extract_strided_slice %22 {offsets = [0, 0], sizes = [132, 64], strides = [1, 1]} : vector<134x64xf32> to vector<132x64xf32>
      %24 = vector.extract_strided_slice %22 {offsets = [1, 0], sizes = [132, 64], strides = [1, 1]} : vector<134x64xf32> to vector<132x64xf32>
      %25 = vector.extract_strided_slice %22 {offsets = [2, 0], sizes = [132, 64], strides = [1, 1]} : vector<134x64xf32> to vector<132x64xf32>
      %26 = tpu.concatenate %23, %24, %25 in 1 : vector<132x64xf32>, vector<132x64xf32>, vector<132x64xf32> -> vector<132x192xf32>
      %27 = vector.extract_strided_slice %3 {offsets = [1, 0, 0], sizes = [1, 192, 32], strides = [1, 1, 1]} : vector<3x192x32xf32> to vector<1x192x32xf32>
      %28 = vector.shape_cast %27 : vector<1x192x32xf32> to vector<192x32xf32>
      %cst_17 = arith.constant dense<0.000000e+00> : vector<132x32xf32>
      %29 = tpu.matmul %26, %28, %cst_17 {dimension_numbers = #tpu.dot_dimension_numbers<[1], [0], [0], [1], [0, 0, 1, 1], [], []>} : vector<132x192xf32>, vector<192x32xf32>, vector<132x32xf32> -> vector<132x32xf32>
      %30 = arith.addf %18, %29 : vector<132x32xf32>
      %c2_i32 = arith.constant 2 : i32
      %31 = arith.addi %5, %c2_i32 : i32
      %c0_18 = arith.constant 0 : index
      %32 = arith.index_cast %31 : i32 to index
      %c0_19 = arith.constant 0 : index
      %c0_20 = arith.constant 0 : index
      %33 = vector.load %arg2[%c0_18, %32, %c0_19, %c0_20] : memref<1x134x134x64xf32, #tpu.memory_space<vmem>>, vector<1x1x134x64xf32>
      %34 = vector.shape_cast %33 : vector<1x1x134x64xf32> to vector<134x64xf32>
      %35 = vector.extract_strided_slice %34 {offsets = [0, 0], sizes = [132, 64], strides = [1, 1]} : vector<134x64xf32> to vector<132x64xf32>
      %36 = vector.extract_strided_slice %34 {offsets = [1, 0], sizes = [132, 64], strides = [1, 1]} : vector<134x64xf32> to vector<132x64xf32>
      %37 = vector.extract_strided_slice %34 {offsets = [2, 0], sizes = [132, 64], strides = [1, 1]} : vector<134x64xf32> to vector<132x64xf32>
      %38 = tpu.concatenate %35, %36, %37 in 1 : vector<132x64xf32>, vector<132x64xf32>, vector<132x64xf32> -> vector<132x192xf32>
      %39 = vector.extract_strided_slice %3 {offsets = [2, 0, 0], sizes = [1, 192, 32], strides = [1, 1, 1]} : vector<3x192x32xf32> to vector<1x192x32xf32>
      %40 = vector.shape_cast %39 : vector<1x192x32xf32> to vector<192x32xf32>
      %cst_21 = arith.constant dense<0.000000e+00> : vector<132x32xf32>
      %41 = tpu.matmul %38, %40, %cst_21 {dimension_numbers = #tpu.dot_dimension_numbers<[1], [0], [0], [1], [0, 0, 1, 1], [], []>} : vector<132x192xf32>, vector<192x32xf32>, vector<132x32xf32> -> vector<132x32xf32>
      %42 = arith.addf %30, %41 : vector<132x32xf32>
      %43 = vector.broadcast %1 : vector<1x32xf32> to vector<132x32xf32>
      %44 = arith.mulf %42, %43 : vector<132x32xf32>
      %45 = vector.broadcast %2 : vector<1x32xf32> to vector<132x32xf32>
      %46 = arith.addf %44, %45 : vector<132x32xf32>
      %cst_22 = arith.constant 0.000000e+00 : f32
      %47 = vector.broadcast %cst_22 : f32 to vector<132x32xf32>
      %48 = arith.maximumf %46, %47 : vector<132x32xf32>
      %c0_23 = arith.constant 0 : index
      %49 = arith.index_cast %arg7 : i32 to index
      %c0_24 = arith.constant 0 : index
      %c0_25 = arith.constant 0 : index
      %50 = vector.load %arg6[%c0_23, %49, %c0_24, %c0_25] : memref<1x66x132x32xf32, #tpu.memory_space<vmem>>, vector<1x1x132x32xf32>
      %51 = vector.shape_cast %50 : vector<1x1x132x32xf32> to vector<132x32xf32>
      %52 = vector.shape_cast %48 : vector<132x32xf32> to vector<1x1x132x32xf32>
      tpu.vector_store %arg6[%c0_23, %49, %c0_24, %c0_25], %52 {strides = array<i32>} : memref<1x66x132x32xf32, #tpu.memory_space<vmem>>, vector<1x1x132x32xf32>,
    }
    %c66_i32_7 = arith.constant 66 : i32
    return
  }
  func.func @transform_0(%arg0: i32, %arg1: i32) -> (i32, i32, i32, i32) {
    %c0_i32 = arith.constant 0 : i32
    %c0_i32_0 = arith.constant 0 : i32
    %c0_i32_1 = arith.constant 0 : i32
    %c0_i32_2 = arith.constant 0 : i32
    return %arg0, %c0_i32, %c0_i32_0, %c0_i32_1 : i32, i32, i32, i32
  }
  func.func @transform_1(%arg0: i32, %arg1: i32) -> (i32, i32, i32) {
    %c0_i32 = arith.constant 0 : i32
    %c0_i32_0 = arith.constant 0 : i32
    %c0_i32_1 = arith.constant 0 : i32
    %c0_i32_2 = arith.constant 0 : i32
    return %c0_i32, %c0_i32_0, %c0_i32_1 : i32, i32, i32
  }
  func.func @transform_2(%arg0: i32, %arg1: i32) -> (i32, i32) {
    %c0_i32 = arith.constant 0 : i32
    %c0_i32_0 = arith.constant 0 : i32
    %c0_i32_1 = arith.constant 0 : i32
    return %c0_i32, %c0_i32_0 : i32, i32
  }
  func.func @transform_3(%arg0: i32, %arg1: i32) -> (i32, i32) {
    %c0_i32 = arith.constant 0 : i32
    %c0_i32_0 = arith.constant 0 : i32
    %c0_i32_1 = arith.constant 0 : i32
    return %c0_i32, %c0_i32_0 : i32, i32
  }
  func.func @transform_4(%arg0: i32, %arg1: i32) -> (i32, i32, i32, i32) {
    %c0_i32 = arith.constant 0 : i32
    %c0_i32_0 = arith.constant 0 : i32
    %c0_i32_1 = arith.constant 0 : i32
    return %arg0, %arg1, %c0_i32, %c0_i32_0 : i32, i32, i32, i32
  }
}

module attributes {stable_mosaic.version = 11 : i64} {
  func.func @_conv3x3_kernel(%arg0: i32, %arg1: i32, %arg2: memref<1x132x132x32xf32, #tpu.memory_space<vmem>>, %arg3: memref<3x96x32xf32, #tpu.memory_space<vmem>>, %arg4: memref<1x32xf32, #tpu.memory_space<vmem>>, %arg5: memref<1x32xf32, #tpu.memory_space<vmem>>, %arg6: memref<1x65x130x32xf32, #tpu.memory_space<vmem>>) attributes {dimension_semantics = [#tpu.dimension_semantics<parallel>, #tpu.dimension_semantics<parallel>], iteration_bounds = array<i64: 2, 2>, scalar_prefetch = 0 : i64, scratch_operands = 0 : i64, tpu.core_type = #tpu.core_type<tc>, window_params = [{transform_indices = @transform_0, window_bounds = array<i64: 1, 132, 132, 32>}, {pipeline_mode = #tpu.pipeline_mode<synchronous>, transform_indices = @transform_1, window_bounds = array<i64: 3, 96, 32>}, {pipeline_mode = #tpu.pipeline_mode<synchronous>, transform_indices = @transform_2, window_bounds = array<i64: 1, 32>}, {pipeline_mode = #tpu.pipeline_mode<synchronous>, transform_indices = @transform_3, window_bounds = array<i64: 1, 32>}, {transform_indices = @transform_4, window_bounds = array<i64: 1, 65, 130, 32>}]} {
    %c65_i32 = arith.constant 65 : i32
    %0 = arith.muli %arg1, %c65_i32 : i32
    %c0 = arith.constant 0 : index
    %c0_0 = arith.constant 0 : index
    %1 = vector.load %arg4[%c0, %c0_0] : memref<1x32xf32, #tpu.memory_space<vmem>>, vector<1x32xf32>
    %c0_1 = arith.constant 0 : index
    %c0_2 = arith.constant 0 : index
    %2 = vector.load %arg5[%c0_1, %c0_2] : memref<1x32xf32, #tpu.memory_space<vmem>>, vector<1x32xf32>
    %c0_3 = arith.constant 0 : index
    %c0_4 = arith.constant 0 : index
    %c0_5 = arith.constant 0 : index
    %3 = vector.load %arg3[%c0_3, %c0_4, %c0_5] : memref<3x96x32xf32, #tpu.memory_space<vmem>>, vector<3x96x32xf32>
    %c0_i32 = arith.constant 0 : i32
    %c65_i32_6 = arith.constant 65 : i32
    %4 = arith.addi %c0_i32, %c65_i32_6 : i32
    %c1_i32 = arith.constant 1 : i32
    scf.for %arg7 = %c0_i32 to %4 step %c1_i32  : i32 {
      %5 = arith.addi %0, %arg7 : i32
      %cst = arith.constant 0.000000e+00 : f32
      %6 = vector.broadcast %cst : f32 to vector<130x32xf32>
      %c0_i32_8 = arith.constant 0 : i32
      %7 = arith.addi %5, %c0_i32_8 : i32
      %c0_9 = arith.constant 0 : index
      %8 = arith.index_cast %7 : i32 to index
      %c0_10 = arith.constant 0 : index
      %c0_11 = arith.constant 0 : index
      %9 = vector.load %arg2[%c0_9, %8, %c0_10, %c0_11] : memref<1x132x132x32xf32, #tpu.memory_space<vmem>>, vector<1x1x132x32xf32>
      %10 = vector.shape_cast %9 : vector<1x1x132x32xf32> to vector<132x32xf32>
      %11 = vector.extract_strided_slice %10 {offsets = [0, 0], sizes = [130, 32], strides = [1, 1]} : vector<132x32xf32> to vector<130x32xf32>
      %12 = vector.extract_strided_slice %10 {offsets = [1, 0], sizes = [130, 32], strides = [1, 1]} : vector<132x32xf32> to vector<130x32xf32>
      %13 = vector.extract_strided_slice %10 {offsets = [2, 0], sizes = [130, 32], strides = [1, 1]} : vector<132x32xf32> to vector<130x32xf32>
      %14 = tpu.concatenate %11, %12, %13 in 1 : vector<130x32xf32>, vector<130x32xf32>, vector<130x32xf32> -> vector<130x96xf32>
      %15 = vector.extract_strided_slice %3 {offsets = [0, 0, 0], sizes = [1, 96, 32], strides = [1, 1, 1]} : vector<3x96x32xf32> to vector<1x96x32xf32>
      %16 = vector.shape_cast %15 : vector<1x96x32xf32> to vector<96x32xf32>
      %cst_12 = arith.constant dense<0.000000e+00> : vector<130x32xf32>
      %17 = tpu.matmul %14, %16, %cst_12 {dimension_numbers = #tpu.dot_dimension_numbers<[1], [0], [0], [1], [0, 0, 1, 1], [], []>} : vector<130x96xf32>, vector<96x32xf32>, vector<130x32xf32> -> vector<130x32xf32>
      %18 = arith.addf %6, %17 : vector<130x32xf32>
      %c1_i32_13 = arith.constant 1 : i32
      %19 = arith.addi %5, %c1_i32_13 : i32
      %c0_14 = arith.constant 0 : index
      %20 = arith.index_cast %19 : i32 to index
      %c0_15 = arith.constant 0 : index
      %c0_16 = arith.constant 0 : index
      %21 = vector.load %arg2[%c0_14, %20, %c0_15, %c0_16] : memref<1x132x132x32xf32, #tpu.memory_space<vmem>>, vector<1x1x132x32xf32>
      %22 = vector.shape_cast %21 : vector<1x1x132x32xf32> to vector<132x32xf32>
      %23 = vector.extract_strided_slice %22 {offsets = [0, 0], sizes = [130, 32], strides = [1, 1]} : vector<132x32xf32> to vector<130x32xf32>
      %24 = vector.extract_strided_slice %22 {offsets = [1, 0], sizes = [130, 32], strides = [1, 1]} : vector<132x32xf32> to vector<130x32xf32>
      %25 = vector.extract_strided_slice %22 {offsets = [2, 0], sizes = [130, 32], strides = [1, 1]} : vector<132x32xf32> to vector<130x32xf32>
      %26 = tpu.concatenate %23, %24, %25 in 1 : vector<130x32xf32>, vector<130x32xf32>, vector<130x32xf32> -> vector<130x96xf32>
      %27 = vector.extract_strided_slice %3 {offsets = [1, 0, 0], sizes = [1, 96, 32], strides = [1, 1, 1]} : vector<3x96x32xf32> to vector<1x96x32xf32>
      %28 = vector.shape_cast %27 : vector<1x96x32xf32> to vector<96x32xf32>
      %cst_17 = arith.constant dense<0.000000e+00> : vector<130x32xf32>
      %29 = tpu.matmul %26, %28, %cst_17 {dimension_numbers = #tpu.dot_dimension_numbers<[1], [0], [0], [1], [0, 0, 1, 1], [], []>} : vector<130x96xf32>, vector<96x32xf32>, vector<130x32xf32> -> vector<130x32xf32>
      %30 = arith.addf %18, %29 : vector<130x32xf32>
      %c2_i32 = arith.constant 2 : i32
      %31 = arith.addi %5, %c2_i32 : i32
      %c0_18 = arith.constant 0 : index
      %32 = arith.index_cast %31 : i32 to index
      %c0_19 = arith.constant 0 : index
      %c0_20 = arith.constant 0 : index
      %33 = vector.load %arg2[%c0_18, %32, %c0_19, %c0_20] : memref<1x132x132x32xf32, #tpu.memory_space<vmem>>, vector<1x1x132x32xf32>
      %34 = vector.shape_cast %33 : vector<1x1x132x32xf32> to vector<132x32xf32>
      %35 = vector.extract_strided_slice %34 {offsets = [0, 0], sizes = [130, 32], strides = [1, 1]} : vector<132x32xf32> to vector<130x32xf32>
      %36 = vector.extract_strided_slice %34 {offsets = [1, 0], sizes = [130, 32], strides = [1, 1]} : vector<132x32xf32> to vector<130x32xf32>
      %37 = vector.extract_strided_slice %34 {offsets = [2, 0], sizes = [130, 32], strides = [1, 1]} : vector<132x32xf32> to vector<130x32xf32>
      %38 = tpu.concatenate %35, %36, %37 in 1 : vector<130x32xf32>, vector<130x32xf32>, vector<130x32xf32> -> vector<130x96xf32>
      %39 = vector.extract_strided_slice %3 {offsets = [2, 0, 0], sizes = [1, 96, 32], strides = [1, 1, 1]} : vector<3x96x32xf32> to vector<1x96x32xf32>
      %40 = vector.shape_cast %39 : vector<1x96x32xf32> to vector<96x32xf32>
      %cst_21 = arith.constant dense<0.000000e+00> : vector<130x32xf32>
      %41 = tpu.matmul %38, %40, %cst_21 {dimension_numbers = #tpu.dot_dimension_numbers<[1], [0], [0], [1], [0, 0, 1, 1], [], []>} : vector<130x96xf32>, vector<96x32xf32>, vector<130x32xf32> -> vector<130x32xf32>
      %42 = arith.addf %30, %41 : vector<130x32xf32>
      %43 = vector.broadcast %1 : vector<1x32xf32> to vector<130x32xf32>
      %44 = arith.mulf %42, %43 : vector<130x32xf32>
      %45 = vector.broadcast %2 : vector<1x32xf32> to vector<130x32xf32>
      %46 = arith.addf %44, %45 : vector<130x32xf32>
      %cst_22 = arith.constant 0.000000e+00 : f32
      %47 = vector.broadcast %cst_22 : f32 to vector<130x32xf32>
      %48 = arith.maximumf %46, %47 : vector<130x32xf32>
      %c0_23 = arith.constant 0 : index
      %49 = arith.index_cast %arg7 : i32 to index
      %c0_24 = arith.constant 0 : index
      %c0_25 = arith.constant 0 : index
      %50 = vector.load %arg6[%c0_23, %49, %c0_24, %c0_25] : memref<1x65x130x32xf32, #tpu.memory_space<vmem>>, vector<1x1x130x32xf32>
      %51 = vector.shape_cast %50 : vector<1x1x130x32xf32> to vector<130x32xf32>
      %52 = vector.shape_cast %48 : vector<130x32xf32> to vector<1x1x130x32xf32>
      tpu.vector_store %arg6[%c0_23, %49, %c0_24, %c0_25], %52 {strides = array<i32>} : memref<1x65x130x32xf32, #tpu.memory_space<vmem>>, vector<1x1x130x32xf32>,
    }
    %c65_i32_7 = arith.constant 65 : i32
    return
  }
  func.func @transform_0(%arg0: i32, %arg1: i32) -> (i32, i32, i32, i32) {
    %c0_i32 = arith.constant 0 : i32
    %c0_i32_0 = arith.constant 0 : i32
    %c0_i32_1 = arith.constant 0 : i32
    %c0_i32_2 = arith.constant 0 : i32
    return %arg0, %c0_i32, %c0_i32_0, %c0_i32_1 : i32, i32, i32, i32
  }
  func.func @transform_1(%arg0: i32, %arg1: i32) -> (i32, i32, i32) {
    %c0_i32 = arith.constant 0 : i32
    %c0_i32_0 = arith.constant 0 : i32
    %c0_i32_1 = arith.constant 0 : i32
    %c0_i32_2 = arith.constant 0 : i32
    return %c0_i32, %c0_i32_0, %c0_i32_1 : i32, i32, i32
  }
  func.func @transform_2(%arg0: i32, %arg1: i32) -> (i32, i32) {
    %c0_i32 = arith.constant 0 : i32
    %c0_i32_0 = arith.constant 0 : i32
    %c0_i32_1 = arith.constant 0 : i32
    return %c0_i32, %c0_i32_0 : i32, i32
  }
  func.func @transform_3(%arg0: i32, %arg1: i32) -> (i32, i32) {
    %c0_i32 = arith.constant 0 : i32
    %c0_i32_0 = arith.constant 0 : i32
    %c0_i32_1 = arith.constant 0 : i32
    return %c0_i32, %c0_i32_0 : i32, i32
  }
  func.func @transform_4(%arg0: i32, %arg1: i32) -> (i32, i32, i32, i32) {
    %c0_i32 = arith.constant 0 : i32
    %c0_i32_0 = arith.constant 0 : i32
    %c0_i32_1 = arith.constant 0 : i32
    return %arg0, %arg1, %c0_i32, %c0_i32_0 : i32, i32, i32, i32
  }
}

module attributes {stable_mosaic.version = 11 : i64} {
  func.func @_final_conv_sigmoid_pool_kernel(%arg0: i32, %arg1: memref<1x130x130x32xf32, #tpu.memory_space<vmem>>, %arg2: memref<1x288xf32, #tpu.memory_space<vmem>>, %arg3: memref<1x1xf32, #tpu.memory_space<vmem>>, %arg4: memref<1x128x128xf32, #tpu.memory_space<vmem>>, %arg5: memref<1x128x128xf32, #tpu.memory_space<vmem>>, %arg6: memref<1x16x16xf32, #tpu.memory_space<vmem>>) attributes {dimension_semantics = [#tpu.dimension_semantics<parallel>], iteration_bounds = array<i64: 2>, scalar_prefetch = 0 : i64, scratch_operands = 0 : i64, tpu.core_type = #tpu.core_type<tc>, window_params = [{transform_indices = @transform_0, window_bounds = array<i64: 1, 130, 130, 32>}, {pipeline_mode = #tpu.pipeline_mode<synchronous>, transform_indices = @transform_1, window_bounds = array<i64: 1, 288>}, {pipeline_mode = #tpu.pipeline_mode<synchronous>, transform_indices = @transform_2, window_bounds = array<i64: 1, 1>}, {transform_indices = @transform_3, window_bounds = array<i64: 1, 128, 128>}, {transform_indices = @transform_4, window_bounds = array<i64: 1, 128, 128>}, {transform_indices = @transform_5, window_bounds = array<i64: 1, 16, 16>}]} {
    %c0 = arith.constant 0 : index
    %c0_0 = arith.constant 0 : index
    %0 = vector.load %arg2[%c0, %c0_0] : memref<1x288xf32, #tpu.memory_space<vmem>>, vector<1x288xf32>
    %c0_1 = arith.constant 0 : index
    %c0_2 = arith.constant 0 : index
    %1 = vector.load %arg3[%c0_1, %c0_2] : memref<1x1xf32, #tpu.memory_space<vmem>>, vector<1x1xf32>
    %c0_i32 = arith.constant 0 : i32
    %c128_i32 = arith.constant 128 : i32
    %2 = arith.addi %c0_i32, %c128_i32 : i32
    %c1_i32 = arith.constant 1 : i32
    scf.for %arg7 = %c0_i32 to %2 step %c1_i32  : i32 {
      %c0_i32_11 = arith.constant 0 : i32
      %14 = arith.addi %arg7, %c0_i32_11 : i32
      %c0_12 = arith.constant 0 : index
      %15 = arith.index_cast %14 : i32 to index
      %c0_13 = arith.constant 0 : index
      %c0_14 = arith.constant 0 : index
      %16 = vector.load %arg1[%c0_12, %15, %c0_13, %c0_14] : memref<1x130x130x32xf32, #tpu.memory_space<vmem>>, vector<1x1x130x32xf32>
      %17 = vector.shape_cast %16 : vector<1x1x130x32xf32> to vector<130x32xf32>
      %18 = vector.extract_strided_slice %17 {offsets = [0, 0], sizes = [128, 32], strides = [1, 1]} : vector<130x32xf32> to vector<128x32xf32>
      %19 = vector.extract_strided_slice %17 {offsets = [1, 0], sizes = [128, 32], strides = [1, 1]} : vector<130x32xf32> to vector<128x32xf32>
      %20 = vector.extract_strided_slice %17 {offsets = [2, 0], sizes = [128, 32], strides = [1, 1]} : vector<130x32xf32> to vector<128x32xf32>
      %c1_i32_15 = arith.constant 1 : i32
      %21 = arith.addi %arg7, %c1_i32_15 : i32
      %c0_16 = arith.constant 0 : index
      %22 = arith.index_cast %21 : i32 to index
      %c0_17 = arith.constant 0 : index
      %c0_18 = arith.constant 0 : index
      %23 = vector.load %arg1[%c0_16, %22, %c0_17, %c0_18] : memref<1x130x130x32xf32, #tpu.memory_space<vmem>>, vector<1x1x130x32xf32>
      %24 = vector.shape_cast %23 : vector<1x1x130x32xf32> to vector<130x32xf32>
      %25 = vector.extract_strided_slice %24 {offsets = [0, 0], sizes = [128, 32], strides = [1, 1]} : vector<130x32xf32> to vector<128x32xf32>
      %26 = vector.extract_strided_slice %24 {offsets = [1, 0], sizes = [128, 32], strides = [1, 1]} : vector<130x32xf32> to vector<128x32xf32>
      %27 = vector.extract_strided_slice %24 {offsets = [2, 0], sizes = [128, 32], strides = [1, 1]} : vector<130x32xf32> to vector<128x32xf32>
      %c2_i32 = arith.constant 2 : i32
      %28 = arith.addi %arg7, %c2_i32 : i32
      %c0_19 = arith.constant 0 : index
      %29 = arith.index_cast %28 : i32 to index
      %c0_20 = arith.constant 0 : index
      %c0_21 = arith.constant 0 : index
      %30 = vector.load %arg1[%c0_19, %29, %c0_20, %c0_21] : memref<1x130x130x32xf32, #tpu.memory_space<vmem>>, vector<1x1x130x32xf32>
      %31 = vector.shape_cast %30 : vector<1x1x130x32xf32> to vector<130x32xf32>
      %32 = vector.extract_strided_slice %31 {offsets = [0, 0], sizes = [128, 32], strides = [1, 1]} : vector<130x32xf32> to vector<128x32xf32>
      %33 = vector.extract_strided_slice %31 {offsets = [1, 0], sizes = [128, 32], strides = [1, 1]} : vector<130x32xf32> to vector<128x32xf32>
      %34 = vector.extract_strided_slice %31 {offsets = [2, 0], sizes = [128, 32], strides = [1, 1]} : vector<130x32xf32> to vector<128x32xf32>
      %35 = tpu.concatenate %18, %19, %20, %25, %26, %27, %32, %33, %34 in 1 : vector<128x32xf32>, vector<128x32xf32>, vector<128x32xf32>, vector<128x32xf32>, vector<128x32xf32>, vector<128x32xf32>, vector<128x32xf32>, vector<128x32xf32>, vector<128x32xf32> -> vector<128x288xf32>
      %cst_22 = arith.constant dense<0.000000e+00> : vector<1x128xf32>
      %36 = tpu.matmul %0, %35, %cst_22 {dimension_numbers = #tpu.dot_dimension_numbers<[1], [1], [0], [0], [0, 0, 1, 0], [], []>} : vector<1x288xf32>, vector<128x288xf32>, vector<1x128xf32> -> vector<1x128xf32>
      %37 = vector.broadcast %1 : vector<1x1xf32> to vector<1x128xf32>
      %38 = arith.addf %36, %37 : vector<1x128xf32>
      %c0_23 = arith.constant 0 : index
      %39 = arith.index_cast %arg7 : i32 to index
      %c0_24 = arith.constant 0 : index
      %40 = vector.load %arg4[%c0_23, %39, %c0_24] : memref<1x128x128xf32, #tpu.memory_space<vmem>>, vector<1x1x128xf32>
      %41 = vector.shape_cast %40 : vector<1x1x128xf32> to vector<1x128xf32>
      %42 = vector.shape_cast %38 : vector<1x128xf32> to vector<1x1x128xf32>
      tpu.vector_store %arg4[%c0_23, %39, %c0_24], %42 {strides = array<i32>} : memref<1x128x128xf32, #tpu.memory_space<vmem>>, vector<1x1x128xf32>,
      %43 = arith.negf %38 : vector<1x128xf32>
      %44 = math.exp %43 : vector<1x128xf32>
      %cst_25 = arith.constant 1.000000e+00 : f32
      %45 = vector.broadcast %cst_25 : f32 to vector<1x128xf32>
      %46 = arith.addf %45, %44 : vector<1x128xf32>
      %47 = arith.divf %45, %46 : vector<1x128xf32>
      %c0_26 = arith.constant 0 : index
      %48 = arith.index_cast %arg7 : i32 to index
      %c0_27 = arith.constant 0 : index
      %49 = vector.load %arg5[%c0_26, %48, %c0_27] : memref<1x128x128xf32, #tpu.memory_space<vmem>>, vector<1x1x128xf32>
      %50 = vector.shape_cast %49 : vector<1x1x128xf32> to vector<1x128xf32>
      %51 = vector.shape_cast %47 : vector<1x128xf32> to vector<1x1x128xf32>
      tpu.vector_store %arg5[%c0_26, %48, %c0_27], %51 {strides = array<i32>} : memref<1x128x128xf32, #tpu.memory_space<vmem>>, vector<1x1x128xf32>,
    }
    %c128_i32_3 = arith.constant 128 : i32
    %c0_4 = arith.constant 0 : index
    %c0_5 = arith.constant 0 : index
    %c0_6 = arith.constant 0 : index
    %3 = vector.load %arg5[%c0_4, %c0_5, %c0_6] : memref<1x128x128xf32, #tpu.memory_space<vmem>>, vector<1x128x128xf32>
    %4 = vector.shape_cast %3 : vector<1x128x128xf32> to vector<128x128xf32>
    %5 = vector.shape_cast %4 : vector<128x128xf32> to vector<16x8x128xf32>
    %cst = arith.constant dense<0xFF800000> : vector<16x128xf32>
    %6 = vector.multi_reduction <maximumf>, %5, %cst [1] : vector<16x8x128xf32> to vector<16x128xf32>
    %7 = tpu.transpose %6, [1, 0] : vector<16x128xf32> -> vector<128x16xf32>
    %8 = vector.shape_cast %7 : vector<128x16xf32> to vector<16x8x16xf32>
    %cst_7 = arith.constant dense<0xFF800000> : vector<16x16xf32>
    %9 = vector.multi_reduction <maximumf>, %8, %cst_7 [1] : vector<16x8x16xf32> to vector<16x16xf32>
    %10 = tpu.transpose %9, [1, 0] : vector<16x16xf32> -> vector<16x16xf32>
    %c0_8 = arith.constant 0 : index
    %c0_9 = arith.constant 0 : index
    %c0_10 = arith.constant 0 : index
    %11 = vector.load %arg6[%c0_8, %c0_9, %c0_10] : memref<1x16x16xf32, #tpu.memory_space<vmem>>, vector<1x16x16xf32>
    %12 = vector.shape_cast %11 : vector<1x16x16xf32> to vector<16x16xf32>
    %13 = vector.shape_cast %10 : vector<16x16xf32> to vector<1x16x16xf32>
    tpu.vector_store %arg6[%c0_8, %c0_9, %c0_10], %13 {strides = array<i32>} : memref<1x16x16xf32, #tpu.memory_space<vmem>>, vector<1x16x16xf32>,
    return
  }
  func.func @transform_0(%arg0: i32) -> (i32, i32, i32, i32) {
    %c0_i32 = arith.constant 0 : i32
    %c0_i32_0 = arith.constant 0 : i32
    %c0_i32_1 = arith.constant 0 : i32
    %c0_i32_2 = arith.constant 0 : i32
    return %arg0, %c0_i32, %c0_i32_0, %c0_i32_1 : i32, i32, i32, i32
  }
  func.func @transform_1(%arg0: i32) -> (i32, i32) {
    %c0_i32 = arith.constant 0 : i32
    %c0_i32_0 = arith.constant 0 : i32
    %c0_i32_1 = arith.constant 0 : i32
    return %c0_i32, %c0_i32_0 : i32, i32
  }
  func.func @transform_2(%arg0: i32) -> (i32, i32) {
    %c0_i32 = arith.constant 0 : i32
    %c0_i32_0 = arith.constant 0 : i32
    %c0_i32_1 = arith.constant 0 : i32
    return %c0_i32, %c0_i32_0 : i32, i32
  }
  func.func @transform_3(%arg0: i32) -> (i32, i32, i32) {
    %c0_i32 = arith.constant 0 : i32
    %c0_i32_0 = arith.constant 0 : i32
    %c0_i32_1 = arith.constant 0 : i32
    return %arg0, %c0_i32, %c0_i32_0 : i32, i32, i32
  }
  func.func @transform_4(%arg0: i32) -> (i32, i32, i32) {
    %c0_i32 = arith.constant 0 : i32
    %c0_i32_0 = arith.constant 0 : i32
    %c0_i32_1 = arith.constant 0 : i32
    return %arg0, %c0_i32, %c0_i32_0 : i32, i32, i32
  }
  func.func @transform_5(%arg0: i32) -> (i32, i32, i32) {
    %c0_i32 = arith.constant 0 : i32
    %c0_i32_0 = arith.constant 0 : i32
    %c0_i32_1 = arith.constant 0 : i32
    return %arg0, %c0_i32, %c0_i32_0 : i32, i32, i32
  }
}

module attributes {stable_mosaic.version = 11 : i64} {
  func.func @_coord_kernel(%arg0: i32, %arg1: memref<32xi32, #tpu.memory_space<smem>>, %arg2: memref<32xi32, #tpu.memory_space<smem>>, %arg3: memref<32xi32, #tpu.memory_space<smem>>, %arg4: memref<1x128x128xf32, #tpu.memory_space<vmem>>, %arg5: memref<1x1x128xf32, #tpu.memory_space<vmem>>) attributes {dimension_semantics = [#tpu.dimension_semantics<parallel>], iteration_bounds = array<i64: 32>, scalar_prefetch = 3 : i64, scratch_operands = 0 : i64, tpu.core_type = #tpu.core_type<tc>, window_params = [{transform_indices = @transform_0, window_bounds = array<i64: 1, 128, 128>}, {transform_indices = @transform_1, window_bounds = array<i64: 1, 1, 128>}]} {
    %0 = arith.index_cast %arg0 : i32 to index
    %1 = memref.load %arg2[%0] : memref<32xi32, #tpu.memory_space<smem>>
    %2 = arith.index_cast %arg0 : i32 to index
    %3 = memref.load %arg3[%2] : memref<32xi32, #tpu.memory_space<smem>>
    %c8_i32 = arith.constant 8 : i32
    %4 = arith.muli %1, %c8_i32 : i32
    %5 = tpu.assume_multiple %4, 8 : i32
    %c0 = arith.constant 0 : index
    %6 = arith.index_cast %5 : i32 to index
    %c0_0 = arith.constant 0 : index
    %7 = vector.load %arg4[%c0, %6, %c0_0] : memref<1x128x128xf32, #tpu.memory_space<vmem>>, vector<1x8x128xf32>
    %8 = vector.shape_cast %7 : vector<1x8x128xf32> to vector<8x128xf32>
    %9 = tpu.iota {dimensions = array<i32: 1>} : vector<8x128xi32>
    %10 = tpu.iota {dimensions = array<i32: 0>} : vector<8x128xi32>
    %c8_i32_1 = arith.constant 8 : i32
    %11 = arith.muli %3, %c8_i32_1 : i32
    %12 = vector.broadcast %11 : i32 to vector<8x128xi32>
    %13 = arith.cmpi sge, %9, %12 : vector<8x128xi32>
    %c1_i32 = arith.constant 1 : i32
    %14 = arith.addi %3, %c1_i32 : i32
    %c8_i32_2 = arith.constant 8 : i32
    %15 = arith.muli %14, %c8_i32_2 : i32
    %16 = vector.broadcast %15 : i32 to vector<8x128xi32>
    %17 = arith.cmpi slt, %9, %16 : vector<8x128xi32>
    %18 = arith.andi %13, %17 : vector<8x128xi1>
    %cst = arith.constant 0.000000e+00 : f32
    %19 = vector.broadcast %cst : f32 to vector<8x128xf32>
    %20 = arith.select %18, %8, %19 : vector<8x128xi1>, vector<8x128xf32>
    %21 = arith.sitofp %9 : vector<8x128xi32> to vector<8x128xf32>
    %cst_3 = arith.constant 0.00787401571 : f32
    %22 = vector.broadcast %cst_3 : f32 to vector<8x128xf32>
    %23 = arith.mulf %21, %22 : vector<8x128xf32>
    %c8_i32_4 = arith.constant 8 : i32
    %24 = arith.muli %1, %c8_i32_4 : i32
    %25 = vector.broadcast %24 : i32 to vector<8x128xi32>
    %26 = arith.addi %10, %25 : vector<8x128xi32>
    %27 = arith.sitofp %26 : vector<8x128xi32> to vector<8x128xf32>
    %cst_5 = arith.constant 0.00787401571 : f32
    %28 = vector.broadcast %cst_5 : f32 to vector<8x128xf32>
    %29 = arith.mulf %27, %28 : vector<8x128xf32>
    %cst_6 = arith.constant dense<0.000000e+00> : vector<8xf32>
    %30 = vector.multi_reduction <add>, %20, %cst_6 [1] : vector<8x128xf32> to vector<8xf32>
    %31 = vector.shape_cast %30 : vector<8xf32> to vector<8x1xf32>
    %cst_7 = arith.constant dense<0.000000e+00> : vector<1xf32>
    %32 = vector.multi_reduction <add>, %31, %cst_7 [0] : vector<8x1xf32> to vector<1xf32>
    %33 = vector.shape_cast %32 : vector<1xf32> to vector<1x1xf32>
    %34 = tpu.reciprocal %33 : vector<1x1xf32> -> vector<1x1xf32>
    %35 = arith.mulf %23, %20 : vector<8x128xf32>
    %cst_8 = arith.constant dense<0.000000e+00> : vector<8xf32>
    %36 = vector.multi_reduction <add>, %35, %cst_8 [1] : vector<8x128xf32> to vector<8xf32>
    %37 = vector.shape_cast %36 : vector<8xf32> to vector<8x1xf32>
    %cst_9 = arith.constant dense<0.000000e+00> : vector<1xf32>
    %38 = vector.multi_reduction <add>, %37, %cst_9 [0] : vector<8x1xf32> to vector<1xf32>
    %39 = vector.shape_cast %38 : vector<1xf32> to vector<1x1xf32>
    %40 = arith.mulf %39, %34 : vector<1x1xf32>
    %41 = arith.mulf %29, %20 : vector<8x128xf32>
    %cst_10 = arith.constant dense<0.000000e+00> : vector<8xf32>
    %42 = vector.multi_reduction <add>, %41, %cst_10 [1] : vector<8x128xf32> to vector<8xf32>
    %43 = vector.shape_cast %42 : vector<8xf32> to vector<8x1xf32>
    %cst_11 = arith.constant dense<0.000000e+00> : vector<1xf32>
    %44 = vector.multi_reduction <add>, %43, %cst_11 [0] : vector<8x1xf32> to vector<1xf32>
    %45 = vector.shape_cast %44 : vector<1xf32> to vector<1x1xf32>
    %46 = arith.mulf %45, %34 : vector<1x1xf32>
    %47 = tpu.iota {dimensions = array<i32: 1>} : vector<1x128xi32>
    %c0_i32 = arith.constant 0 : i32
    %48 = vector.broadcast %c0_i32 : i32 to vector<1x128xi32>
    %49 = arith.cmpi eq, %47, %48 : vector<1x128xi32>
    %cst_12 = arith.constant 0.000000e+00 : f32
    %50 = vector.shape_cast %40 : vector<1x1xf32> to vector<1x1xf32>
    %51 = vector.broadcast %50 : vector<1x1xf32> to vector<1x128xf32>
    %52 = vector.broadcast %cst_12 : f32 to vector<1x128xf32>
    %53 = arith.select %49, %51, %52 : vector<1x128xi1>, vector<1x128xf32>
    %c1_i32_13 = arith.constant 1 : i32
    %54 = vector.broadcast %c1_i32_13 : i32 to vector<1x128xi32>
    %55 = arith.cmpi eq, %47, %54 : vector<1x128xi32>
    %cst_14 = arith.constant 0.000000e+00 : f32
    %56 = vector.shape_cast %46 : vector<1x1xf32> to vector<1x1xf32>
    %57 = vector.broadcast %56 : vector<1x1xf32> to vector<1x128xf32>
    %58 = vector.broadcast %cst_14 : f32 to vector<1x128xf32>
    %59 = arith.select %55, %57, %58 : vector<1x128xi1>, vector<1x128xf32>
    %60 = arith.addf %53, %59 : vector<1x128xf32>
    %c0_15 = arith.constant 0 : index
    %c0_16 = arith.constant 0 : index
    %c0_17 = arith.constant 0 : index
    %61 = vector.load %arg5[%c0_15, %c0_16, %c0_17] : memref<1x1x128xf32, #tpu.memory_space<vmem>>, vector<1x1x128xf32>
    %62 = vector.shape_cast %61 : vector<1x1x128xf32> to vector<1x128xf32>
    %63 = vector.shape_cast %60 : vector<1x128xf32> to vector<1x1x128xf32>
    tpu.vector_store %arg5[%c0_15, %c0_16, %c0_17], %63 {strides = array<i32>} : memref<1x1x128xf32, #tpu.memory_space<vmem>>, vector<1x1x128xf32>,
    return
  }
  func.func @transform_0(%arg0: i32, %arg1: memref<32xi32, #tpu.memory_space<smem>>, %arg2: memref<32xi32, #tpu.memory_space<smem>>, %arg3: memref<32xi32, #tpu.memory_space<smem>>) -> (i32, i32, i32) {
    %0 = arith.index_cast %arg0 : i32 to index
    %1 = memref.load %arg1[%0] : memref<32xi32, #tpu.memory_space<smem>>
    %c0_i32 = arith.constant 0 : i32
    %c0_i32_0 = arith.constant 0 : i32
    %c0_i32_1 = arith.constant 0 : i32
    return %1, %c0_i32, %c0_i32_0 : i32, i32, i32
  }
  func.func @transform_1(%arg0: i32, %arg1: memref<32xi32, #tpu.memory_space<smem>>, %arg2: memref<32xi32, #tpu.memory_space<smem>>, %arg3: memref<32xi32, #tpu.memory_space<smem>>) -> (i32, i32, i32) {
    %c0_i32 = arith.constant 0 : i32
    %c0_i32_0 = arith.constant 0 : i32
    %c0_i32_1 = arith.constant 0 : i32
    return %arg0, %c0_i32, %c0_i32_0 : i32, i32, i32
  }
}

</mosaic_0001>

<llo_original>
// kernel: _device_forward.5
$region0: #{_device_forward.5}
  #allocation0 [shape = 'u32[]', space=smem, size = 0x4, offset = 0x4, fixed_abs, tag = 'smem constant byte address 0x4 - core index']
  #allocation1 [shape = 'u32[72,128]{1,0:T(1,128)}', space=vmem, size = 0x9000, scoped, tag = 'internal scratch']
  %s0 = inlined_call_operand.vmem [shape: f32[2,136,136,1], index: 0, kind: input, shape index: {}]
  %s1 = inlined_call_operand.vmem [shape: f32[3,3,64], index: 1, kind: input, shape index: {}]
  %s2 = inlined_call_operand.vmem [shape: f32[1,64], index: 2, kind: input, shape index: {}]
  %s3 = inlined_call_operand.vmem [shape: f32[1,64], index: 3, kind: input, shape index: {}]
  %s4 = inlined_call_operand.vmem [shape: f32[2,134,134,64], index: 4, kind: output, shape index: {}]
  %s5 = sld [smem:[#allocation0]]
  $region56: #{_device_forward.5} parent=0
    _
  %s7 = ssub.s32 1, %s5
  %s8 = scalar_select 0, %s7, %s5
  loop: start=0, step=1, limit=6
  $region2: #{_device_forward.5} parent=0 // loop_pre_header
    _
  $region3: #{_device_forward.5} parent=0 // loop_header
    %s10 = sphi 0, %s14
    %p11 = scmp.ge.s32.totalorder %s10, 6
    %s17 = sphi 0, %s29
    %s18 = sphi 0, %s25
    %s19 = sphi 0, %s17
    %s20 = sphi 0, %s18
    %s21 = sphi 0, %s19
    %s22 = sphi 0, %s20
    %s32 = sphi 0, %s34
    %s35 = sphi 0, %s32
    %s36 = sphi 0, %s35
    %s52 = sphi 0, %s36
    %s56 = sphi 0, %s56
    %s58 = sphi 0, %s56
    %s59 = sphi 0, %s58
    %s73 = sphi 0, %s59
    %s77 = sphi 0, %s77
    %s79 = sphi 0, %s77
    %s80 = sphi 0, %s79
    %s94 = sphi 0, %s80
    %s98 = sphi 0, %s98
    %s100 = sphi 0, %s98
    %s101 = sphi 0, %s100
    %s115 = sphi 0, %s101
    %s123 = sphi 0, %s125
    %s126 = sphi 0, %s123
    %s127 = sphi 0, %s126
    %s143 = sphi 0, %s127
  $region4: #{_device_forward.5} parent=0 // loop_header_branch
    %13 = sbr.rel (%p11) target = $region8
  $region5: #{_device_forward.5} parent=0 // loop_body
    %s15 = ssub.s32 %s10, 1
    %s16 = ssub.s32 %s10, 2
    %s23 = sadd.s32 1, %s18
    %p24 = scmp.ge.s32.totalorder %s23, 2
    %s25 = scalar_select %p24, 0, %s23
    %s26 = sadd.s32 1, %s17
    %s27 = scalar_select %p24, %s26, %s17
    %p28 = scmp.ge.s32.totalorder %s27, 2
    %s29 = scalar_select %p28, 0, %s27
    %s30 = ssub.s32 %s17, %s29
    %p31 = scmp.eq.s32.totalorder %s30, 0
    %s33 = sadd.s32 %s32, 1
    %s34 = scalar_select %p31, %s32, %s33
    %p37 = pneg %p31
    %p38 = scmp.eq.s32.totalorder %s10, 3
    %p39 = por %p37, %p38
    %p40 = scmp.ne.s32.totalorder %s32, %s35
    %p41 = scmp.eq.s32.totalorder %s10, 0
    %p42 = por %p40, %p41
    %p43 = scmp.ne.s32.totalorder %s32, %s35
    %p44 = scmp.eq.s32.totalorder %s15, 3
    %p45 = por %p43, %p44
    %p46 = scmp.ne.s32.totalorder %s35, %s36
    %p47 = scmp.eq.s32.totalorder %s15, 0
    %p48 = por %p46, %p47
    %p49 = scmp.ne.s32.totalorder %s35, %s36
    %p50 = scmp.eq.s32.totalorder %s16, 3
    %p51 = por %p49, %p50
    %p53 = scmp.ne.s32.totalorder %s36, %s52
    %p54 = scmp.eq.s32.totalorder %s16, 0
    %p55 = por %p53, %p54
    %s57 = sadd.s32 %s56, 1
    %p60 = scmp.eq.s32.totalorder %s10, 3
    %p61 = scmp.ne.s32.totalorder %s56, %s58
    %p62 = scmp.eq.s32.totalorder %s10, 0
    %p63 = por %p61, %p62
    %p64 = scmp.ne.s32.totalorder %s56, %s58
    %p65 = scmp.eq.s32.totalorder %s15, 3
    %p66 = por %p64, %p65
    %p67 = scmp.ne.s32.totalorder %s58, %s59
    %p68 = scmp.eq.s32.totalorder %s15, 0
    %p69 = por %p67, %p68
    %p70 = scmp.ne.s32.totalorder %s58, %s59
    %p71 = scmp.eq.s32.totalorder %s16, 3
    %p72 = por %p70, %p71
    %p74 = scmp.ne.s32.totalorder %s59, %s73
    %p75 = scmp.eq.s32.totalorder %s16, 0
    %p76 = por %p74, %p75
    %s78 = sadd.s32 %s77, 1
    %p81 = scmp.eq.s32.totalorder %s10, 3
    %p82 = scmp.ne.s32.totalorder %s77, %s79
    %p83 = scmp.eq.s32.totalorder %s10, 0
    %p84 = por %p82, %p83
    %p85 = scmp.ne.s32.totalorder %s77, %s79
    %p86 = scmp.eq.s32.totalorder %s15, 3
    %p87 = por %p85, %p86
    %p88 = scmp.ne.s32.totalorder %s79, %s80
    %p89 = scmp.eq.s32.totalorder %s15, 0
    %p90 = por %p88, %p89
    %p91 = scmp.ne.s32.totalorder %s79, %s80
    %p92 = scmp.eq.s32.totalorder %s16, 3
    %p93 = por %p91, %p92
    %p95 = scmp.ne.s32.totalorder %s80, %s94
    %p96 = scmp.eq.s32.totalorder %s16, 0
    %p97 = por %p95, %p96
    %s99 = sadd.s32 %s98, 1
    %p102 = scmp.eq.s32.totalorder %s10, 3
    %p103 = scmp.ne.s32.totalorder %s98, %s100
    %p104 = scmp.eq.s32.totalorder %s10, 0
    %p105 = por %p103, %p104
    %p106 = scmp.ne.s32.totalorder %s98, %s100
    %p107 = scmp.eq.s32.totalorder %s15, 3
    %p108 = por %p106, %p107
    %p109 = scmp.ne.s32.totalorder %s100, %s101
    %p110 = scmp.eq.s32.totalorder %s15, 0
    %p111 = por %p109, %p110
    %p112 = scmp.ne.s32.totalorder %s100, %s101
    %p113 = scmp.eq.s32.totalorder %s16, 3
    %p114 = por %p112, %p113
    %p116 = scmp.ne.s32.totalorder %s101, %s115
    %p117 = scmp.eq.s32.totalorder %s16, 0
    %p118 = por %p116, %p117
    %s119 = ssub.s32 %s17, %s29
    %s120 = ssub.s32 %s18, %s25
    %s121 = sor.u32 %s119, %s120
    %p122 = scmp.eq.s32.totalorder %s121, 0
    %s124 = sadd.s32 %s123, 1
    %s125 = scalar_select %p122, %s123, %s124
    %p128 = pneg %p122
    %p129 = scmp.eq.s32.totalorder %s10, 3
    %p130 = por %p128, %p129
    %p131 = scmp.ne.s32.totalorder %s123, %s126
    %p132 = scmp.eq.s32.totalorder %s10, 0
    %p133 = por %p131, %p132
    %p134 = scmp.ne.s32.totalorder %s123, %s126
    %p135 = scmp.eq.s32.totalorder %s15, 3
    %p136 = por %p134, %p135
    %p137 = scmp.ne.s32.totalorder %s126, %s127
    %p138 = scmp.eq.s32.totalorder %s15, 0
    %p139 = por %p137, %p138
    %p140 = scmp.ne.s32.totalorder %s126, %s127
    %p141 = scmp.eq.s32.totalorder %s16, 3
    %p142 = por %p140, %p141
    %p144 = scmp.ne.s32.totalorder %s127, %s143
    %p145 = scmp.eq.s32.totalorder %s16, 0
    %p146 = por %p144, %p145
    %p147 = scmp.le.s32.totalorder 1, %s10
    %p148 = scmp.lt.s32.totalorder %s10, 5
    %p149 = pnand %p147, %p148
    %p150 = pneg %p149
    // Predicated region
    $region9: #{_device_forward.5} parent=5 // pred_check
      _
    $region10: #{_device_forward.5} parent=5 // pred_check_branch
      %152 = sbr.rel (%p149) target = $region12
    $region11: #{_device_forward.5} parent=5 // pred_region
      %s153 = ssub.s32 %s10, 1
      // Predicated region
      $region13: #{_device_forward.5} parent=11 // pred_check
        %p154 = pneg %p69
      $region14: #{_device_forward.5} parent=11 // pred_check_branch
        %156 = sbr.rel (%p154) target = $region16
      $region15: #{_device_forward.5} parent=11 // pred_region
        _
      $region16: #{_device_forward.5} parent=11 // pred_fallthru
        _
      // Predicated region
      $region17: #{_device_forward.5} parent=11 // pred_check
        %p157 = pneg %p90
      $region18: #{_device_forward.5} parent=11 // pred_check_branch
        %159 = sbr.rel (%p157) target = $region20
      $region19: #{_device_forward.5} parent=11 // pred_region
        _
      $region20: #{_device_forward.5} parent=11 // pred_fallthru
        _
      // Predicated region
      $region21: #{_device_forward.5} parent=11 // pred_check
        %p160 = pneg %p111
      $region22: #{_device_forward.5} parent=11 // pred_check_branch
        %162 = sbr.rel (%p160) target = $region24
      $region23: #{_device_forward.5} parent=11 // pred_region
        _
      $region24: #{_device_forward.5} parent=11 // pred_fallthru
        _
    $region12: #{_device_forward.5} parent=5 // pred_fallthru
      _
    %p163 = scmp.lt.s32.totalorder %s10, 4
    // Predicated region
    $region25: #{_device_forward.5} parent=5 // pred_check
      %p164 = pneg %p163
    $region26: #{_device_forward.5} parent=5 // pred_check_branch
      %166 = sbr.rel (%p164) target = $region28
    $region27: #{_device_forward.5} parent=5 // pred_region
      // Predicated region
      $region29: #{_device_forward.5} parent=27 // pred_check
        %p167 = pneg %p42
      $region30: #{_device_forward.5} parent=27 // pred_check_branch
        %169 = sbr.rel (%p167) target = $region32
      $region31: #{_device_forward.5} parent=27 // pred_region
        %p170 = scmp.lt.s32.totalorder %s17, 1
        %s171 = scalar_select %p170, %s17, 1
        %s172 = smul.addr %s171, 2312
        %s173 = smul.addr %s172, 8
        %s174 = scalar_lea.vmem %s0, %s173
      $region32: #{_device_forward.5} parent=27 // pred_fallthru
        _
    $region28: #{_device_forward.5} parent=5 // pred_fallthru
      _
    %p175 = scmp.le.s32.totalorder 1, %s10
    %p176 = scmp.lt.s32.totalorder %s10, 5
    %p177 = pnand %p175, %p176
    %p178 = pneg %p177
    // Predicated region
    $region33: #{_device_forward.5} parent=5 // pred_check
      _
    $region34: #{_device_forward.5} parent=5 // pred_check_branch
      %180 = sbr.rel (%p177) target = $region36
    $region35: #{_device_forward.5} parent=5 // pred_region
      %s181 = ssub.s32 %s10, 1
      %p182 = scmp.lt.s32.totalorder %s19, 1
      %s183 = scalar_select %p182, %s19, 1
      %s184 = smul.addr %s183, 2312
      %s185 = smul.addr %s184, 8
      %s186 = scalar_lea.vmem %s0, %s185
      %p187 = pneg %p48
      %p188 = pneg %p45
      %p189 = pneg %p69
      %p190 = pneg %p66
      %p191 = pneg %p90
      %p192 = pneg %p87
      %p193 = pneg %p111
      %p194 = pneg %p108
      %p195 = pneg %p139
      %p196 = pneg %p136
      %s197 = smul.u32 67, %s20
      %p198 = scmp.lt.s32.totalorder %s19, 1
      %s199 = scalar_select %p198, %s19, 1
      %p200 = scmp.lt.s32.totalorder %s197, 133
      %s201 = scalar_select %p200, %s197, 133
      %s202 = smul.addr %s201, 17
      %s203 = smul.addr %s199, 2278
      %s204 = sadd.s32 %s202, %s203
      %s205 = smul.addr %s204, 8
      %s206 = scalar_lea.vmem %s4, %s205
      %p207 = scmp.lt.s32.totalorder %s19, 1
      %s208 = scalar_select %p207, %s19, 1
      %s209 = smul.addr %s208, 2312
      %s210 = smul.addr %s209, 8
      %s211 = scalar_lea.vmem %s0, %s210
      %s212 = smul.u32 67, %s20
      %p213 = scmp.lt.s32.totalorder %s19, 1
      %s214 = scalar_select %p213, %s19, 1
      %p215 = scmp.lt.s32.totalorder %s212, 133
      %s216 = scalar_select %p215, %s212, 133
      %s217 = smul.addr %s216, 17
      %s218 = smul.addr %s214, 2278
      %s219 = sadd.s32 %s217, %s218
      %s220 = smul.addr %s219, 8
      %s221 = scalar_lea.vmem %s4, %s220
      %s222 = smul.u32 67, %s20
      %s223 = smul.u32 %s20, 67
      %v224 = vld [vmem:[%s2] sm:$0x1]
      %v225 = vld [vmem:[%s3] sm:$0x1]
      %v226 = vld [vmem:[%s1] sm:$0x7]
      %v227 = vld [vmem:[%s1 + $0x4] sm:$0x7]
      %v228 = vld [vmem:[%s1 + $0x8] sm:$0x7]
      loop: start=0, step=1, limit=67
      $region37: #{_device_forward.5} parent=35 // loop_pre_header
        _
      $region38: #{_device_forward.5} parent=35 // loop_header
        %s230 = sphi 0, %s234
        %p231 = scmp.ge.s32.totalorder %s230, 67
      $region39: #{_device_forward.5} parent=35 // loop_header_branch
        %233 = sbr.rel (%p231) target = $region43
      $region40: #{_device_forward.5} parent=35 // loop_body
        %s235 = sadd.s32 %s223, %s230
        %s236 = smul.u32 %s235, 136
        %s237 = scalar_lea.vmem %s211, %s236
        %v238 = vld [vmem:[%s237] sm:$0xff]
        %v239 = vld [vmem:[%s237 + $0x8] sm:$0xff]
        %v240 = vld [vmem:[%s237 + $0x10] sm:$0xff]
        %v241 = vld [vmem:[%s237 + $0x18] sm:$0xff]
        %v242 = vld [vmem:[%s237 + $0x20] sm:$0xff]
        %v243 = vld [vmem:[%s237 + $0x28] sm:$0xff]
        %v244 = vld [vmem:[%s237 + $0x30] sm:$0xff]
        %v245 = vld [vmem:[%s237 + $0x38] sm:$0xff]
        %v246 = vld [vmem:[%s237 + $0x40] sm:$0xff]
        %v247 = vld [vmem:[%s237 + $0x48] sm:$0xff]
        %v248 = vld [vmem:[%s237 + $0x50] sm:$0xff]
        %v249 = vld [vmem:[%s237 + $0x58] sm:$0xff]
        %v250 = vld [vmem:[%s237 + $0x60] sm:$0xff]
        %v251 = vld [vmem:[%s237 + $0x68] sm:$0xff]
        %v252 = vld [vmem:[%s237 + $0x70] sm:$0xff]
        %v253 = vld [vmem:[%s237 + $0x78] sm:$0xff]
        %v254 = vld [vmem:[%s237 + $0x80] sm:$0xff]
        %256 = vset.pattern.permute.xlu0 0
        %257 = vperm.xlu0 %256, %v238
        %v258 = vpop.permute.xlu0 %257
        %261 = vset.pattern.permute.xlu0 0
        %262 = vperm.xlu0 %261, %v239
        %v263 = vpop.permute.xlu0 %262
        %266 = vset.pattern.permute.xlu0 0
        %267 = vperm.xlu0 %266, %v240
        %v268 = vpop.permute.xlu0 %267
        %271 = vset.pattern.permute.xlu0 0
        %272 = vperm.xlu0 %271, %v241
        %v273 = vpop.permute.xlu0 %272
        %276 = vset.pattern.permute.xlu0 0
        %277 = vperm.xlu0 %276, %v242
        %v278 = vpop.permute.xlu0 %277
        %281 = vset.pattern.permute.xlu0 0
        %282 = vperm.xlu0 %281, %v243
        %v283 = vpop.permute.xlu0 %282
        %286 = vset.pattern.permute.xlu0 0
        %287 = vperm.xlu0 %286, %v244
        %v288 = vpop.permute.xlu0 %287
        %291 = vset.pattern.permute.xlu0 0
        %292 = vperm.xlu0 %291, %v245
        %v293 = vpop.permute.xlu0 %292
        %296 = vset.pattern.permute.xlu0 0
        %297 = vperm.xlu0 %296, %v246
        %v298 = vpop.permute.xlu0 %297
        %301 = vset.pattern.permute.xlu0 0
        %302 = vperm.xlu0 %301, %v247
        %v303 = vpop.permute.xlu0 %302
        %306 = vset.pattern.permute.xlu0 0
        %307 = vperm.xlu0 %306, %v248
        %v308 = vpop.permute.xlu0 %307
        %311 = vset.pattern.permute.xlu0 0
        %312 = vperm.xlu0 %311, %v249
        %v313 = vpop.permute.xlu0 %312
        %316 = vset.pattern.permute.xlu0 0
        %317 = vperm.xlu0 %316, %v250
        %v318 = vpop.permute.xlu0 %317
        %321 = vset.pattern.permute.xlu0 0
        %322 = vperm.xlu0 %321, %v251
        %v323 = vpop.permute.xlu0 %322
        %326 = vset.pattern.permute.xlu0 0
        %327 = vperm.xlu0 %326, %v252
        %v328 = vpop.permute.xlu0 %327
        %331 = vset.pattern.permute.xlu0 0
        %332 = vperm.xlu0 %331, %v253
        %v333 = vpop.permute.xlu0 %332
        %336 = vset.pattern.permute.xlu0 0
        %337 = vperm.xlu0 %336, %v254
        %v338 = vpop.permute.xlu0 %337
        %v340 = vperm.slane %v226, 0
        %v341 = vmul.f32 %v258, %v340
        %v342 = vmul.f32 %v263, %v340
        %v343 = vmul.f32 %v268, %v340
        %v344 = vmul.f32 %v273, %v340
        %v345 = vmul.f32 %v278, %v340
        %v346 = vmul.f32 %v283, %v340
        %v347 = vmul.f32 %v288, %v340
        %v348 = vmul.f32 %v293, %v340
        %v349 = vmul.f32 %v298, %v340
        %v350 = vmul.f32 %v303, %v340
        %v351 = vmul.f32 %v308, %v340
        %v352 = vmul.f32 %v313, %v340
        %v353 = vmul.f32 %v318, %v340
        %v354 = vmul.f32 %v323, %v340
        %v355 = vmul.f32 %v328, %v340
        %v356 = vmul.f32 %v333, %v340
        %v357 = vmul.f32 %v338, %v340
        %v358 = vadd.f32 %v341, 0.0
        %v359 = vadd.f32 %v342, 0.0
        %v360 = vadd.f32 %v343, 0.0
        %v361 = vadd.f32 %v344, 0.0
        %v362 = vadd.f32 %v345, 0.0
        %v363 = vadd.f32 %v346, 0.0
        %v364 = vadd.f32 %v347, 0.0
        %v365 = vadd.f32 %v348, 0.0
        %v366 = vadd.f32 %v349, 0.0
        %v367 = vadd.f32 %v350, 0.0
        %v368 = vadd.f32 %v351, 0.0
        %v369 = vadd.f32 %v352, 0.0
        %v370 = vadd.f32 %v353, 0.0
        %v371 = vadd.f32 %v354, 0.0
        %v372 = vadd.f32 %v355, 0.0
        %v373 = vadd.f32 %v356, 0.0
        %v374 = vadd.f32 %v357, 0.0
        %v375 = vperm.slane %v226, 1
        %v376 = vmul.f32 %v258, %v375
        %v377 = vmul.f32 %v263, %v375
        %v378 = vmul.f32 %v268, %v375
        %v379 = vmul.f32 %v273, %v375
        %v380 = vmul.f32 %v278, %v375
        %v381 = vmul.f32 %v283, %v375
        %v382 = vmul.f32 %v288, %v375
        %v383 = vmul.f32 %v293, %v375
        %v384 = vmul.f32 %v298, %v375
        %v385 = vmul.f32 %v303, %v375
        %v386 = vmul.f32 %v308, %v375
        %v387 = vmul.f32 %v313, %v375
        %v388 = vmul.f32 %v318, %v375
        %v389 = vmul.f32 %v323, %v375
        %v390 = vmul.f32 %v328, %v375
        %v391 = vmul.f32 %v333, %v375
        %v392 = vmul.f32 %v338, %v375
        %vm410 = vcmask 1046528
        %v411 = vrot.slane %v376, 1
        %v412 = vrot.slane %v377, 1
        %v413 = vsel %vm410, %v411, %v412
        %v414 = vrot.slane %v378, 1
        %v415 = vsel %vm410, %v412, %v414
        %v416 = vrot.slane %v379, 1
        %v417 = vsel %vm410, %v414, %v416
        %v418 = vrot.slane %v380, 1
        %v419 = vsel %vm410, %v416, %v418
        %v420 = vrot.slane %v381, 1
        %v421 = vsel %vm410, %v418, %v420
        %v422 = vrot.slane %v382, 1
        %v423 = vsel %vm410, %v420, %v422
        %v424 = vrot.slane %v383, 1
        %v425 = vsel %vm410, %v422, %v424
        %v426 = vrot.slane %v384, 1
        %v427 = vsel %vm410, %v424, %v426
        %v428 = vrot.slane %v385, 1
        %v429 = vsel %vm410, %v426, %v428
        %v430 = vrot.slane %v386, 1
        %v431 = vsel %vm410, %v428, %v430
        %v432 = vrot.slane %v387, 1
        %v433 = vsel %vm410, %v430, %v432
        %v434 = vrot.slane %v388, 1
        %v435 = vsel %vm410, %v432, %v434
        %v436 = vrot.slane %v389, 1
        %v437 = vsel %vm410, %v434, %v436
        %v438 = vrot.slane %v390, 1
        %v439 = vsel %vm410, %v436, %v438
        %v440 = vrot.slane %v391, 1
        %v441 = vsel %vm410, %v438, %v440
        %v442 = vrot.slane %v392, 1
        %v443 = vsel %vm410, %v440, %v442
        %v461 = vadd.f32 %v358, %v413
        %v462 = vadd.f32 %v359, %v415
        %v463 = vadd.f32 %v360, %v417
        %v464 = vadd.f32 %v361, %v419
        %v465 = vadd.f32 %v362, %v421
        %v466 = vadd.f32 %v363, %v423
        %v467 = vadd.f32 %v364, %v425
        %v468 = vadd.f32 %v365, %v427
        %v469 = vadd.f32 %v366, %v429
        %v470 = vadd.f32 %v367, %v431
        %v471 = vadd.f32 %v368, %v433
        %v472 = vadd.f32 %v369, %v435
        %v473 = vadd.f32 %v370, %v437
        %v474 = vadd.f32 %v371, %v439
        %v475 = vadd.f32 %v372, %v441
        %v476 = vadd.f32 %v373, %v443
        %v477 = vadd.f32 %v374, %v442
        %v478 = vperm.slane %v226, 2
        %v479 = vmul.f32 %v258, %v478
        %v480 = vmul.f32 %v263, %v478
        %v481 = vmul.f32 %v268, %v478
        %v482 = vmul.f32 %v273, %v478
        %v483 = vmul.f32 %v278, %v478
        %v484 = vmul.f32 %v283, %v478
        %v485 = vmul.f32 %v288, %v478
        %v486 = vmul.f32 %v293, %v478
        %v487 = vmul.f32 %v298, %v478
        %v488 = vmul.f32 %v303, %v478
        %v489 = vmul.f32 %v308, %v478
        %v490 = vmul.f32 %v313, %v478
        %v491 = vmul.f32 %v318, %v478
        %v492 = vmul.f32 %v323, %v478
        %v493 = vmul.f32 %v328, %v478
        %v494 = vmul.f32 %v333, %v478
        %v495 = vmul.f32 %v338, %v478
        %vm513 = vcmask 1045504
        %v514 = vrot.slane %v479, 2
        %v515 = vrot.slane %v480, 2
        %v516 = vsel %vm513, %v514, %v515
        %v517 = vrot.slane %v481, 2
        %v518 = vsel %vm513, %v515, %v517
        %v519 = vrot.slane %v482, 2
        %v520 = vsel %vm513, %v517, %v519
        %v521 = vrot.slane %v483, 2
        %v522 = vsel %vm513, %v519, %v521
        %v523 = vrot.slane %v484, 2
        %v524 = vsel %vm513, %v521, %v523
        %v525 = vrot.slane %v485, 2
        %v526 = vsel %vm513, %v523, %v525
        %v527 = vrot.slane %v486, 2
        %v528 = vsel %vm513, %v525, %v527
        %v529 = vrot.slane %v487, 2
        %v530 = vsel %vm513, %v527, %v529
        %v531 = vrot.slane %v488, 2
        %v532 = vsel %vm513, %v529, %v531
        %v533 = vrot.slane %v489, 2
        %v534 = vsel %vm513, %v531, %v533
        %v535 = vrot.slane %v490, 2
        %v536 = vsel %vm513, %v533, %v535
        %v537 = vrot.slane %v491, 2
        %v538 = vsel %vm513, %v535, %v537
        %v539 = vrot.slane %v492, 2
        %v540 = vsel %vm513, %v537, %v539
        %v541 = vrot.slane %v493, 2
        %v542 = vsel %vm513, %v539, %v541
        %v543 = vrot.slane %v494, 2
        %v544 = vsel %vm513, %v541, %v543
        %v545 = vrot.slane %v495, 2
        %v546 = vsel %vm513, %v543, %v545
        %v564 = vadd.f32 %v461, %v516
        %v565 = vadd.f32 %v462, %v518
        %v566 = vadd.f32 %v463, %v520
        %v567 = vadd.f32 %v464, %v522
        %v568 = vadd.f32 %v465, %v524
        %v569 = vadd.f32 %v466, %v526
        %v570 = vadd.f32 %v467, %v528
        %v571 = vadd.f32 %v468, %v530
        %v572 = vadd.f32 %v469, %v532
        %v573 = vadd.f32 %v470, %v534
        %v574 = vadd.f32 %v471, %v536
        %v575 = vadd.f32 %v472, %v538
        %v576 = vadd.f32 %v473, %v540
        %v577 = vadd.f32 %v474, %v542
        %v578 = vadd.f32 %v475, %v544
        %v579 = vadd.f32 %v476, %v546
        %v580 = vadd.f32 %v477, %v545
        %s581 = sadd.s32 %s235, 1
        %s582 = smul.u32 %s581, 136
        %s583 = scalar_lea.vmem %s211, %s582
        %v584 = vld [vmem:[%s583] sm:$0xff]
        %v585 = vld [vmem:[%s583 + $0x8] sm:$0xff]
        %v586 = vld [vmem:[%s583 + $0x10] sm:$0xff]
        %v587 = vld [vmem:[%s583 + $0x18] sm:$0xff]
        %v588 = vld [vmem:[%s583 + $0x20] sm:$0xff]
        %v589 = vld [vmem:[%s583 + $0x28] sm:$0xff]
        %v590 = vld [vmem:[%s583 + $0x30] sm:$0xff]
        %v591 = vld [vmem:[%s583 + $0x38] sm:$0xff]
        %v592 = vld [vmem:[%s583 + $0x40] sm:$0xff]
        %v593 = vld [vmem:[%s583 + $0x48] sm:$0xff]
        %v594 = vld [vmem:[%s583 + $0x50] sm:$0xff]
        %v595 = vld [vmem:[%s583 + $0x58] sm:$0xff]
        %v596 = vld [vmem:[%s583 + $0x60] sm:$0xff]
        %v597 = vld [vmem:[%s583 + $0x68] sm:$0xff]
        %v598 = vld [vmem:[%s583 + $0x70] sm:$0xff]
        %v599 = vld [vmem:[%s583 + $0x78] sm:$0xff]
        %v600 = vld [vmem:[%s583 + $0x80] sm:$0xff]
        %602 = vset.pattern.permute.xlu0 0
        %603 = vperm.xlu0 %602, %v584
        %v604 = vpop.permute.xlu0 %603
        %607 = vset.pattern.permute.xlu0 0
        %608 = vperm.xlu0 %607, %v585
        %v609 = vpop.permute.xlu0 %608
        %612 = vset.pattern.permute.xlu0 0
        %613 = vperm.xlu0 %612, %v586
        %v614 = vpop.permute.xlu0 %613
        %617 = vset.pattern.permute.xlu0 0
        %618 = vperm.xlu0 %617, %v587
        %v619 = vpop.permute.xlu0 %618
        %622 = vset.pattern.permute.xlu0 0
        %623 = vperm.xlu0 %622, %v588
        %v624 = vpop.permute.xlu0 %623
        %627 = vset.pattern.permute.xlu0 0
        %628 = vperm.xlu0 %627, %v589
        %v629 = vpop.permute.xlu0 %628
        %632 = vset.pattern.permute.xlu0 0
        %633 = vperm.xlu0 %632, %v590
        %v634 = vpop.permute.xlu0 %633
        %637 = vset.pattern.permute.xlu0 0
        %638 = vperm.xlu0 %637, %v591
        %v639 = vpop.permute.xlu0 %638
        %642 = vset.pattern.permute.xlu0 0
        %643 = vperm.xlu0 %642, %v592
        %v644 = vpop.permute.xlu0 %643
        %647 = vset.pattern.permute.xlu0 0
        %648 = vperm.xlu0 %647, %v593
        %v649 = vpop.permute.xlu0 %648
        %652 = vset.pattern.permute.xlu0 0
        %653 = vperm.xlu0 %652, %v594
        %v654 = vpop.permute.xlu0 %653
        %657 = vset.pattern.permute.xlu0 0
        %658 = vperm.xlu0 %657, %v595
        %v659 = vpop.permute.xlu0 %658
        %662 = vset.pattern.permute.xlu0 0
        %663 = vperm.xlu0 %662, %v596
        %v664 = vpop.permute.xlu0 %663
        %667 = vset.pattern.permute.xlu0 0
        %668 = vperm.xlu0 %667, %v597
        %v669 = vpop.permute.xlu0 %668
        %672 = vset.pattern.permute.xlu0 0
        %673 = vperm.xlu0 %672, %v598
        %v674 = vpop.permute.xlu0 %673
        %677 = vset.pattern.permute.xlu0 0
        %678 = vperm.xlu0 %677, %v599
        %v679 = vpop.permute.xlu0 %678
        %682 = vset.pattern.permute.xlu0 0
        %683 = vperm.xlu0 %682, %v600
        %v684 = vpop.permute.xlu0 %683
        %v686 = vperm.slane %v227, 0
        %v687 = vmul.f32 %v604, %v686
        %v688 = vmul.f32 %v609, %v686
        %v689 = vmul.f32 %v614, %v686
        %v690 = vmul.f32 %v619, %v686
        %v691 = vmul.f32 %v624, %v686
        %v692 = vmul.f32 %v629, %v686
        %v693 = vmul.f32 %v634, %v686
        %v694 = vmul.f32 %v639, %v686
        %v695 = vmul.f32 %v644, %v686
        %v696 = vmul.f32 %v649, %v686
        %v697 = vmul.f32 %v654, %v686
        %v698 = vmul.f32 %v659, %v686
        %v699 = vmul.f32 %v664, %v686
        %v700 = vmul.f32 %v669, %v686
        %v701 = vmul.f32 %v674, %v686
        %v702 = vmul.f32 %v679, %v686
        %v703 = vmul.f32 %v684, %v686
        %v704 = vadd.f32 %v564, %v687
        %v705 = vadd.f32 %v565, %v688
        %v706 = vadd.f32 %v566, %v689
        %v707 = vadd.f32 %v567, %v690
        %v708 = vadd.f32 %v568, %v691
        %v709 = vadd.f32 %v569, %v692
        %v710 = vadd.f32 %v570, %v693
        %v711 = vadd.f32 %v571, %v694
        %v712 = vadd.f32 %v572, %v695
        %v713 = vadd.f32 %v573, %v696
        %v714 = vadd.f32 %v574, %v697
        %v715 = vadd.f32 %v575, %v698
        %v716 = vadd.f32 %v576, %v699
        %v717 = vadd.f32 %v577, %v700
        %v718 = vadd.f32 %v578, %v701
        %v719 = vadd.f32 %v579, %v702
        %v720 = vadd.f32 %v580, %v703
        %v721 = vperm.slane %v227, 1
        %v722 = vmul.f32 %v604, %v721
        %v723 = vmul.f32 %v609, %v721
        %v724 = vmul.f32 %v614, %v721
        %v725 = vmul.f32 %v619, %v721
        %v726 = vmul.f32 %v624, %v721
        %v727 = vmul.f32 %v629, %v721
        %v728 = vmul.f32 %v634, %v721
        %v729 = vmul.f32 %v639, %v721
        %v730 = vmul.f32 %v644, %v721
        %v731 = vmul.f32 %v649, %v721
        %v732 = vmul.f32 %v654, %v721
        %v733 = vmul.f32 %v659, %v721
        %v734 = vmul.f32 %v664, %v721
        %v735 = vmul.f32 %v669, %v721
        %v736 = vmul.f32 %v674, %v721
        %v737 = vmul.f32 %v679, %v721
        %v738 = vmul.f32 %v684, %v721
        %v756 = vrot.slane %v722, 1
        %v757 = vrot.slane %v723, 1
        %v758 = vsel %vm410, %v756, %v757
        %v759 = vrot.slane %v724, 1
        %v760 = vsel %vm410, %v757, %v759
        %v761 = vrot.slane %v725, 1
        %v762 = vsel %vm410, %v759, %v761
        %v763 = vrot.slane %v726, 1
        %v764 = vsel %vm410, %v761, %v763
        %v765 = vrot.slane %v727, 1
        %v766 = vsel %vm410, %v763, %v765
        %v767 = vrot.slane %v728, 1
        %v768 = vsel %vm410, %v765, %v767
        %v769 = vrot.slane %v729, 1
        %v770 = vsel %vm410, %v767, %v769
        %v771 = vrot.slane %v730, 1
        %v772 = vsel %vm410, %v769, %v771
        %v773 = vrot.slane %v731, 1
        %v774 = vsel %vm410, %v771, %v773
        %v775 = vrot.slane %v732, 1
        %v776 = vsel %vm410, %v773, %v775
        %v777 = vrot.slane %v733, 1
        %v778 = vsel %vm410, %v775, %v777
        %v779 = vrot.slane %v734, 1
        %v780 = vsel %vm410, %v777, %v779
        %v781 = vrot.slane %v735, 1
        %v782 = vsel %vm410, %v779, %v781
        %v783 = vrot.slane %v736, 1
        %v784 = vsel %vm410, %v781, %v783
        %v785 = vrot.slane %v737, 1
        %v786 = vsel %vm410, %v783, %v785
        %v787 = vrot.slane %v738, 1
        %v788 = vsel %vm410, %v785, %v787
        %v806 = vadd.f32 %v704, %v758
        %v807 = vadd.f32 %v705, %v760
        %v808 = vadd.f32 %v706, %v762
        %v809 = vadd.f32 %v707, %v764
        %v810 = vadd.f32 %v708, %v766
        %v811 = vadd.f32 %v709, %v768
        %v812 = vadd.f32 %v710, %v770
        %v813 = vadd.f32 %v711, %v772
        %v814 = vadd.f32 %v712, %v774
        %v815 = vadd.f32 %v713, %v776
        %v816 = vadd.f32 %v714, %v778
        %v817 = vadd.f32 %v715, %v780
        %v818 = vadd.f32 %v716, %v782
        %v819 = vadd.f32 %v717, %v784
        %v820 = vadd.f32 %v718, %v786
        %v821 = vadd.f32 %v719, %v788
        %v822 = vadd.f32 %v720, %v787
        %v823 = vperm.slane %v227, 2
        %v824 = vmul.f32 %v604, %v823
        %v825 = vmul.f32 %v609, %v823
        %v826 = vmul.f32 %v614, %v823
        %v827 = vmul.f32 %v619, %v823
        %v828 = vmul.f32 %v624, %v823
        %v829 = vmul.f32 %v629, %v823
        %v830 = vmul.f32 %v634, %v823
        %v831 = vmul.f32 %v639, %v823
        %v832 = vmul.f32 %v644, %v823
        %v833 = vmul.f32 %v649, %v823
        %v834 = vmul.f32 %v654, %v823
        %v835 = vmul.f32 %v659, %v823
        %v836 = vmul.f32 %v664, %v823
        %v837 = vmul.f32 %v669, %v823
        %v838 = vmul.f32 %v674, %v823
        %v839 = vmul.f32 %v679, %v823
        %v840 = vmul.f32 %v684, %v823
        %v858 = vrot.slane %v824, 2
        %v859 = vrot.slane %v825, 2
        %v860 = vsel %vm513, %v858, %v859
        %v861 = vrot.slane %v826, 2
        %v862 = vsel %vm513, %v859, %v861
        %v863 = vrot.slane %v827, 2
        %v864 = vsel %vm513, %v861, %v863
        %v865 = vrot.slane %v828, 2
        %v866 = vsel %vm513, %v863, %v865
        %v867 = vrot.slane %v829, 2
        %v868 = vsel %vm513, %v865, %v867
        %v869 = vrot.slane %v830, 2
        %v870 = vsel %vm513, %v867, %v869
        %v871 = vrot.slane %v831, 2
        %v872 = vsel %vm513, %v869, %v871
        %v873 = vrot.slane %v832, 2
        %v874 = vsel %vm513, %v871, %v873
        %v875 = vrot.slane %v833, 2
        %v876 = vsel %vm513, %v873, %v875
        %v877 = vrot.slane %v834, 2
        %v878 = vsel %vm513, %v875, %v877
        %v879 = vrot.slane %v835, 2
        %v880 = vsel %vm513, %v877, %v879
        %v881 = vrot.slane %v836, 2
        %v882 = vsel %vm513, %v879, %v881
        %v883 = vrot.slane %v837, 2
        %v884 = vsel %vm513, %v881, %v883
        %v885 = vrot.slane %v838, 2
        %v886 = vsel %vm513, %v883, %v885
        %v887 = vrot.slane %v839, 2
        %v888 = vsel %vm513, %v885, %v887
        %v889 = vrot.slane %v840, 2
        %v890 = vsel %vm513, %v887, %v889
        %v908 = vadd.f32 %v806, %v860
        %v909 = vadd.f32 %v807, %v862
        %v910 = vadd.f32 %v808, %v864
        %v911 = vadd.f32 %v809, %v866
        %v912 = vadd.f32 %v810, %v868
        %v913 = vadd.f32 %v811, %v870
        %v914 = vadd.f32 %v812, %v872
        %v915 = vadd.f32 %v813, %v874
        %v916 = vadd.f32 %v814, %v876
        %v917 = vadd.f32 %v815, %v878
        %v918 = vadd.f32 %v816, %v880
        %v919 = vadd.f32 %v817, %v882
        %v920 = vadd.f32 %v818, %v884
        %v921 = vadd.f32 %v819, %v886
        %v922 = vadd.f32 %v820, %v888
        %v923 = vadd.f32 %v821, %v890
        %v924 = vadd.f32 %v822, %v889
        %s925 = sadd.s32 %s235, 2
        %s926 = smul.u32 %s925, 136
        %s927 = scalar_lea.vmem %s211, %s926
        %v928 = vld [vmem:[%s927] sm:$0xff]
        %v929 = vld [vmem:[%s927 + $0x8] sm:$0xff]
        %v930 = vld [vmem:[%s927 + $0x10] sm:$0xff]
        %v931 = vld [vmem:[%s927 + $0x18] sm:$0xff]
        %v932 = vld [vmem:[%s927 + $0x20] sm:$0xff]
        %v933 = vld [vmem:[%s927 + $0x28] sm:$0xff]
        %v934 = vld [vmem:[%s927 + $0x30] sm:$0xff]
        %v935 = vld [vmem:[%s927 + $0x38] sm:$0xff]
        %v936 = vld [vmem:[%s927 + $0x40] sm:$0xff]
        %v937 = vld [vmem:[%s927 + $0x48] sm:$0xff]
        %v938 = vld [vmem:[%s927 + $0x50] sm:$0xff]
        %v939 = vld [vmem:[%s927 + $0x58] sm:$0xff]
        %v940 = vld [vmem:[%s927 + $0x60] sm:$0xff]
        %v941 = vld [vmem:[%s927 + $0x68] sm:$0xff]
        %v942 = vld [vmem:[%s927 + $0x70] sm:$0xff]
        %v943 = vld [vmem:[%s927 + $0x78] sm:$0xff]
        %v944 = vld [vmem:[%s927 + $0x80] sm:$0xff]
        %946 = vset.pattern.permute.xlu0 0
        %947 = vperm.xlu0 %946, %v928
        %v948 = vpop.permute.xlu0 %947
        %951 = vset.pattern.permute.xlu0 0
        %952 = vperm.xlu0 %951, %v929
        %v953 = vpop.permute.xlu0 %952
        %956 = vset.pattern.permute.xlu0 0
        %957 = vperm.xlu0 %956, %v930
        %v958 = vpop.permute.xlu0 %957
        %961 = vset.pattern.permute.xlu0 0
        %962 = vperm.xlu0 %961, %v931
        %v963 = vpop.permute.xlu0 %962
        %966 = vset.pattern.permute.xlu0 0
        %967 = vperm.xlu0 %966, %v932
        %v968 = vpop.permute.xlu0 %967
        %971 = vset.pattern.permute.xlu0 0
        %972 = vperm.xlu0 %971, %v933
        %v973 = vpop.permute.xlu0 %972
        %976 = vset.pattern.permute.xlu0 0
        %977 = vperm.xlu0 %976, %v934
        %v978 = vpop.permute.xlu0 %977
        %981 = vset.pattern.permute.xlu0 0
        %982 = vperm.xlu0 %981, %v935
        %v983 = vpop.permute.xlu0 %982
        %986 = vset.pattern.permute.xlu0 0
        %987 = vperm.xlu0 %986, %v936
        %v988 = vpop.permute.xlu0 %987
        %991 = vset.pattern.permute.xlu0 0
        %992 = vperm.xlu0 %991, %v937
        %v993 = vpop.permute.xlu0 %992
        %996 = vset.pattern.permute.xlu0 0
        %997 = vperm.xlu0 %996, %v938
        %v998 = vpop.permute.xlu0 %997
        %1001 = vset.pattern.permute.xlu0 0
        %1002 = vperm.xlu0 %1001, %v939
        %v1003 = vpop.permute.xlu0 %1002
        %1006 = vset.pattern.permute.xlu0 0
        %1007 = vperm.xlu0 %1006, %v940
        %v1008 = vpop.permute.xlu0 %1007
        %1011 = vset.pattern.permute.xlu0 0
        %1012 = vperm.xlu0 %1011, %v941
        %v1013 = vpop.permute.xlu0 %1012
        %1016 = vset.pattern.permute.xlu0 0
        %1017 = vperm.xlu0 %1016, %v942
        %v1018 = vpop.permute.xlu0 %1017
        %1021 = vset.pattern.permute.xlu0 0
        %1022 = vperm.xlu0 %1021, %v943
        %v1023 = vpop.permute.xlu0 %1022
        %1026 = vset.pattern.permute.xlu0 0
        %1027 = vperm.xlu0 %1026, %v944
        %v1028 = vpop.permute.xlu0 %1027
        %v1030 = vperm.slane %v228, 0
        %v1031 = vmul.f32 %v948, %v1030
        %v1032 = vmul.f32 %v953, %v1030
        %v1033 = vmul.f32 %v958, %v1030
        %v1034 = vmul.f32 %v963, %v1030
        %v1035 = vmul.f32 %v968, %v1030
        %v1036 = vmul.f32 %v973, %v1030
        %v1037 = vmul.f32 %v978, %v1030
        %v1038 = vmul.f32 %v983, %v1030
        %v1039 = vmul.f32 %v988, %v1030
        %v1040 = vmul.f32 %v993, %v1030
        %v1041 = vmul.f32 %v998, %v1030
        %v1042 = vmul.f32 %v1003, %v1030
        %v1043 = vmul.f32 %v1008, %v1030
        %v1044 = vmul.f32 %v1013, %v1030
        %v1045 = vmul.f32 %v1018, %v1030
        %v1046 = vmul.f32 %v1023, %v1030
        %v1047 = vmul.f32 %v1028, %v1030
        %v1048 = vadd.f32 %v908, %v1031
        %v1049 = vadd.f32 %v909, %v1032
        %v1050 = vadd.f32 %v910, %v1033
        %v1051 = vadd.f32 %v911, %v1034
        %v1052 = vadd.f32 %v912, %v1035
        %v1053 = vadd.f32 %v913, %v1036
        %v1054 = vadd.f32 %v914, %v1037
        %v1055 = vadd.f32 %v915, %v1038
        %v1056 = vadd.f32 %v916, %v1039
        %v1057 = vadd.f32 %v917, %v1040
        %v1058 = vadd.f32 %v918, %v1041
        %v1059 = vadd.f32 %v919, %v1042
        %v1060 = vadd.f32 %v920, %v1043
        %v1061 = vadd.f32 %v921, %v1044
        %v1062 = vadd.f32 %v922, %v1045
        %v1063 = vadd.f32 %v923, %v1046
        %v1064 = vadd.f32 %v924, %v1047
        %v1065 = vperm.slane %v228, 1
        %v1066 = vmul.f32 %v948, %v1065
        %v1067 = vmul.f32 %v953, %v1065
        %v1068 = vmul.f32 %v958, %v1065
        %v1069 = vmul.f32 %v963, %v1065
        %v1070 = vmul.f32 %v968, %v1065
        %v1071 = vmul.f32 %v973, %v1065
        %v1072 = vmul.f32 %v978, %v1065
        %v1073 = vmul.f32 %v983, %v1065
        %v1074 = vmul.f32 %v988, %v1065
        %v1075 = vmul.f32 %v993, %v1065
        %v1076 = vmul.f32 %v998, %v1065
        %v1077 = vmul.f32 %v1003, %v1065
        %v1078 = vmul.f32 %v1008, %v1065
        %v1079 = vmul.f32 %v1013, %v1065
        %v1080 = vmul.f32 %v1018, %v1065
        %v1081 = vmul.f32 %v1023, %v1065
        %v1082 = vmul.f32 %v1028, %v1065
        %v1100 = vrot.slane %v1066, 1
        %v1101 = vrot.slane %v1067, 1
        %v1102 = vsel %vm410, %v1100, %v1101
        %v1103 = vrot.slane %v1068, 1
        %v1104 = vsel %vm410, %v1101, %v1103
        %v1105 = vrot.slane %v1069, 1
        %v1106 = vsel %vm410, %v1103, %v1105
        %v1107 = vrot.slane %v1070, 1
        %v1108 = vsel %vm410, %v1105, %v1107
        %v1109 = vrot.slane %v1071, 1
        %v1110 = vsel %vm410, %v1107, %v1109
        %v1111 = vrot.slane %v1072, 1
        %v1112 = vsel %vm410, %v1109, %v1111
        %v1113 = vrot.slane %v1073, 1
        %v1114 = vsel %vm410, %v1111, %v1113
        %v1115 = vrot.slane %v1074, 1
        %v1116 = vsel %vm410, %v1113, %v1115
        %v1117 = vrot.slane %v1075, 1
        %v1118 = vsel %vm410, %v1115, %v1117
        %v1119 = vrot.slane %v1076, 1
        %v1120 = vsel %vm410, %v1117, %v1119
        %v1121 = vrot.slane %v1077, 1
        %v1122 = vsel %vm410, %v1119, %v1121
        %v1123 = vrot.slane %v1078, 1
        %v1124 = vsel %vm410, %v1121, %v1123
        %v1125 = vrot.slane %v1079, 1
        %v1126 = vsel %vm410, %v1123, %v1125
        %v1127 = vrot.slane %v1080, 1
        %v1128 = vsel %vm410, %v1125, %v1127
        %v1129 = vrot.slane %v1081, 1
        %v1130 = vsel %vm410, %v1127, %v1129
        %v1131 = vrot.slane %v1082, 1
        %v1132 = vsel %vm410, %v1129, %v1131
        %v1150 = vadd.f32 %v1048, %v1102
        %v1151 = vadd.f32 %v1049, %v1104
        %v1152 = vadd.f32 %v1050, %v1106
        %v1153 = vadd.f32 %v1051, %v1108
        %v1154 = vadd.f32 %v1052, %v1110
        %v1155 = vadd.f32 %v1053, %v1112
        %v1156 = vadd.f32 %v1054, %v1114
        %v1157 = vadd.f32 %v1055, %v1116
        %v1158 = vadd.f32 %v1056, %v1118
        %v1159 = vadd.f32 %v1057, %v1120
        %v1160 = vadd.f32 %v1058, %v1122
        %v1161 = vadd.f32 %v1059, %v1124
        %v1162 = vadd.f32 %v1060, %v1126
        %v1163 = vadd.f32 %v1061, %v1128
        %v1164 = vadd.f32 %v1062, %v1130
        %v1165 = vadd.f32 %v1063, %v1132
        %v1166 = vadd.f32 %v1064, %v1131
        %v1167 = vperm.slane %v228, 2
        %v1168 = vmul.f32 %v948, %v1167
        %v1169 = vmul.f32 %v953, %v1167
        %v1170 = vmul.f32 %v958, %v1167
        %v1171 = vmul.f32 %v963, %v1167
        %v1172 = vmul.f32 %v968, %v1167
        %v1173 = vmul.f32 %v973, %v1167
        %v1174 = vmul.f32 %v978, %v1167
        %v1175 = vmul.f32 %v983, %v1167
        %v1176 = vmul.f32 %v988, %v1167
        %v1177 = vmul.f32 %v993, %v1167
        %v1178 = vmul.f32 %v998, %v1167
        %v1179 = vmul.f32 %v1003, %v1167
        %v1180 = vmul.f32 %v1008, %v1167
        %v1181 = vmul.f32 %v1013, %v1167
        %v1182 = vmul.f32 %v1018, %v1167
        %v1183 = vmul.f32 %v1023, %v1167
        %v1184 = vmul.f32 %v1028, %v1167
        %v1202 = vrot.slane %v1168, 2
        %v1203 = vrot.slane %v1169, 2
        %v1204 = vsel %vm513, %v1202, %v1203
        %v1205 = vrot.slane %v1170, 2
        %v1206 = vsel %vm513, %v1203, %v1205
        %v1207 = vrot.slane %v1171, 2
        %v1208 = vsel %vm513, %v1205, %v1207
        %v1209 = vrot.slane %v1172, 2
        %v1210 = vsel %vm513, %v1207, %v1209
        %v1211 = vrot.slane %v1173, 2
        %v1212 = vsel %vm513, %v1209, %v1211
        %v1213 = vrot.slane %v1174, 2
        %v1214 = vsel %vm513, %v1211, %v1213
        %v1215 = vrot.slane %v1175, 2
        %v1216 = vsel %vm513, %v1213, %v1215
        %v1217 = vrot.slane %v1176, 2
        %v1218 = vsel %vm513, %v1215, %v1217
        %v1219 = vrot.slane %v1177, 2
        %v1220 = vsel %vm513, %v1217, %v1219
        %v1221 = vrot.slane %v1178, 2
        %v1222 = vsel %vm513, %v1219, %v1221
        %v1223 = vrot.slane %v1179, 2
        %v1224 = vsel %vm513, %v1221, %v1223
        %v1225 = vrot.slane %v1180, 2
        %v1226 = vsel %vm513, %v1223, %v1225
        %v1227 = vrot.slane %v1181, 2
        %v1228 = vsel %vm513, %v1225, %v1227
        %v1229 = vrot.slane %v1182, 2
        %v1230 = vsel %vm513, %v1227, %v1229
        %v1231 = vrot.slane %v1183, 2
        %v1232 = vsel %vm513, %v1229, %v1231
        %v1233 = vrot.slane %v1184, 2
        %v1234 = vsel %vm513, %v1231, %v1233
        %v1252 = vadd.f32 %v1150, %v1204
        %v1253 = vadd.f32 %v1151, %v1206
        %v1254 = vadd.f32 %v1152, %v1208
        %v1255 = vadd.f32 %v1153, %v1210
        %v1256 = vadd.f32 %v1154, %v1212
        %v1257 = vadd.f32 %v1155, %v1214
        %v1258 = vadd.f32 %v1156, %v1216
        %v1259 = vadd.f32 %v1157, %v1218
        %v1260 = vadd.f32 %v1158, %v1220
        %v1261 = vadd.f32 %v1159, %v1222
        %v1262 = vadd.f32 %v1160, %v1224
        %v1263 = vadd.f32 %v1161, %v1226
        %v1264 = vadd.f32 %v1162, %v1228
        %v1265 = vadd.f32 %v1163, %v1230
        %v1266 = vadd.f32 %v1164, %v1232
        %v1267 = vadd.f32 %v1165, %v1234
        %v1268 = vadd.f32 %v1166, %v1233
        %v1270 = vperm.slane %v224, 0
        %v1272 = vmul.f32 %v1252, %v1270
        %v1273 = vmul.f32 %v1253, %v1270
        %v1274 = vmul.f32 %v1254, %v1270
        %v1275 = vmul.f32 %v1255, %v1270
        %v1276 = vmul.f32 %v1256, %v1270
        %v1277 = vmul.f32 %v1257, %v1270
        %v1278 = vmul.f32 %v1258, %v1270
        %v1279 = vmul.f32 %v1259, %v1270
        %v1280 = vmul.f32 %v1260, %v1270
        %v1281 = vmul.f32 %v1261, %v1270
        %v1282 = vmul.f32 %v1262, %v1270
        %v1283 = vmul.f32 %v1263, %v1270
        %v1284 = vmul.f32 %v1264, %v1270
        %v1285 = vmul.f32 %v1265, %v1270
        %v1286 = vmul.f32 %v1266, %v1270
        %v1287 = vmul.f32 %v1267, %v1270
        %v1288 = vmul.f32 %v1268, %v1270
        %v1290 = vperm.slane %v225, 0
        %v1292 = vadd.f32 %v1272, %v1290
        %v1293 = vadd.f32 %v1273, %v1290
        %v1294 = vadd.f32 %v1274, %v1290
        %v1295 = vadd.f32 %v1275, %v1290
        %v1296 = vadd.f32 %v1276, %v1290
        %v1297 = vadd.f32 %v1277, %v1290
        %v1298 = vadd.f32 %v1278, %v1290
        %v1299 = vadd.f32 %v1279, %v1290
        %v1300 = vadd.f32 %v1280, %v1290
        %v1301 = vadd.f32 %v1281, %v1290
        %v1302 = vadd.f32 %v1282, %v1290
        %v1303 = vadd.f32 %v1283, %v1290
        %v1304 = vadd.f32 %v1284, %v1290
        %v1305 = vadd.f32 %v1285, %v1290
        %v1306 = vadd.f32 %v1286, %v1290
        %v1307 = vadd.f32 %v1287, %v1290
        %v1308 = vadd.f32 %v1288, %v1290
        %v1309 = vmax.f32 %v1292, 0.0
        %v1310 = vmax.f32 %v1293, 0.0
        %v1311 = vmax.f32 %v1294, 0.0
        %v1312 = vmax.f32 %v1295, 0.0
        %v1313 = vmax.f32 %v1296, 0.0
        %v1314 = vmax.f32 %v1297, 0.0
        %v1315 = vmax.f32 %v1298, 0.0
        %v1316 = vmax.f32 %v1299, 0.0
        %v1317 = vmax.f32 %v1300, 0.0
        %v1318 = vmax.f32 %v1301, 0.0
        %v1319 = vmax.f32 %v1302, 0.0
        %v1320 = vmax.f32 %v1303, 0.0
        %v1321 = vmax.f32 %v1304, 0.0
        %v1322 = vmax.f32 %v1305, 0.0
        %v1323 = vmax.f32 %v1306, 0.0
        %v1324 = vmax.f32 %v1307, 0.0
        %v1325 = vmax.f32 %v1308, 0.0
        %s1326 = smul.u32 %s230, 136
        %s1327 = scalar_lea.vmem %s221, %s1326
        %vm1328 = vcmask 523264
        %1329 = vst.msk [vmem:[%s1327] sm:$0xff] %vm1328, %v1309
        %1330 = vst.msk [vmem:[%s1327 + $0x8] sm:$0xff] %vm1328, %v1310
        %1331 = vst.msk [vmem:[%s1327 + $0x10] sm:$0xff] %vm1328, %v1311
        %1332 = vst.msk [vmem:[%s1327 + $0x18] sm:$0xff] %vm1328, %v1312
        %1333 = vst.msk [vmem:[%s1327 + $0x20] sm:$0xff] %vm1328, %v1313
        %1334 = vst.msk [vmem:[%s1327 + $0x28] sm:$0xff] %vm1328, %v1314
        %1335 = vst.msk [vmem:[%s1327 + $0x30] sm:$0xff] %vm1328, %v1315
        %1336 = vst.msk [vmem:[%s1327 + $0x38] sm:$0xff] %vm1328, %v1316
        %1337 = vst.msk [vmem:[%s1327 + $0x40] sm:$0xff] %vm1328, %v1317
        %1338 = vst.msk [vmem:[%s1327 + $0x48] sm:$0xff] %vm1328, %v1318
        %1339 = vst.msk [vmem:[%s1327 + $0x50] sm:$0xff] %vm1328, %v1319
        %1340 = vst.msk [vmem:[%s1327 + $0x58] sm:$0xff] %vm1328, %v1320
        %1341 = vst.msk [vmem:[%s1327 + $0x60] sm:$0xff] %vm1328, %v1321
        %1342 = vst.msk [vmem:[%s1327 + $0x68] sm:$0xff] %vm1328, %v1322
        %1343 = vst.msk [vmem:[%s1327 + $0x70] sm:$0xff] %vm1328, %v1323
        %1344 = vst.msk [vmem:[%s1327 + $0x78] sm:$0xff] %vm1328, %v1324
        %vm1345 = vcmask 521216
        %1346 = vst.msk [vmem:[%s1327 + $0x80] sm:$0x3f] %vm1345, %v1325
      $region41: #{_device_forward.5} parent=35 // loop_footer
        %s234 = sadd.s32 1, %s230
      $region42: #{_device_forward.5} parent=35 // loop_footer_branch
        %229 = sbr.rel target = $region38
      $region43: #{_device_forward.5} parent=35 // loop_exit
        _
      %s1347 = smul.u32 67, %s20
      %p1348 = scmp.lt.s32.totalorder %s19, 1
      %s1349 = scalar_select %p1348, %s19, 1
      %p1350 = scmp.lt.s32.totalorder %s1347, 133
      %s1351 = scalar_select %p1350, %s1347, 133
      %s1352 = smul.addr %s1351, 17
      %s1353 = smul.addr %s1349, 2278
      %s1354 = sadd.s32 %s1352, %s1353
      %s1355 = smul.addr %s1354, 8
      %s1356 = scalar_lea.vmem %s4, %s1355
      // Predicated region
      $region44: #{_device_forward.5} parent=35 // pred_check
        %p1357 = pneg %p136
      $region45: #{_device_forward.5} parent=35 // pred_check_branch
        %1359 = sbr.rel (%p1357) target = $region47
      $region46: #{_device_forward.5} parent=35 // pred_region
        %s1360 = smul.u32 67, %s20
      $region47: #{_device_forward.5} parent=35 // pred_fallthru
        _
    $region36: #{_device_forward.5} parent=5 // pred_fallthru
      _
    %p1361 = scmp.le.s32.totalorder 2, %s10
    // Predicated region
    $region48: #{_device_forward.5} parent=5 // pred_check
      %p1362 = pneg %p1361
    $region49: #{_device_forward.5} parent=5 // pred_check_branch
      %1364 = sbr.rel (%p1362) target = $region51
    $region50: #{_device_forward.5} parent=5 // pred_region
      %s1365 = ssub.s32 %s10, 2
      // Predicated region
      $region52: #{_device_forward.5} parent=50 // pred_check
        %p1366 = pneg %p142
      $region53: #{_device_forward.5} parent=50 // pred_check_branch
        %1368 = sbr.rel (%p1366) target = $region55
      $region54: #{_device_forward.5} parent=50 // pred_region
        %s1369 = smul.u32 67, %s22
        %p1370 = scmp.lt.s32.totalorder %s21, 1
        %s1371 = scalar_select %p1370, %s21, 1
        %p1372 = scmp.lt.s32.totalorder %s1369, 133
        %s1373 = scalar_select %p1372, %s1369, 133
        %s1374 = smul.addr %s1373, 17
        %s1375 = smul.addr %s1371, 2278
        %s1376 = sadd.s32 %s1374, %s1375
        %s1377 = smul.addr %s1376, 8
        %s1378 = scalar_lea.vmem %s4, %s1377
      $region55: #{_device_forward.5} parent=50 // pred_fallthru
        _
    $region51: #{_device_forward.5} parent=5 // pred_fallthru
      _
  $region6: #{_device_forward.5} parent=0 // loop_footer
    %s14 = sadd.s32 1, %s10
  $region7: #{_device_forward.5} parent=0 // loop_footer_branch
    %9 = sbr.rel target = $region3
  $region8: #{_device_forward.5} parent=0 // loop_exit
    _

// kernel: _device_forward.6
$region0: #{_device_forward.6}
  #allocation0 [shape = 'u32[]', space=smem, size = 0x4, offset = 0x4, fixed_abs, tag = 'smem constant byte address 0x4 - core index']
  #allocation1 [shape = 'u32[72,128]{1,0:T(1,128)}', space=vmem, size = 0x9000, scoped, tag = 'internal scratch']
  %s0 = inlined_call_operand.vmem [shape: f32[2,134,134,64], index: 0, kind: input, shape index: {}]
  %s1 = inlined_call_operand.vmem [shape: f32[3,192,32], index: 1, kind: input, shape index: {}]
  %s2 = inlined_call_operand.vmem [shape: f32[1,32], index: 2, kind: input, shape index: {}]
  %s3 = inlined_call_operand.vmem [shape: f32[1,32], index: 3, kind: input, shape index: {}]
  %s4 = inlined_call_operand.vmem [shape: f32[2,132,132,32], index: 4, kind: output, shape index: {}]
  %s5 = sld [smem:[#allocation0]]
  $region56: #{_device_forward.6} parent=0
    _
  %s7 = ssub.s32 1, %s5
  %s8 = scalar_select 0, %s7, %s5
  loop: start=0, step=1, limit=6
  $region2: #{_device_forward.6} parent=0 // loop_pre_header
    _
  $region3: #{_device_forward.6} parent=0 // loop_header
    %s10 = sphi 0, %s14
    %p11 = scmp.ge.s32.totalorder %s10, 6
    %s17 = sphi 0, %s29
    %s18 = sphi 0, %s25
    %s19 = sphi 0, %s17
    %s20 = sphi 0, %s18
    %s21 = sphi 0, %s19
    %s22 = sphi 0, %s20
    %s32 = sphi 0, %s34
    %s35 = sphi 0, %s32
    %s36 = sphi 0, %s35
    %s52 = sphi 0, %s36
    %s56 = sphi 0, %s56
    %s58 = sphi 0, %s56
    %s59 = sphi 0, %s58
    %s73 = sphi 0, %s59
    %s77 = sphi 0, %s77
    %s79 = sphi 0, %s77
    %s80 = sphi 0, %s79
    %s94 = sphi 0, %s80
    %s98 = sphi 0, %s98
    %s100 = sphi 0, %s98
    %s101 = sphi 0, %s100
    %s115 = sphi 0, %s101
    %s123 = sphi 0, %s125
    %s126 = sphi 0, %s123
    %s127 = sphi 0, %s126
    %s143 = sphi 0, %s127
  $region4: #{_device_forward.6} parent=0 // loop_header_branch
    %13 = sbr.rel (%p11) target = $region8
  $region5: #{_device_forward.6} parent=0 // loop_body
    %s15 = ssub.s32 %s10, 1
    %s16 = ssub.s32 %s10, 2
    %s23 = sadd.s32 1, %s18
    %p24 = scmp.ge.s32.totalorder %s23, 2
    %s25 = scalar_select %p24, 0, %s23
    %s26 = sadd.s32 1, %s17
    %s27 = scalar_select %p24, %s26, %s17
    %p28 = scmp.ge.s32.totalorder %s27, 2
    %s29 = scalar_select %p28, 0, %s27
    %s30 = ssub.s32 %s17, %s29
    %p31 = scmp.eq.s32.totalorder %s30, 0
    %s33 = sadd.s32 %s32, 1
    %s34 = scalar_select %p31, %s32, %s33
    %p37 = pneg %p31
    %p38 = scmp.eq.s32.totalorder %s10, 3
    %p39 = por %p37, %p38
    %p40 = scmp.ne.s32.totalorder %s32, %s35
    %p41 = scmp.eq.s32.totalorder %s10, 0
    %p42 = por %p40, %p41
    %p43 = scmp.ne.s32.totalorder %s32, %s35
    %p44 = scmp.eq.s32.totalorder %s15, 3
    %p45 = por %p43, %p44
    %p46 = scmp.ne.s32.totalorder %s35, %s36
    %p47 = scmp.eq.s32.totalorder %s15, 0
    %p48 = por %p46, %p47
    %p49 = scmp.ne.s32.totalorder %s35, %s36
    %p50 = scmp.eq.s32.totalorder %s16, 3
    %p51 = por %p49, %p50
    %p53 = scmp.ne.s32.totalorder %s36, %s52
    %p54 = scmp.eq.s32.totalorder %s16, 0
    %p55 = por %p53, %p54
    %s57 = sadd.s32 %s56, 1
    %p60 = scmp.eq.s32.totalorder %s10, 3
    %p61 = scmp.ne.s32.totalorder %s56, %s58
    %p62 = scmp.eq.s32.totalorder %s10, 0
    %p63 = por %p61, %p62
    %p64 = scmp.ne.s32.totalorder %s56, %s58
    %p65 = scmp.eq.s32.totalorder %s15, 3
    %p66 = por %p64, %p65
    %p67 = scmp.ne.s32.totalorder %s58, %s59
    %p68 = scmp.eq.s32.totalorder %s15, 0
    %p69 = por %p67, %p68
    %p70 = scmp.ne.s32.totalorder %s58, %s59
    %p71 = scmp.eq.s32.totalorder %s16, 3
    %p72 = por %p70, %p71
    %p74 = scmp.ne.s32.totalorder %s59, %s73
    %p75 = scmp.eq.s32.totalorder %s16, 0
    %p76 = por %p74, %p75
    %s78 = sadd.s32 %s77, 1
    %p81 = scmp.eq.s32.totalorder %s10, 3
    %p82 = scmp.ne.s32.totalorder %s77, %s79
    %p83 = scmp.eq.s32.totalorder %s10, 0
    %p84 = por %p82, %p83
    %p85 = scmp.ne.s32.totalorder %s77, %s79
    %p86 = scmp.eq.s32.totalorder %s15, 3
    %p87 = por %p85, %p86
    %p88 = scmp.ne.s32.totalorder %s79, %s80
    %p89 = scmp.eq.s32.totalorder %s15, 0
    %p90 = por %p88, %p89
    %p91 = scmp.ne.s32.totalorder %s79, %s80
    %p92 = scmp.eq.s32.totalorder %s16, 3
    %p93 = por %p91, %p92
    %p95 = scmp.ne.s32.totalorder %s80, %s94
    %p96 = scmp.eq.s32.totalorder %s16, 0
    %p97 = por %p95, %p96
    %s99 = sadd.s32 %s98, 1
    %p102 = scmp.eq.s32.totalorder %s10, 3
    %p103 = scmp.ne.s32.totalorder %s98, %s100
    %p104 = scmp.eq.s32.totalorder %s10, 0
    %p105 = por %p103, %p104
    %p106 = scmp.ne.s32.totalorder %s98, %s100
    %p107 = scmp.eq.s32.totalorder %s15, 3
    %p108 = por %p106, %p107
    %p109 = scmp.ne.s32.totalorder %s100, %s101
    %p110 = scmp.eq.s32.totalorder %s15, 0
    %p111 = por %p109, %p110
    %p112 = scmp.ne.s32.totalorder %s100, %s101
    %p113 = scmp.eq.s32.totalorder %s16, 3
    %p114 = por %p112, %p113
    %p116 = scmp.ne.s32.totalorder %s101, %s115
    %p117 = scmp.eq.s32.totalorder %s16, 0
    %p118 = por %p116, %p117
    %s119 = ssub.s32 %s17, %s29
    %s120 = ssub.s32 %s18, %s25
    %s121 = sor.u32 %s119, %s120
    %p122 = scmp.eq.s32.totalorder %s121, 0
    %s124 = sadd.s32 %s123, 1
    %s125 = scalar_select %p122, %s123, %s124
    %p128 = pneg %p122
    %p129 = scmp.eq.s32.totalorder %s10, 3
    %p130 = por %p128, %p129
    %p131 = scmp.ne.s32.totalorder %s123, %s126
    %p132 = scmp.eq.s32.totalorder %s10, 0
    %p133 = por %p131, %p132
    %p134 = scmp.ne.s32.totalorder %s123, %s126
    %p135 = scmp.eq.s32.totalorder %s15, 3
    %p136 = por %p134, %p135
    %p137 = scmp.ne.s32.totalorder %s126, %s127
    %p138 = scmp.eq.s32.totalorder %s15, 0
    %p139 = por %p137, %p138
    %p140 = scmp.ne.s32.totalorder %s126, %s127
    %p141 = scmp.eq.s32.totalorder %s16, 3
    %p142 = por %p140, %p141
    %p144 = scmp.ne.s32.totalorder %s127, %s143
    %p145 = scmp.eq.s32.totalorder %s16, 0
    %p146 = por %p144, %p145
    %p147 = scmp.le.s32.totalorder 1, %s10
    %p148 = scmp.lt.s32.totalorder %s10, 5
    %p149 = pnand %p147, %p148
    %p150 = pneg %p149
    // Predicated region
    $region9: #{_device_forward.6} parent=5 // pred_check
      _
    $region10: #{_device_forward.6} parent=5 // pred_check_branch
      %152 = sbr.rel (%p149) target = $region12
    $region11: #{_device_forward.6} parent=5 // pred_region
      %s153 = ssub.s32 %s10, 1
      // Predicated region
      $region13: #{_device_forward.6} parent=11 // pred_check
        %p154 = pneg %p69
      $region14: #{_device_forward.6} parent=11 // pred_check_branch
        %156 = sbr.rel (%p154) target = $region16
      $region15: #{_device_forward.6} parent=11 // pred_region
        _
      $region16: #{_device_forward.6} parent=11 // pred_fallthru
        _
      // Predicated region
      $region17: #{_device_forward.6} parent=11 // pred_check
        %p157 = pneg %p90
      $region18: #{_device_forward.6} parent=11 // pred_check_branch
        %159 = sbr.rel (%p157) target = $region20
      $region19: #{_device_forward.6} parent=11 // pred_region
        _
      $region20: #{_device_forward.6} parent=11 // pred_fallthru
        _
      // Predicated region
      $region21: #{_device_forward.6} parent=11 // pred_check
        %p160 = pneg %p111
      $region22: #{_device_forward.6} parent=11 // pred_check_branch
        %162 = sbr.rel (%p160) target = $region24
      $region23: #{_device_forward.6} parent=11 // pred_region
        _
      $region24: #{_device_forward.6} parent=11 // pred_fallthru
        _
    $region12: #{_device_forward.6} parent=5 // pred_fallthru
      _
    %p163 = scmp.lt.s32.totalorder %s10, 4
    // Predicated region
    $region25: #{_device_forward.6} parent=5 // pred_check
      %p164 = pneg %p163
    $region26: #{_device_forward.6} parent=5 // pred_check_branch
      %166 = sbr.rel (%p164) target = $region28
    $region27: #{_device_forward.6} parent=5 // pred_region
      // Predicated region
      $region29: #{_device_forward.6} parent=27 // pred_check
        %p167 = pneg %p42
      $region30: #{_device_forward.6} parent=27 // pred_check_branch
        %169 = sbr.rel (%p167) target = $region32
      $region31: #{_device_forward.6} parent=27 // pred_region
        %p170 = scmp.lt.s32.totalorder %s17, 1
        %s171 = scalar_select %p170, %s17, 1
        %s172 = smul.addr %s171, 2278
        %s173 = smul.addr %s172, 8
        %s174 = scalar_lea.vmem %s0, %s173
      $region32: #{_device_forward.6} parent=27 // pred_fallthru
        _
    $region28: #{_device_forward.6} parent=5 // pred_fallthru
      _
    %p175 = scmp.le.s32.totalorder 1, %s10
    %p176 = scmp.lt.s32.totalorder %s10, 5
    %p177 = pnand %p175, %p176
    %p178 = pneg %p177
    // Predicated region
    $region33: #{_device_forward.6} parent=5 // pred_check
      _
    $region34: #{_device_forward.6} parent=5 // pred_check_branch
      %180 = sbr.rel (%p177) target = $region36
    $region35: #{_device_forward.6} parent=5 // pred_region
      %s181 = ssub.s32 %s10, 1
      %p182 = scmp.lt.s32.totalorder %s19, 1
      %s183 = scalar_select %p182, %s19, 1
      %s184 = smul.addr %s183, 2278
      %s185 = smul.addr %s184, 8
      %s186 = scalar_lea.vmem %s0, %s185
      %p187 = pneg %p48
      %p188 = pneg %p45
      %p189 = pneg %p69
      %p190 = pneg %p66
      %p191 = pneg %p90
      %p192 = pneg %p87
      %p193 = pneg %p111
      %p194 = pneg %p108
      %p195 = pneg %p139
      %p196 = pneg %p136
      %s197 = smul.u32 66, %s20
      %p198 = scmp.lt.s32.totalorder %s19, 1
      %s199 = scalar_select %p198, %s19, 1
      %p200 = scmp.lt.s32.totalorder %s197, 131
      %s201 = scalar_select %p200, %s197, 131
      %s202 = smul.addr %s201, 17
      %s203 = smul.addr %s199, 2244
      %s204 = sadd.s32 %s202, %s203
      %s205 = smul.addr %s204, 8
      %s206 = scalar_lea.vmem %s4, %s205
      %p207 = scmp.lt.s32.totalorder %s19, 1
      %s208 = scalar_select %p207, %s19, 1
      %s209 = smul.addr %s208, 2278
      %s210 = smul.addr %s209, 8
      %s211 = scalar_lea.vmem %s0, %s210
      %s212 = smul.u32 66, %s20
      %p213 = scmp.lt.s32.totalorder %s19, 1
      %s214 = scalar_select %p213, %s19, 1
      %p215 = scmp.lt.s32.totalorder %s212, 131
      %s216 = scalar_select %p215, %s212, 131
      %s217 = smul.addr %s216, 17
      %s218 = smul.addr %s214, 2244
      %s219 = sadd.s32 %s217, %s218
      %s220 = smul.addr %s219, 8
      %s221 = scalar_lea.vmem %s4, %s220
      %s222 = smul.u32 66, %s20
      %s223 = smul.u32 %s20, 66
      %v224 = vld [vmem:[%s2] sm:$0x1]
      %v225 = vld [vmem:[%s3] sm:$0x1]
      %v226 = vld [vmem:[%s1] sm:$0xff]
      %v227 = vld [vmem:[%s1 + $0x8] sm:$0xff]
      %v228 = vld [vmem:[%s1 + $0x10] sm:$0xff]
      %v229 = vld [vmem:[%s1 + $0x18] sm:$0xff]
      %v230 = vld [vmem:[%s1 + $0x20] sm:$0xff]
      %v231 = vld [vmem:[%s1 + $0x28] sm:$0xff]
      %v232 = vld [vmem:[%s1 + $0x30] sm:$0xff]
      %v233 = vld [vmem:[%s1 + $0x38] sm:$0xff]
      %v234 = vld [vmem:[%s1 + $0x40] sm:$0xff]
      %v235 = vld [vmem:[%s1 + $0x48] sm:$0xff]
      %v236 = vld [vmem:[%s1 + $0x50] sm:$0xff]
      %v237 = vld [vmem:[%s1 + $0x58] sm:$0xff]
      %v238 = vld [vmem:[%s1 + $0x60] sm:$0xff]
      %v239 = vld [vmem:[%s1 + $0x68] sm:$0xff]
      %v240 = vld [vmem:[%s1 + $0x70] sm:$0xff]
      %v241 = vld [vmem:[%s1 + $0x78] sm:$0xff]
      %v242 = vld [vmem:[%s1 + $0x80] sm:$0xff]
      %v243 = vld [vmem:[%s1 + $0x88] sm:$0xff]
      %v244 = vld [vmem:[%s1 + $0x90] sm:$0xff]
      %v245 = vld [vmem:[%s1 + $0x98] sm:$0xff]
      %v246 = vld [vmem:[%s1 + $0xa0] sm:$0xff]
      %v247 = vld [vmem:[%s1 + $0xa8] sm:$0xff]
      %v248 = vld [vmem:[%s1 + $0xb0] sm:$0xff]
      %v249 = vld [vmem:[%s1 + $0xb8] sm:$0xff]
      %v250 = vld [vmem:[%s1 + $0xc0] sm:$0xff]
      %v251 = vld [vmem:[%s1 + $0xc8] sm:$0xff]
      %v252 = vld [vmem:[%s1 + $0xd0] sm:$0xff]
      %v253 = vld [vmem:[%s1 + $0xd8] sm:$0xff]
      %v254 = vld [vmem:[%s1 + $0xe0] sm:$0xff]
      %v255 = vld [vmem:[%s1 + $0xe8] sm:$0xff]
      %v256 = vld [vmem:[%s1 + $0xf0] sm:$0xff]
      %v257 = vld [vmem:[%s1 + $0xf8] sm:$0xff]
      %v258 = vld [vmem:[%s1 + $0x100] sm:$0xff]
      %v259 = vld [vmem:[%s1 + $0x108] sm:$0xff]
      %v260 = vld [vmem:[%s1 + $0x110] sm:$0xff]
      %v261 = vld [vmem:[%s1 + $0x118] sm:$0xff]
      %v262 = vld [vmem:[%s1 + $0x120] sm:$0xff]
      %v263 = vld [vmem:[%s1 + $0x128] sm:$0xff]
      %v264 = vld [vmem:[%s1 + $0x130] sm:$0xff]
      %v265 = vld [vmem:[%s1 + $0x138] sm:$0xff]
      %v266 = vld [vmem:[%s1 + $0x140] sm:$0xff]
      %v267 = vld [vmem:[%s1 + $0x148] sm:$0xff]
      %v268 = vld [vmem:[%s1 + $0x150] sm:$0xff]
      %v269 = vld [vmem:[%s1 + $0x158] sm:$0xff]
      %v270 = vld [vmem:[%s1 + $0x160] sm:$0xff]
      %v271 = vld [vmem:[%s1 + $0x168] sm:$0xff]
      %v272 = vld [vmem:[%s1 + $0x170] sm:$0xff]
      %v273 = vld [vmem:[%s1 + $0x178] sm:$0xff]
      %v274 = vld [vmem:[%s1 + $0x180] sm:$0xff]
      %v275 = vld [vmem:[%s1 + $0x188] sm:$0xff]
      %v276 = vld [vmem:[%s1 + $0x190] sm:$0xff]
      %v277 = vld [vmem:[%s1 + $0x198] sm:$0xff]
      %v278 = vld [vmem:[%s1 + $0x1a0] sm:$0xff]
      %v279 = vld [vmem:[%s1 + $0x1a8] sm:$0xff]
      %v280 = vld [vmem:[%s1 + $0x1b0] sm:$0xff]
      %v281 = vld [vmem:[%s1 + $0x1b8] sm:$0xff]
      %v282 = vld [vmem:[%s1 + $0x1c0] sm:$0xff]
      %v283 = vld [vmem:[%s1 + $0x1c8] sm:$0xff]
      %v284 = vld [vmem:[%s1 + $0x1d0] sm:$0xff]
      %v285 = vld [vmem:[%s1 + $0x1d8] sm:$0xff]
      %v286 = vld [vmem:[%s1 + $0x1e0] sm:$0xff]
      %v287 = vld [vmem:[%s1 + $0x1e8] sm:$0xff]
      %v288 = vld [vmem:[%s1 + $0x1f0] sm:$0xff]
      %v289 = vld [vmem:[%s1 + $0x1f8] sm:$0xff]
      %v290 = vld [vmem:[%s1 + $0x200] sm:$0xff]
      %v291 = vld [vmem:[%s1 + $0x208] sm:$0xff]
      %v292 = vld [vmem:[%s1 + $0x210] sm:$0xff]
      %v293 = vld [vmem:[%s1 + $0x218] sm:$0xff]
      %v294 = vld [vmem:[%s1 + $0x220] sm:$0xff]
      %v295 = vld [vmem:[%s1 + $0x228] sm:$0xff]
      %v296 = vld [vmem:[%s1 + $0x230] sm:$0xff]
      %v297 = vld [vmem:[%s1 + $0x238] sm:$0xff]
      loop: start=0, step=1, limit=66
      $region37: #{_device_forward.6} parent=35 // loop_pre_header
        _
      $region38: #{_device_forward.6} parent=35 // loop_header
        %s299 = sphi 0, %s303
        %p300 = scmp.ge.s32.totalorder %s299, 66
      $region39: #{_device_forward.6} parent=35 // loop_header_branch
        %302 = sbr.rel (%p300) target = $region43
      $region40: #{_device_forward.6} parent=35 // loop_body
        %s304 = sadd.s32 %s223, %s299
        %s305 = smul.u32 %s304, 136
        %s306 = scalar_lea.vmem %s211, %s305
        %v307 = vld [vmem:[%s306] sm:$0xff]
        %v308 = vld [vmem:[%s306 + $0x8] sm:$0xff]
        %v309 = vld [vmem:[%s306 + $0x10] sm:$0xff]
        %v310 = vld [vmem:[%s306 + $0x18] sm:$0xff]
        %v311 = vld [vmem:[%s306 + $0x20] sm:$0xff]
        %v312 = vld [vmem:[%s306 + $0x28] sm:$0xff]
        %v313 = vld [vmem:[%s306 + $0x30] sm:$0xff]
        %v314 = vld [vmem:[%s306 + $0x38] sm:$0xff]
        %v315 = vld [vmem:[%s306 + $0x40] sm:$0xff]
        %v316 = vld [vmem:[%s306 + $0x48] sm:$0xff]
        %v317 = vld [vmem:[%s306 + $0x50] sm:$0xff]
        %v318 = vld [vmem:[%s306 + $0x58] sm:$0xff]
        %v319 = vld [vmem:[%s306 + $0x60] sm:$0xff]
        %v320 = vld [vmem:[%s306 + $0x68] sm:$0xff]
        %v321 = vld [vmem:[%s306 + $0x70] sm:$0xff]
        %v322 = vld [vmem:[%s306 + $0x78] sm:$0xff]
        %v323 = vld [vmem:[%s306 + $0x80] sm:$0x3f]
        %vm341 = vcmask 1046528
        %v342 = vrot.slane %v307, 1
        %v343 = vrot.slane %v308, 1
        %v344 = vsel %vm341, %v342, %v343
        %v345 = vrot.slane %v309, 1
        %v346 = vsel %vm341, %v343, %v345
        %v347 = vrot.slane %v310, 1
        %v348 = vsel %vm341, %v345, %v347
        %v349 = vrot.slane %v311, 1
        %v350 = vsel %vm341, %v347, %v349
        %v351 = vrot.slane %v312, 1
        %v352 = vsel %vm341, %v349, %v351
        %v353 = vrot.slane %v313, 1
        %v354 = vsel %vm341, %v351, %v353
        %v355 = vrot.slane %v314, 1
        %v356 = vsel %vm341, %v353, %v355
        %v357 = vrot.slane %v315, 1
        %v358 = vsel %vm341, %v355, %v357
        %v359 = vrot.slane %v316, 1
        %v360 = vsel %vm341, %v357, %v359
        %v361 = vrot.slane %v317, 1
        %v362 = vsel %vm341, %v359, %v361
        %v363 = vrot.slane %v318, 1
        %v364 = vsel %vm341, %v361, %v363
        %v365 = vrot.slane %v319, 1
        %v366 = vsel %vm341, %v363, %v365
        %v367 = vrot.slane %v320, 1
        %v368 = vsel %vm341, %v365, %v367
        %v369 = vrot.slane %v321, 1
        %v370 = vsel %vm341, %v367, %v369
        %v371 = vrot.slane %v322, 1
        %v372 = vsel %vm341, %v369, %v371
        %v373 = vrot.slane %v323, 1
        %v374 = vsel %vm341, %v371, %v373
        %375 = vrot.lane.b32.xlu0 %v344, 64
        %v376 = vpop.permute.xlu0 %375
        %377 = vrot.lane.b32.xlu0 %v346, 64
        %v378 = vpop.permute.xlu0 %377
        %379 = vrot.lane.b32.xlu0 %v348, 64
        %v380 = vpop.permute.xlu0 %379
        %381 = vrot.lane.b32.xlu0 %v350, 64
        %v382 = vpop.permute.xlu0 %381
        %383 = vrot.lane.b32.xlu0 %v352, 64
        %v384 = vpop.permute.xlu0 %383
        %385 = vrot.lane.b32.xlu0 %v354, 64
        %v386 = vpop.permute.xlu0 %385
        %387 = vrot.lane.b32.xlu0 %v356, 64
        %v388 = vpop.permute.xlu0 %387
        %389 = vrot.lane.b32.xlu0 %v358, 64
        %v390 = vpop.permute.xlu0 %389
        %391 = vrot.lane.b32.xlu0 %v360, 64
        %v392 = vpop.permute.xlu0 %391
        %393 = vrot.lane.b32.xlu0 %v362, 64
        %v394 = vpop.permute.xlu0 %393
        %395 = vrot.lane.b32.xlu0 %v364, 64
        %v396 = vpop.permute.xlu0 %395
        %397 = vrot.lane.b32.xlu0 %v366, 64
        %v398 = vpop.permute.xlu0 %397
        %399 = vrot.lane.b32.xlu0 %v368, 64
        %v400 = vpop.permute.xlu0 %399
        %401 = vrot.lane.b32.xlu0 %v370, 64
        %v402 = vpop.permute.xlu0 %401
        %403 = vrot.lane.b32.xlu0 %v372, 64
        %v404 = vpop.permute.xlu0 %403
        %405 = vrot.lane.b32.xlu0 %v374, 64
        %v406 = vpop.permute.xlu0 %405
        %407 = vrot.lane.b32.xlu0 %v373, 64
        %v408 = vpop.permute.xlu0 %407
        %vm426 = vcmask 1045504
        %v427 = vrot.slane %v307, 2
        %v428 = vrot.slane %v308, 2
        %v429 = vsel %vm426, %v427, %v428
        %v430 = vrot.slane %v309, 2
        %v431 = vsel %vm426, %v428, %v430
        %v432 = vrot.slane %v310, 2
        %v433 = vsel %vm426, %v430, %v432
        %v434 = vrot.slane %v311, 2
        %v435 = vsel %vm426, %v432, %v434
        %v436 = vrot.slane %v312, 2
        %v437 = vsel %vm426, %v434, %v436
        %v438 = vrot.slane %v313, 2
        %v439 = vsel %vm426, %v436, %v438
        %v440 = vrot.slane %v314, 2
        %v441 = vsel %vm426, %v438, %v440
        %v442 = vrot.slane %v315, 2
        %v443 = vsel %vm426, %v440, %v442
        %v444 = vrot.slane %v316, 2
        %v445 = vsel %vm426, %v442, %v444
        %v446 = vrot.slane %v317, 2
        %v447 = vsel %vm426, %v444, %v446
        %v448 = vrot.slane %v318, 2
        %v449 = vsel %vm426, %v446, %v448
        %v450 = vrot.slane %v319, 2
        %v451 = vsel %vm426, %v448, %v450
        %v452 = vrot.slane %v320, 2
        %v453 = vsel %vm426, %v450, %v452
        %v454 = vrot.slane %v321, 2
        %v455 = vsel %vm426, %v452, %v454
        %v456 = vrot.slane %v322, 2
        %v457 = vsel %vm426, %v454, %v456
        %v458 = vrot.slane %v323, 2
        %v459 = vsel %vm426, %v456, %v458
        %vm460 = vcmask 523264
        %v461 = vsel %vm460, %v307, %v376
        %v462 = vsel %vm460, %v308, %v378
        %v463 = vsel %vm460, %v309, %v380
        %v464 = vsel %vm460, %v310, %v382
        %v465 = vsel %vm460, %v311, %v384
        %v466 = vsel %vm460, %v312, %v386
        %v467 = vsel %vm460, %v313, %v388
        %v468 = vsel %vm460, %v314, %v390
        %v469 = vsel %vm460, %v315, %v392
        %v470 = vsel %vm460, %v316, %v394
        %v471 = vsel %vm460, %v317, %v396
        %v472 = vsel %vm460, %v318, %v398
        %v473 = vsel %vm460, %v319, %v400
        %v474 = vsel %vm460, %v320, %v402
        %v475 = vsel %vm460, %v321, %v404
        %v476 = vsel %vm460, %v322, %v406
        %v477 = vsel %vm460, %v323, %v408
        %s478 = sadd.s32 %s304, 1
        %s479 = smul.u32 %s478, 136
        %s480 = scalar_lea.vmem %s211, %s479
        %v481 = vld [vmem:[%s480] sm:$0xff]
        %v482 = vld [vmem:[%s480 + $0x8] sm:$0xff]
        %v483 = vld [vmem:[%s480 + $0x10] sm:$0xff]
        %v484 = vld [vmem:[%s480 + $0x18] sm:$0xff]
        %v485 = vld [vmem:[%s480 + $0x20] sm:$0xff]
        %v486 = vld [vmem:[%s480 + $0x28] sm:$0xff]
        %v487 = vld [vmem:[%s480 + $0x30] sm:$0xff]
        %v488 = vld [vmem:[%s480 + $0x38] sm:$0xff]
        %v489 = vld [vmem:[%s480 + $0x40] sm:$0xff]
        %v490 = vld [vmem:[%s480 + $0x48] sm:$0xff]
        %v491 = vld [vmem:[%s480 + $0x50] sm:$0xff]
        %v492 = vld [vmem:[%s480 + $0x58] sm:$0xff]
        %v493 = vld [vmem:[%s480 + $0x60] sm:$0xff]
        %v494 = vld [vmem:[%s480 + $0x68] sm:$0xff]
        %v495 = vld [vmem:[%s480 + $0x70] sm:$0xff]
        %v496 = vld [vmem:[%s480 + $0x78] sm:$0xff]
        %v497 = vld [vmem:[%s480 + $0x80] sm:$0x3f]
        %v515 = vrot.slane %v481, 1
        %v516 = vrot.slane %v482, 1
        %v517 = vsel %vm341, %v515, %v516
        %v518 = vrot.slane %v483, 1
        %v519 = vsel %vm341, %v516, %v518
        %v520 = vrot.slane %v484, 1
        %v521 = vsel %vm341, %v518, %v520
        %v522 = vrot.slane %v485, 1
        %v523 = vsel %vm341, %v520, %v522
        %v524 = vrot.slane %v486, 1
        %v525 = vsel %vm341, %v522, %v524
        %v526 = vrot.slane %v487, 1
        %v527 = vsel %vm341, %v524, %v526
        %v528 = vrot.slane %v488, 1
        %v529 = vsel %vm341, %v526, %v528
        %v530 = vrot.slane %v489, 1
        %v531 = vsel %vm341, %v528, %v530
        %v532 = vrot.slane %v490, 1
        %v533 = vsel %vm341, %v530, %v532
        %v534 = vrot.slane %v491, 1
        %v535 = vsel %vm341, %v532, %v534
        %v536 = vrot.slane %v492, 1
        %v537 = vsel %vm341, %v534, %v536
        %v538 = vrot.slane %v493, 1
        %v539 = vsel %vm341, %v536, %v538
        %v540 = vrot.slane %v494, 1
        %v541 = vsel %vm341, %v538, %v540
        %v542 = vrot.slane %v495, 1
        %v543 = vsel %vm341, %v540, %v542
        %v544 = vrot.slane %v496, 1
        %v545 = vsel %vm341, %v542, %v544
        %v546 = vrot.slane %v497, 1
        %v547 = vsel %vm341, %v544, %v546
        %548 = vrot.lane.b32.xlu0 %v517, 64
        %v549 = vpop.permute.xlu0 %548
        %550 = vrot.lane.b32.xlu0 %v519, 64
        %v551 = vpop.permute.xlu0 %550
        %552 = vrot.lane.b32.xlu0 %v521, 64
        %v553 = vpop.permute.xlu0 %552
        %554 = vrot.lane.b32.xlu0 %v523, 64
        %v555 = vpop.permute.xlu0 %554
        %556 = vrot.lane.b32.xlu0 %v525, 64
        %v557 = vpop.permute.xlu0 %556
        %558 = vrot.lane.b32.xlu0 %v527, 64
        %v559 = vpop.permute.xlu0 %558
        %560 = vrot.lane.b32.xlu0 %v529, 64
        %v561 = vpop.permute.xlu0 %560
        %562 = vrot.lane.b32.xlu0 %v531, 64
        %v563 = vpop.permute.xlu0 %562
        %564 = vrot.lane.b32.xlu0 %v533, 64
        %v565 = vpop.permute.xlu0 %564
        %566 = vrot.lane.b32.xlu0 %v535, 64
        %v567 = vpop.permute.xlu0 %566
        %568 = vrot.lane.b32.xlu0 %v537, 64
        %v569 = vpop.permute.xlu0 %568
        %570 = vrot.lane.b32.xlu0 %v539, 64
        %v571 = vpop.permute.xlu0 %570
        %572 = vrot.lane.b32.xlu0 %v541, 64
        %v573 = vpop.permute.xlu0 %572
        %574 = vrot.lane.b32.xlu0 %v543, 64
        %v575 = vpop.permute.xlu0 %574
        %576 = vrot.lane.b32.xlu0 %v545, 64
        %v577 = vpop.permute.xlu0 %576
        %578 = vrot.lane.b32.xlu0 %v547, 64
        %v579 = vpop.permute.xlu0 %578
        %580 = vrot.lane.b32.xlu0 %v546, 64
        %v581 = vpop.permute.xlu0 %580
        %v599 = vrot.slane %v481, 2
        %v600 = vrot.slane %v482, 2
        %v601 = vsel %vm426, %v599, %v600
        %v602 = vrot.slane %v483, 2
        %v603 = vsel %vm426, %v600, %v602
        %v604 = vrot.slane %v484, 2
        %v605 = vsel %vm426, %v602, %v604
        %v606 = vrot.slane %v485, 2
        %v607 = vsel %vm426, %v604, %v606
        %v608 = vrot.slane %v486, 2
        %v609 = vsel %vm426, %v606, %v608
        %v610 = vrot.slane %v487, 2
        %v611 = vsel %vm426, %v608, %v610
        %v612 = vrot.slane %v488, 2
        %v613 = vsel %vm426, %v610, %v612
        %v614 = vrot.slane %v489, 2
        %v615 = vsel %vm426, %v612, %v614
        %v616 = vrot.slane %v490, 2
        %v617 = vsel %vm426, %v614, %v616
        %v618 = vrot.slane %v491, 2
        %v619 = vsel %vm426, %v616, %v618
        %v620 = vrot.slane %v492, 2
        %v621 = vsel %vm426, %v618, %v620
        %v622 = vrot.slane %v493, 2
        %v623 = vsel %vm426, %v620, %v622
        %v624 = vrot.slane %v494, 2
        %v625 = vsel %vm426, %v622, %v624
        %v626 = vrot.slane %v495, 2
        %v627 = vsel %vm426, %v624, %v626
        %v628 = vrot.slane %v496, 2
        %v629 = vsel %vm426, %v626, %v628
        %v630 = vrot.slane %v497, 2
        %v631 = vsel %vm426, %v628, %v630
        %v632 = vsel %vm460, %v481, %v549
        %v633 = vsel %vm460, %v482, %v551
        %v634 = vsel %vm460, %v483, %v553
        %v635 = vsel %vm460, %v484, %v555
        %v636 = vsel %vm460, %v485, %v557
        %v637 = vsel %vm460, %v486, %v559
        %v638 = vsel %vm460, %v487, %v561
        %v639 = vsel %vm460, %v488, %v563
        %v640 = vsel %vm460, %v489, %v565
        %v641 = vsel %vm460, %v490, %v567
        %v642 = vsel %vm460, %v491, %v569
        %v643 = vsel %vm460, %v492, %v571
        %v644 = vsel %vm460, %v493, %v573
        %v645 = vsel %vm460, %v494, %v575
        %v646 = vsel %vm460, %v495, %v577
        %v647 = vsel %vm460, %v496, %v579
        %v648 = vsel %vm460, %v497, %v581
        %v649 = vsel %vm460, %v601, 0
        %v651 = vsel %vm460, %v603, 0
        %v653 = vsel %vm460, %v605, 0
        %v655 = vsel %vm460, %v607, 0
        %v657 = vsel %vm460, %v609, 0
        %v659 = vsel %vm460, %v611, 0
        %v661 = vsel %vm460, %v613, 0
        %v663 = vsel %vm460, %v615, 0
        %v665 = vsel %vm460, %v617, 0
        %v667 = vsel %vm460, %v619, 0
        %v669 = vsel %vm460, %v621, 0
        %v671 = vsel %vm460, %v623, 0
        %v673 = vsel %vm460, %v625, 0
        %v675 = vsel %vm460, %v627, 0
        %v677 = vsel %vm460, %v629, 0
        %v679 = vsel %vm460, %v631, 0
        %v681 = vsel %vm460, %v630, 0
        %683 = vmatpush.msra.mxu0 %v265
        %684 = vmatpush.msra.mxu0 %v264
        %685 = vmatpush.msra.mxu0 %v263
        %686 = vmatpush.msra.mxu0 %v262
        %687 = vmatpush.msra.mxu0 %v261
        %688 = vmatpush.msra.mxu0 %v260
        %689 = vmatpush.msra.mxu0 %v259
        %690 = vmatpush.msra.mxu0 %v258
        %691 = vmatpush.msra.mxu0 %v257
        %692 = vmatpush.msra.mxu0 %v256
        %693 = vmatpush.msra.mxu0 %v255
        %694 = vmatpush.msra.mxu0 %v254
        %695 = vmatpush.msra.mxu0 %v253
        %696 = vmatpush.msra.mxu0 %v252
        %697 = vmatpush.msra.mxu0 %v251
        %698 = vmatpush.msra.mxu0 %v250
        %699 = vmatmul.f32.gmra.mxu0 %v632
        %v700 = vpop.f32.mrf.mxu0
        %v701 = vadd.f32 0.0, %v700
        %702 = vmatmul.f32.gmra.mxu0 %v633
        %v703 = vpop.f32.mrf.mxu0
        %v704 = vadd.f32 0.0, %v703
        %705 = vmatmul.f32.gmra.mxu0 %v634
        %v706 = vpop.f32.mrf.mxu0
        %v707 = vadd.f32 0.0, %v706
        %708 = vmatmul.f32.gmra.mxu0 %v635
        %v709 = vpop.f32.mrf.mxu0
        %v710 = vadd.f32 0.0, %v709
        %711 = vmatmul.f32.gmra.mxu0 %v636
        %v712 = vpop.f32.mrf.mxu0
        %v713 = vadd.f32 0.0, %v712
        %714 = vmatmul.f32.gmra.mxu0 %v637
        %v715 = vpop.f32.mrf.mxu0
        %v716 = vadd.f32 0.0, %v715
        %717 = vmatmul.f32.gmra.mxu0 %v638
        %v718 = vpop.f32.mrf.mxu0
        %v719 = vadd.f32 0.0, %v718
        %720 = vmatmul.f32.gmra.mxu0 %v639
        %v721 = vpop.f32.mrf.mxu0
        %v722 = vadd.f32 0.0, %v721
        %723 = vmatmul.f32.gmra.mxu0 %v640
        %v724 = vpop.f32.mrf.mxu0
        %v725 = vadd.f32 0.0, %v724
        %726 = vmatmul.f32.gmra.mxu0 %v641
        %v727 = vpop.f32.mrf.mxu0
        %v728 = vadd.f32 0.0, %v727
        %729 = vmatmul.f32.gmra.mxu0 %v642
        %v730 = vpop.f32.mrf.mxu0
        %v731 = vadd.f32 0.0, %v730
        %732 = vmatmul.f32.gmra.mxu0 %v643
        %v733 = vpop.f32.mrf.mxu0
        %v734 = vadd.f32 0.0, %v733
        %735 = vmatmul.f32.gmra.mxu0 %v644
        %v736 = vpop.f32.mrf.mxu0
        %v737 = vadd.f32 0.0, %v736
        %738 = vmatmul.f32.gmra.mxu0 %v645
        %v739 = vpop.f32.mrf.mxu0
        %v740 = vadd.f32 0.0, %v739
        %741 = vmatmul.f32.gmra.mxu0 %v646
        %v742 = vpop.f32.mrf.mxu0
        %v743 = vadd.f32 0.0, %v742
        %744 = vmatmul.f32.gmra.mxu0 %v647
        %v745 = vpop.f32.mrf.mxu0
        %v746 = vadd.f32 0.0, %v745
        %747 = vmatmul.f32.gmra.mxu0 %v648
        %v748 = vpop.f32.mrf.mxu0
        %v749 = vadd.f32 0.0, %v748
        %750 = vdwg.mxu0
        %751 = vmatpush.msra.mxu0 0.0
        %752 = vmatpush.msra.mxu0 0.0
        %753 = vmatpush.msra.mxu0 0.0
        %754 = vmatpush.msra.mxu0 0.0
        %755 = vmatpush.msra.mxu0 0.0
        %756 = vmatpush.msra.mxu0 0.0
        %757 = vmatpush.msra.mxu0 0.0
        %758 = vmatpush.msra.mxu0 0.0
        %759 = vmatpush.msra.mxu0 %v273
        %760 = vmatpush.msra.mxu0 %v272
        %761 = vmatpush.msra.mxu0 %v271
        %762 = vmatpush.msra.mxu0 %v270
        %763 = vmatpush.msra.mxu0 %v269
        %764 = vmatpush.msra.mxu0 %v268
        %765 = vmatpush.msra.mxu0 %v267
        %766 = vmatpush.msra.mxu0 %v266
        %767 = vmatmul.f32.gmra.mxu0 %v649
        %v768 = vpop.f32.mrf.mxu0
        %v769 = vadd.f32 %v701, %v768
        %770 = vmatmul.f32.gmra.mxu0 %v651
        %v771 = vpop.f32.mrf.mxu0
        %v772 = vadd.f32 %v704, %v771
        %773 = vmatmul.f32.gmra.mxu0 %v653
        %v774 = vpop.f32.mrf.mxu0
        %v775 = vadd.f32 %v707, %v774
        %776 = vmatmul.f32.gmra.mxu0 %v655
        %v777 = vpop.f32.mrf.mxu0
        %v778 = vadd.f32 %v710, %v777
        %779 = vmatmul.f32.gmra.mxu0 %v657
        %v780 = vpop.f32.mrf.mxu0
        %v781 = vadd.f32 %v713, %v780
        %782 = vmatmul.f32.gmra.mxu0 %v659
        %v783 = vpop.f32.mrf.mxu0
        %v784 = vadd.f32 %v716, %v783
        %785 = vmatmul.f32.gmra.mxu0 %v661
        %v786 = vpop.f32.mrf.mxu0
        %v787 = vadd.f32 %v719, %v786
        %788 = vmatmul.f32.gmra.mxu0 %v663
        %v789 = vpop.f32.mrf.mxu0
        %v790 = vadd.f32 %v722, %v789
        %791 = vmatmul.f32.gmra.mxu0 %v665
        %v792 = vpop.f32.mrf.mxu0
        %v793 = vadd.f32 %v725, %v792
        %794 = vmatmul.f32.gmra.mxu0 %v667
        %v795 = vpop.f32.mrf.mxu0
        %v796 = vadd.f32 %v728, %v795
        %797 = vmatmul.f32.gmra.mxu0 %v669
        %v798 = vpop.f32.mrf.mxu0
        %v799 = vadd.f32 %v731, %v798
        %800 = vmatmul.f32.gmra.mxu0 %v671
        %v801 = vpop.f32.mrf.mxu0
        %v802 = vadd.f32 %v734, %v801
        %803 = vmatmul.f32.gmra.mxu0 %v673
        %v804 = vpop.f32.mrf.mxu0
        %v805 = vadd.f32 %v737, %v804
        %806 = vmatmul.f32.gmra.mxu0 %v675
        %v807 = vpop.f32.mrf.mxu0
        %v808 = vadd.f32 %v740, %v807
        %809 = vmatmul.f32.gmra.mxu0 %v677
        %v810 = vpop.f32.mrf.mxu0
        %v811 = vadd.f32 %v743, %v810
        %812 = vmatmul.f32.gmra.mxu0 %v679
        %v813 = vpop.f32.mrf.mxu0
        %v814 = vadd.f32 %v746, %v813
        %815 = vmatmul.f32.gmra.mxu0 %v681
        %v816 = vpop.f32.mrf.mxu0
        %v817 = vadd.f32 %v749, %v816
        %818 = vdwg.mxu0
        %v819 = vsel %vm460, %v429, 0
        %v821 = vsel %vm460, %v431, 0
        %v823 = vsel %vm460, %v433, 0
        %v825 = vsel %vm460, %v435, 0
        %v827 = vsel %vm460, %v437, 0
        %v829 = vsel %vm460, %v439, 0
        %v831 = vsel %vm460, %v441, 0
        %v833 = vsel %vm460, %v443, 0
        %v835 = vsel %vm460, %v445, 0
        %v837 = vsel %vm460, %v447, 0
        %v839 = vsel %vm460, %v449, 0
        %v841 = vsel %vm460, %v451, 0
        %v843 = vsel %vm460, %v453, 0
        %v845 = vsel %vm460, %v455, 0
        %v847 = vsel %vm460, %v457, 0
        %v849 = vsel %vm460, %v459, 0
        %v851 = vsel %vm460, %v458, 0
        %853 = vmatpush.msra.mxu0 %v241
        %854 = vmatpush.msra.mxu0 %v240
        %855 = vmatpush.msra.mxu0 %v239
        %856 = vmatpush.msra.mxu0 %v238
        %857 = vmatpush.msra.mxu0 %v237
        %858 = vmatpush.msra.mxu0 %v236
        %859 = vmatpush.msra.mxu0 %v235
        %860 = vmatpush.msra.mxu0 %v234
        %861 = vmatpush.msra.mxu0 %v233
        %862 = vmatpush.msra.mxu0 %v232
        %863 = vmatpush.msra.mxu0 %v231
        %864 = vmatpush.msra.mxu0 %v230
        %865 = vmatpush.msra.mxu0 %v229
        %866 = vmatpush.msra.mxu0 %v228
        %867 = vmatpush.msra.mxu0 %v227
        %868 = vmatpush.msra.mxu0 %v226
        %869 = vmatmul.f32.gmra.mxu0 %v461
        %v870 = vpop.f32.mrf.mxu0
        %v871 = vadd.f32 %v769, %v870
        %872 = vmatmul.f32.gmra.mxu0 %v462
        %v873 = vpop.f32.mrf.mxu0
        %v874 = vadd.f32 %v772, %v873
        %875 = vmatmul.f32.gmra.mxu0 %v463
        %v876 = vpop.f32.mrf.mxu0
        %v877 = vadd.f32 %v775, %v876
        %878 = vmatmul.f32.gmra.mxu0 %v464
        %v879 = vpop.f32.mrf.mxu0
        %v880 = vadd.f32 %v778, %v879
        %881 = vmatmul.f32.gmra.mxu0 %v465
        %v882 = vpop.f32.mrf.mxu0
        %v883 = vadd.f32 %v781, %v882
        %884 = vmatmul.f32.gmra.mxu0 %v466
        %v885 = vpop.f32.mrf.mxu0
        %v886 = vadd.f32 %v784, %v885
        %887 = vmatmul.f32.gmra.mxu0 %v467
        %v888 = vpop.f32.mrf.mxu0
        %v889 = vadd.f32 %v787, %v888
        %890 = vmatmul.f32.gmra.mxu0 %v468
        %v891 = vpop.f32.mrf.mxu0
        %v892 = vadd.f32 %v790, %v891
        %893 = vmatmul.f32.gmra.mxu0 %v469
        %v894 = vpop.f32.mrf.mxu0
        %v895 = vadd.f32 %v793, %v894
        %896 = vmatmul.f32.gmra.mxu0 %v470
        %v897 = vpop.f32.mrf.mxu0
        %v898 = vadd.f32 %v796, %v897
        %899 = vmatmul.f32.gmra.mxu0 %v471
        %v900 = vpop.f32.mrf.mxu0
        %v901 = vadd.f32 %v799, %v900
        %902 = vmatmul.f32.gmra.mxu0 %v472
        %v903 = vpop.f32.mrf.mxu0
        %v904 = vadd.f32 %v802, %v903
        %905 = vmatmul.f32.gmra.mxu0 %v473
        %v906 = vpop.f32.mrf.mxu0
        %v907 = vadd.f32 %v805, %v906
        %908 = vmatmul.f32.gmra.mxu0 %v474
        %v909 = vpop.f32.mrf.mxu0
        %v910 = vadd.f32 %v808, %v909
        %911 = vmatmul.f32.gmra.mxu0 %v475
        %v912 = vpop.f32.mrf.mxu0
        %v913 = vadd.f32 %v811, %v912
        %914 = vmatmul.f32.gmra.mxu0 %v476
        %v915 = vpop.f32.mrf.mxu0
        %v916 = vadd.f32 %v814, %v915
        %917 = vmatmul.f32.gmra.mxu0 %v477
        %v918 = vpop.f32.mrf.mxu0
        %v919 = vadd.f32 %v817, %v918
        %920 = vdwg.mxu0
        %921 = vmatpush.msra.mxu0 0.0
        %922 = vmatpush.msra.mxu0 0.0
        %923 = vmatpush.msra.mxu0 0.0
        %924 = vmatpush.msra.mxu0 0.0
        %925 = vmatpush.msra.mxu0 0.0
        %926 = vmatpush.msra.mxu0 0.0
        %927 = vmatpush.msra.mxu0 0.0
        %928 = vmatpush.msra.mxu0 0.0
        %929 = vmatpush.msra.mxu0 %v249
        %930 = vmatpush.msra.mxu0 %v248
        %931 = vmatpush.msra.mxu0 %v247
        %932 = vmatpush.msra.mxu0 %v246
        %933 = vmatpush.msra.mxu0 %v245
        %934 = vmatpush.msra.mxu0 %v244
        %935 = vmatpush.msra.mxu0 %v243
        %936 = vmatpush.msra.mxu0 %v242
        %937 = vmatmul.f32.gmra.mxu0 %v819
        %v938 = vpop.f32.mrf.mxu0
        %v939 = vadd.f32 %v871, %v938
        %940 = vmatmul.f32.gmra.mxu0 %v821
        %v941 = vpop.f32.mrf.mxu0
        %v942 = vadd.f32 %v874, %v941
        %943 = vmatmul.f32.gmra.mxu0 %v823
        %v944 = vpop.f32.mrf.mxu0
        %v945 = vadd.f32 %v877, %v944
        %946 = vmatmul.f32.gmra.mxu0 %v825
        %v947 = vpop.f32.mrf.mxu0
        %v948 = vadd.f32 %v880, %v947
        %949 = vmatmul.f32.gmra.mxu0 %v827
        %v950 = vpop.f32.mrf.mxu0
        %v951 = vadd.f32 %v883, %v950
        %952 = vmatmul.f32.gmra.mxu0 %v829
        %v953 = vpop.f32.mrf.mxu0
        %v954 = vadd.f32 %v886, %v953
        %955 = vmatmul.f32.gmra.mxu0 %v831
        %v956 = vpop.f32.mrf.mxu0
        %v957 = vadd.f32 %v889, %v956
        %958 = vmatmul.f32.gmra.mxu0 %v833
        %v959 = vpop.f32.mrf.mxu0
        %v960 = vadd.f32 %v892, %v959
        %961 = vmatmul.f32.gmra.mxu0 %v835
        %v962 = vpop.f32.mrf.mxu0
        %v963 = vadd.f32 %v895, %v962
        %964 = vmatmul.f32.gmra.mxu0 %v837
        %v965 = vpop.f32.mrf.mxu0
        %v966 = vadd.f32 %v898, %v965
        %967 = vmatmul.f32.gmra.mxu0 %v839
        %v968 = vpop.f32.mrf.mxu0
        %v969 = vadd.f32 %v901, %v968
        %970 = vmatmul.f32.gmra.mxu0 %v841
        %v971 = vpop.f32.mrf.mxu0
        %v972 = vadd.f32 %v904, %v971
        %973 = vmatmul.f32.gmra.mxu0 %v843
        %v974 = vpop.f32.mrf.mxu0
        %v975 = vadd.f32 %v907, %v974
        %976 = vmatmul.f32.gmra.mxu0 %v845
        %v977 = vpop.f32.mrf.mxu0
        %v978 = vadd.f32 %v910, %v977
        %979 = vmatmul.f32.gmra.mxu0 %v847
        %v980 = vpop.f32.mrf.mxu0
        %v981 = vadd.f32 %v913, %v980
        %982 = vmatmul.f32.gmra.mxu0 %v849
        %v983 = vpop.f32.mrf.mxu0
        %v984 = vadd.f32 %v916, %v983
        %985 = vmatmul.f32.gmra.mxu0 %v851
        %v986 = vpop.f32.mrf.mxu0
        %v987 = vadd.f32 %v919, %v986
        %988 = vdwg.mxu0
        %s989 = sadd.s32 %s304, 2
        %s990 = smul.u32 %s989, 136
        %s991 = scalar_lea.vmem %s211, %s990
        %v992 = vld [vmem:[%s991] sm:$0xff]
        %v993 = vld [vmem:[%s991 + $0x8] sm:$0xff]
        %v994 = vld [vmem:[%s991 + $0x10] sm:$0xff]
        %v995 = vld [vmem:[%s991 + $0x18] sm:$0xff]
        %v996 = vld [vmem:[%s991 + $0x20] sm:$0xff]
        %v997 = vld [vmem:[%s991 + $0x28] sm:$0xff]
        %v998 = vld [vmem:[%s991 + $0x30] sm:$0xff]
        %v999 = vld [vmem:[%s991 + $0x38] sm:$0xff]
        %v1000 = vld [vmem:[%s991 + $0x40] sm:$0xff]
        %v1001 = vld [vmem:[%s991 + $0x48] sm:$0xff]
        %v1002 = vld [vmem:[%s991 + $0x50] sm:$0xff]
        %v1003 = vld [vmem:[%s991 + $0x58] sm:$0xff]
        %v1004 = vld [vmem:[%s991 + $0x60] sm:$0xff]
        %v1005 = vld [vmem:[%s991 + $0x68] sm:$0xff]
        %v1006 = vld [vmem:[%s991 + $0x70] sm:$0xff]
        %v1007 = vld [vmem:[%s991 + $0x78] sm:$0xff]
        %v1008 = vld [vmem:[%s991 + $0x80] sm:$0x3f]
        %v1026 = vrot.slane %v992, 1
        %v1027 = vrot.slane %v993, 1
        %v1028 = vsel %vm341, %v1026, %v1027
        %v1029 = vrot.slane %v994, 1
        %v1030 = vsel %vm341, %v1027, %v1029
        %v1031 = vrot.slane %v995, 1
        %v1032 = vsel %vm341, %v1029, %v1031
        %v1033 = vrot.slane %v996, 1
        %v1034 = vsel %vm341, %v1031, %v1033
        %v1035 = vrot.slane %v997, 1
        %v1036 = vsel %vm341, %v1033, %v1035
        %v1037 = vrot.slane %v998, 1
        %v1038 = vsel %vm341, %v1035, %v1037
        %v1039 = vrot.slane %v999, 1
        %v1040 = vsel %vm341, %v1037, %v1039
        %v1041 = vrot.slane %v1000, 1
        %v1042 = vsel %vm341, %v1039, %v1041
        %v1043 = vrot.slane %v1001, 1
        %v1044 = vsel %vm341, %v1041, %v1043
        %v1045 = vrot.slane %v1002, 1
        %v1046 = vsel %vm341, %v1043, %v1045
        %v1047 = vrot.slane %v1003, 1
        %v1048 = vsel %vm341, %v1045, %v1047
        %v1049 = vrot.slane %v1004, 1
        %v1050 = vsel %vm341, %v1047, %v1049
        %v1051 = vrot.slane %v1005, 1
        %v1052 = vsel %vm341, %v1049, %v1051
        %v1053 = vrot.slane %v1006, 1
        %v1054 = vsel %vm341, %v1051, %v1053
        %v1055 = vrot.slane %v1007, 1
        %v1056 = vsel %vm341, %v1053, %v1055
        %v1057 = vrot.slane %v1008, 1
        %v1058 = vsel %vm341, %v1055, %v1057
        %1059 = vrot.lane.b32.xlu0 %v1028, 64
        %v1060 = vpop.permute.xlu0 %1059
        %1061 = vrot.lane.b32.xlu0 %v1030, 64
        %v1062 = vpop.permute.xlu0 %1061
        %1063 = vrot.lane.b32.xlu0 %v1032, 64
        %v1064 = vpop.permute.xlu0 %1063
        %1065 = vrot.lane.b32.xlu0 %v1034, 64
        %v1066 = vpop.permute.xlu0 %1065
        %1067 = vrot.lane.b32.xlu0 %v1036, 64
        %v1068 = vpop.permute.xlu0 %1067
        %1069 = vrot.lane.b32.xlu0 %v1038, 64
        %v1070 = vpop.permute.xlu0 %1069
        %1071 = vrot.lane.b32.xlu0 %v1040, 64
        %v1072 = vpop.permute.xlu0 %1071
        %1073 = vrot.lane.b32.xlu0 %v1042, 64
        %v1074 = vpop.permute.xlu0 %1073
        %1075 = vrot.lane.b32.xlu0 %v1044, 64
        %v1076 = vpop.permute.xlu0 %1075
        %1077 = vrot.lane.b32.xlu0 %v1046, 64
        %v1078 = vpop.permute.xlu0 %1077
        %1079 = vrot.lane.b32.xlu0 %v1048, 64
        %v1080 = vpop.permute.xlu0 %1079
        %1081 = vrot.lane.b32.xlu0 %v1050, 64
        %v1082 = vpop.permute.xlu0 %1081
        %1083 = vrot.lane.b32.xlu0 %v1052, 64
        %v1084 = vpop.permute.xlu0 %1083
        %1085 = vrot.lane.b32.xlu0 %v1054, 64
        %v1086 = vpop.permute.xlu0 %1085
        %1087 = vrot.lane.b32.xlu0 %v1056, 64
        %v1088 = vpop.permute.xlu0 %1087
        %1089 = vrot.lane.b32.xlu0 %v1058, 64
        %v1090 = vpop.permute.xlu0 %1089
        %1091 = vrot.lane.b32.xlu0 %v1057, 64
        %v1092 = vpop.permute.xlu0 %1091
        %v1110 = vrot.slane %v992, 2
        %v1111 = vrot.slane %v993, 2
        %v1112 = vsel %vm426, %v1110, %v1111
        %v1113 = vrot.slane %v994, 2
        %v1114 = vsel %vm426, %v1111, %v1113
        %v1115 = vrot.slane %v995, 2
        %v1116 = vsel %vm426, %v1113, %v1115
        %v1117 = vrot.slane %v996, 2
        %v1118 = vsel %vm426, %v1115, %v1117
        %v1119 = vrot.slane %v997, 2
        %v1120 = vsel %vm426, %v1117, %v1119
        %v1121 = vrot.slane %v998, 2
        %v1122 = vsel %vm426, %v1119, %v1121
        %v1123 = vrot.slane %v999, 2
        %v1124 = vsel %vm426, %v1121, %v1123
        %v1125 = vrot.slane %v1000, 2
        %v1126 = vsel %vm426, %v1123, %v1125
        %v1127 = vrot.slane %v1001, 2
        %v1128 = vsel %vm426, %v1125, %v1127
        %v1129 = vrot.slane %v1002, 2
        %v1130 = vsel %vm426, %v1127, %v1129
        %v1131 = vrot.slane %v1003, 2
        %v1132 = vsel %vm426, %v1129, %v1131
        %v1133 = vrot.slane %v1004, 2
        %v1134 = vsel %vm426, %v1131, %v1133
        %v1135 = vrot.slane %v1005, 2
        %v1136 = vsel %vm426, %v1133, %v1135
        %v1137 = vrot.slane %v1006, 2
        %v1138 = vsel %vm426, %v1135, %v1137
        %v1139 = vrot.slane %v1007, 2
        %v1140 = vsel %vm426, %v1137, %v1139
        %v1141 = vrot.slane %v1008, 2
        %v1142 = vsel %vm426, %v1139, %v1141
        %v1143 = vsel %vm460, %v992, %v1060
        %v1144 = vsel %vm460, %v993, %v1062
        %v1145 = vsel %vm460, %v994, %v1064
        %v1146 = vsel %vm460, %v995, %v1066
        %v1147 = vsel %vm460, %v996, %v1068
        %v1148 = vsel %vm460, %v997, %v1070
        %v1149 = vsel %vm460, %v998, %v1072
        %v1150 = vsel %vm460, %v999, %v1074
        %v1151 = vsel %vm460, %v1000, %v1076
        %v1152 = vsel %vm460, %v1001, %v1078
        %v1153 = vsel %vm460, %v1002, %v1080
        %v1154 = vsel %vm460, %v1003, %v1082
        %v1155 = vsel %vm460, %v1004, %v1084
        %v1156 = vsel %vm460, %v1005, %v1086
        %v1157 = vsel %vm460, %v1006, %v1088
        %v1158 = vsel %vm460, %v1007, %v1090
        %v1159 = vsel %vm460, %v1008, %v1092
        %v1160 = vsel %vm460, %v1112, 0
        %v1162 = vsel %vm460, %v1114, 0
        %v1164 = vsel %vm460, %v1116, 0
        %v1166 = vsel %vm460, %v1118, 0
        %v1168 = vsel %vm460, %v1120, 0
        %v1170 = vsel %vm460, %v1122, 0
        %v1172 = vsel %vm460, %v1124, 0
        %v1174 = vsel %vm460, %v1126, 0
        %v1176 = vsel %vm460, %v1128, 0
        %v1178 = vsel %vm460, %v1130, 0
        %v1180 = vsel %vm460, %v1132, 0
        %v1182 = vsel %vm460, %v1134, 0
        %v1184 = vsel %vm460, %v1136, 0
        %v1186 = vsel %vm460, %v1138, 0
        %v1188 = vsel %vm460, %v1140, 0
        %v1190 = vsel %vm460, %v1142, 0
        %v1192 = vsel %vm460, %v1141, 0
        %1194 = vmatpush.msra.mxu0 %v289
        %1195 = vmatpush.msra.mxu0 %v288
        %1196 = vmatpush.msra.mxu0 %v287
        %1197 = vmatpush.msra.mxu0 %v286
        %1198 = vmatpush.msra.mxu0 %v285
        %1199 = vmatpush.msra.mxu0 %v284
        %1200 = vmatpush.msra.mxu0 %v283
        %1201 = vmatpush.msra.mxu0 %v282
        %1202 = vmatpush.msra.mxu0 %v281
        %1203 = vmatpush.msra.mxu0 %v280
        %1204 = vmatpush.msra.mxu0 %v279
        %1205 = vmatpush.msra.mxu0 %v278
        %1206 = vmatpush.msra.mxu0 %v277
        %1207 = vmatpush.msra.mxu0 %v276
        %1208 = vmatpush.msra.mxu0 %v275
        %1209 = vmatpush.msra.mxu0 %v274
        %1210 = vmatmul.f32.gmra.mxu0 %v1143
        %v1211 = vpop.f32.mrf.mxu0
        %v1212 = vadd.f32 0.0, %v1211
        %1213 = vmatmul.f32.gmra.mxu0 %v1144
        %v1214 = vpop.f32.mrf.mxu0
        %v1215 = vadd.f32 0.0, %v1214
        %1216 = vmatmul.f32.gmra.mxu0 %v1145
        %v1217 = vpop.f32.mrf.mxu0
        %v1218 = vadd.f32 0.0, %v1217
        %1219 = vmatmul.f32.gmra.mxu0 %v1146
        %v1220 = vpop.f32.mrf.mxu0
        %v1221 = vadd.f32 0.0, %v1220
        %1222 = vmatmul.f32.gmra.mxu0 %v1147
        %v1223 = vpop.f32.mrf.mxu0
        %v1224 = vadd.f32 0.0, %v1223
        %1225 = vmatmul.f32.gmra.mxu0 %v1148
        %v1226 = vpop.f32.mrf.mxu0
        %v1227 = vadd.f32 0.0, %v1226
        %1228 = vmatmul.f32.gmra.mxu0 %v1149
        %v1229 = vpop.f32.mrf.mxu0
        %v1230 = vadd.f32 0.0, %v1229
        %1231 = vmatmul.f32.gmra.mxu0 %v1150
        %v1232 = vpop.f32.mrf.mxu0
        %v1233 = vadd.f32 0.0, %v1232
        %1234 = vmatmul.f32.gmra.mxu0 %v1151
        %v1235 = vpop.f32.mrf.mxu0
        %v1236 = vadd.f32 0.0, %v1235
        %1237 = vmatmul.f32.gmra.mxu0 %v1152
        %v1238 = vpop.f32.mrf.mxu0
        %v1239 = vadd.f32 0.0, %v1238
        %1240 = vmatmul.f32.gmra.mxu0 %v1153
        %v1241 = vpop.f32.mrf.mxu0
        %v1242 = vadd.f32 0.0, %v1241
        %1243 = vmatmul.f32.gmra.mxu0 %v1154
        %v1244 = vpop.f32.mrf.mxu0
        %v1245 = vadd.f32 0.0, %v1244
        %1246 = vmatmul.f32.gmra.mxu0 %v1155
        %v1247 = vpop.f32.mrf.mxu0
        %v1248 = vadd.f32 0.0, %v1247
        %1249 = vmatmul.f32.gmra.mxu0 %v1156
        %v1250 = vpop.f32.mrf.mxu0
        %v1251 = vadd.f32 0.0, %v1250
        %1252 = vmatmul.f32.gmra.mxu0 %v1157
        %v1253 = vpop.f32.mrf.mxu0
        %v1254 = vadd.f32 0.0, %v1253
        %1255 = vmatmul.f32.gmra.mxu0 %v1158
        %v1256 = vpop.f32.mrf.mxu0
        %v1257 = vadd.f32 0.0, %v1256
        %1258 = vmatmul.f32.gmra.mxu0 %v1159
        %v1259 = vpop.f32.mrf.mxu0
        %v1260 = vadd.f32 0.0, %v1259
        %1261 = vdwg.mxu0
        %1262 = vmatpush.msra.mxu0 0.0
        %1263 = vmatpush.msra.mxu0 0.0
        %1264 = vmatpush.msra.mxu0 0.0
        %1265 = vmatpush.msra.mxu0 0.0
        %1266 = vmatpush.msra.mxu0 0.0
        %1267 = vmatpush.msra.mxu0 0.0
        %1268 = vmatpush.msra.mxu0 0.0
        %1269 = vmatpush.msra.mxu0 0.0
        %1270 = vmatpush.msra.mxu0 %v297
        %1271 = vmatpush.msra.mxu0 %v296
        %1272 = vmatpush.msra.mxu0 %v295
        %1273 = vmatpush.msra.mxu0 %v294
        %1274 = vmatpush.msra.mxu0 %v293
        %1275 = vmatpush.msra.mxu0 %v292
        %1276 = vmatpush.msra.mxu0 %v291
        %1277 = vmatpush.msra.mxu0 %v290
        %1278 = vmatmul.f32.gmra.mxu0 %v1160
        %v1279 = vpop.f32.mrf.mxu0
        %v1280 = vadd.f32 %v1212, %v1279
        %1281 = vmatmul.f32.gmra.mxu0 %v1162
        %v1282 = vpop.f32.mrf.mxu0
        %v1283 = vadd.f32 %v1215, %v1282
        %1284 = vmatmul.f32.gmra.mxu0 %v1164
        %v1285 = vpop.f32.mrf.mxu0
        %v1286 = vadd.f32 %v1218, %v1285
        %1287 = vmatmul.f32.gmra.mxu0 %v1166
        %v1288 = vpop.f32.mrf.mxu0
        %v1289 = vadd.f32 %v1221, %v1288
        %1290 = vmatmul.f32.gmra.mxu0 %v1168
        %v1291 = vpop.f32.mrf.mxu0
        %v1292 = vadd.f32 %v1224, %v1291
        %1293 = vmatmul.f32.gmra.mxu0 %v1170
        %v1294 = vpop.f32.mrf.mxu0
        %v1295 = vadd.f32 %v1227, %v1294
        %1296 = vmatmul.f32.gmra.mxu0 %v1172
        %v1297 = vpop.f32.mrf.mxu0
        %v1298 = vadd.f32 %v1230, %v1297
        %1299 = vmatmul.f32.gmra.mxu0 %v1174
        %v1300 = vpop.f32.mrf.mxu0
        %v1301 = vadd.f32 %v1233, %v1300
        %1302 = vmatmul.f32.gmra.mxu0 %v1176
        %v1303 = vpop.f32.mrf.mxu0
        %v1304 = vadd.f32 %v1236, %v1303
        %1305 = vmatmul.f32.gmra.mxu0 %v1178
        %v1306 = vpop.f32.mrf.mxu0
        %v1307 = vadd.f32 %v1239, %v1306
        %1308 = vmatmul.f32.gmra.mxu0 %v1180
        %v1309 = vpop.f32.mrf.mxu0
        %v1310 = vadd.f32 %v1242, %v1309
        %1311 = vmatmul.f32.gmra.mxu0 %v1182
        %v1312 = vpop.f32.mrf.mxu0
        %v1313 = vadd.f32 %v1245, %v1312
        %1314 = vmatmul.f32.gmra.mxu0 %v1184
        %v1315 = vpop.f32.mrf.mxu0
        %v1316 = vadd.f32 %v1248, %v1315
        %1317 = vmatmul.f32.gmra.mxu0 %v1186
        %v1318 = vpop.f32.mrf.mxu0
        %v1319 = vadd.f32 %v1251, %v1318
        %1320 = vmatmul.f32.gmra.mxu0 %v1188
        %v1321 = vpop.f32.mrf.mxu0
        %v1322 = vadd.f32 %v1254, %v1321
        %1323 = vmatmul.f32.gmra.mxu0 %v1190
        %v1324 = vpop.f32.mrf.mxu0
        %v1325 = vadd.f32 %v1257, %v1324
        %1326 = vmatmul.f32.gmra.mxu0 %v1192
        %v1327 = vpop.f32.mrf.mxu0
        %v1328 = vadd.f32 %v1260, %v1327
        %1329 = vdwg.mxu0
        %v1330 = vadd.f32 %v939, %v1280
        %v1331 = vadd.f32 %v942, %v1283
        %v1332 = vadd.f32 %v945, %v1286
        %v1333 = vadd.f32 %v948, %v1289
        %v1334 = vadd.f32 %v951, %v1292
        %v1335 = vadd.f32 %v954, %v1295
        %v1336 = vadd.f32 %v957, %v1298
        %v1337 = vadd.f32 %v960, %v1301
        %v1338 = vadd.f32 %v963, %v1304
        %v1339 = vadd.f32 %v966, %v1307
        %v1340 = vadd.f32 %v969, %v1310
        %v1341 = vadd.f32 %v972, %v1313
        %v1342 = vadd.f32 %v975, %v1316
        %v1343 = vadd.f32 %v978, %v1319
        %v1344 = vadd.f32 %v981, %v1322
        %v1345 = vadd.f32 %v984, %v1325
        %v1346 = vadd.f32 %v987, %v1328
        %v1348 = vperm.slane %v224, 0
        %v1350 = vmul.f32 %v1330, %v1348
        %v1351 = vmul.f32 %v1331, %v1348
        %v1352 = vmul.f32 %v1332, %v1348
        %v1353 = vmul.f32 %v1333, %v1348
        %v1354 = vmul.f32 %v1334, %v1348
        %v1355 = vmul.f32 %v1335, %v1348
        %v1356 = vmul.f32 %v1336, %v1348
        %v1357 = vmul.f32 %v1337, %v1348
        %v1358 = vmul.f32 %v1338, %v1348
        %v1359 = vmul.f32 %v1339, %v1348
        %v1360 = vmul.f32 %v1340, %v1348
        %v1361 = vmul.f32 %v1341, %v1348
        %v1362 = vmul.f32 %v1342, %v1348
        %v1363 = vmul.f32 %v1343, %v1348
        %v1364 = vmul.f32 %v1344, %v1348
        %v1365 = vmul.f32 %v1345, %v1348
        %v1366 = vmul.f32 %v1346, %v1348
        %v1368 = vperm.slane %v225, 0
        %v1370 = vadd.f32 %v1350, %v1368
        %v1371 = vadd.f32 %v1351, %v1368
        %v1372 = vadd.f32 %v1352, %v1368
        %v1373 = vadd.f32 %v1353, %v1368
        %v1374 = vadd.f32 %v1354, %v1368
        %v1375 = vadd.f32 %v1355, %v1368
        %v1376 = vadd.f32 %v1356, %v1368
        %v1377 = vadd.f32 %v1357, %v1368
        %v1378 = vadd.f32 %v1358, %v1368
        %v1379 = vadd.f32 %v1359, %v1368
        %v1380 = vadd.f32 %v1360, %v1368
        %v1381 = vadd.f32 %v1361, %v1368
        %v1382 = vadd.f32 %v1362, %v1368
        %v1383 = vadd.f32 %v1363, %v1368
        %v1384 = vadd.f32 %v1364, %v1368
        %v1385 = vadd.f32 %v1365, %v1368
        %v1386 = vadd.f32 %v1366, %v1368
        %v1387 = vmax.f32 %v1370, 0.0
        %v1388 = vmax.f32 %v1371, 0.0
        %v1389 = vmax.f32 %v1372, 0.0
        %v1390 = vmax.f32 %v1373, 0.0
        %v1391 = vmax.f32 %v1374, 0.0
        %v1392 = vmax.f32 %v1375, 0.0
        %v1393 = vmax.f32 %v1376, 0.0
        %v1394 = vmax.f32 %v1377, 0.0
        %v1395 = vmax.f32 %v1378, 0.0
        %v1396 = vmax.f32 %v1379, 0.0
        %v1397 = vmax.f32 %v1380, 0.0
        %v1398 = vmax.f32 %v1381, 0.0
        %v1399 = vmax.f32 %v1382, 0.0
        %v1400 = vmax.f32 %v1383, 0.0
        %v1401 = vmax.f32 %v1384, 0.0
        %v1402 = vmax.f32 %v1385, 0.0
        %v1403 = vmax.f32 %v1386, 0.0
        %s1404 = smul.u32 %s299, 136
        %s1405 = scalar_lea.vmem %s221, %s1404
        %vm1406 = vcmask 261120
        %1407 = vst.msk [vmem:[%s1405] sm:$0xff] %vm1406, %v1387
        %1408 = vst.msk [vmem:[%s1405 + $0x8] sm:$0xff] %vm1406, %v1388
        %1409 = vst.msk [vmem:[%s1405 + $0x10] sm:$0xff] %vm1406, %v1389
        %1410 = vst.msk [vmem:[%s1405 + $0x18] sm:$0xff] %vm1406, %v1390
        %1411 = vst.msk [vmem:[%s1405 + $0x20] sm:$0xff] %vm1406, %v1391
        %1412 = vst.msk [vmem:[%s1405 + $0x28] sm:$0xff] %vm1406, %v1392
        %1413 = vst.msk [vmem:[%s1405 + $0x30] sm:$0xff] %vm1406, %v1393
        %1414 = vst.msk [vmem:[%s1405 + $0x38] sm:$0xff] %vm1406, %v1394
        %1415 = vst.msk [vmem:[%s1405 + $0x40] sm:$0xff] %vm1406, %v1395
        %1416 = vst.msk [vmem:[%s1405 + $0x48] sm:$0xff] %vm1406, %v1396
        %1417 = vst.msk [vmem:[%s1405 + $0x50] sm:$0xff] %vm1406, %v1397
        %1418 = vst.msk [vmem:[%s1405 + $0x58] sm:$0xff] %vm1406, %v1398
        %1419 = vst.msk [vmem:[%s1405 + $0x60] sm:$0xff] %vm1406, %v1399
        %1420 = vst.msk [vmem:[%s1405 + $0x68] sm:$0xff] %vm1406, %v1400
        %1421 = vst.msk [vmem:[%s1405 + $0x70] sm:$0xff] %vm1406, %v1401
        %1422 = vst.msk [vmem:[%s1405 + $0x78] sm:$0xff] %vm1406, %v1402
        %vm1423 = vcmask 257024
        %1424 = vst.msk [vmem:[%s1405 + $0x80] sm:$0xf] %vm1423, %v1403
      $region41: #{_device_forward.6} parent=35 // loop_footer
        %s303 = sadd.s32 1, %s299
      $region42: #{_device_forward.6} parent=35 // loop_footer_branch
        %298 = sbr.rel target = $region38
      $region43: #{_device_forward.6} parent=35 // loop_exit
        _
      %s1425 = smul.u32 66, %s20
      %p1426 = scmp.lt.s32.totalorder %s19, 1
      %s1427 = scalar_select %p1426, %s19, 1
      %p1428 = scmp.lt.s32.totalorder %s1425, 131
      %s1429 = scalar_select %p1428, %s1425, 131
      %s1430 = smul.addr %s1429, 17
      %s1431 = smul.addr %s1427, 2244
      %s1432 = sadd.s32 %s1430, %s1431
      %s1433 = smul.addr %s1432, 8
      %s1434 = scalar_lea.vmem %s4, %s1433
      // Predicated region
      $region44: #{_device_forward.6} parent=35 // pred_check
        %p1435 = pneg %p136
      $region45: #{_device_forward.6} parent=35 // pred_check_branch
        %1437 = sbr.rel (%p1435) target = $region47
      $region46: #{_device_forward.6} parent=35 // pred_region
        %s1438 = smul.u32 66, %s20
      $region47: #{_device_forward.6} parent=35 // pred_fallthru
        _
    $region36: #{_device_forward.6} parent=5 // pred_fallthru
      _
    %p1439 = scmp.le.s32.totalorder 2, %s10
    // Predicated region
    $region48: #{_device_forward.6} parent=5 // pred_check
      %p1440 = pneg %p1439
    $region49: #{_device_forward.6} parent=5 // pred_check_branch
      %1442 = sbr.rel (%p1440) target = $region51
    $region50: #{_device_forward.6} parent=5 // pred_region
      %s1443 = ssub.s32 %s10, 2
      // Predicated region
      $region52: #{_device_forward.6} parent=50 // pred_check
        %p1444 = pneg %p142
      $region53: #{_device_forward.6} parent=50 // pred_check_branch
        %1446 = sbr.rel (%p1444) target = $region55
      $region54: #{_device_forward.6} parent=50 // pred_region
        %s1447 = smul.u32 66, %s22
        %p1448 = scmp.lt.s32.totalorder %s21, 1
        %s1449 = scalar_select %p1448, %s21, 1
        %p1450 = scmp.lt.s32.totalorder %s1447, 131
        %s1451 = scalar_select %p1450, %s1447, 131
        %s1452 = smul.addr %s1451, 17
        %s1453 = smul.addr %s1449, 2244
        %s1454 = sadd.s32 %s1452, %s1453
        %s1455 = smul.addr %s1454, 8
        %s1456 = scalar_lea.vmem %s4, %s1455
      $region55: #{_device_forward.6} parent=50 // pred_fallthru
        _
    $region51: #{_device_forward.6} parent=5 // pred_fallthru
      _
  $region6: #{_device_forward.6} parent=0 // loop_footer
    %s14 = sadd.s32 1, %s10
  $region7: #{_device_forward.6} parent=0 // loop_footer_branch
    %9 = sbr.rel target = $region3
  $region8: #{_device_forward.6} parent=0 // loop_exit
    _

// kernel: _device_forward.7
$region0: #{_device_forward.7}
  #allocation0 [shape = 'u32[]', space=smem, size = 0x4, offset = 0x4, fixed_abs, tag = 'smem constant byte address 0x4 - core index']
  #allocation1 [shape = 'u32[72,128]{1,0:T(1,128)}', space=vmem, size = 0x9000, scoped, tag = 'internal scratch']
  %s0 = inlined_call_operand.vmem [shape: f32[2,132,132,32], index: 0, kind: input, shape index: {}]
  %s1 = inlined_call_operand.vmem [shape: f32[3,96,32], index: 1, kind: input, shape index: {}]
  %s2 = inlined_call_operand.vmem [shape: f32[1,32], index: 2, kind: input, shape index: {}]
  %s3 = inlined_call_operand.vmem [shape: f32[1,32], index: 3, kind: input, shape index: {}]
  %s4 = inlined_call_operand.vmem [shape: f32[2,130,130,32], index: 4, kind: output, shape index: {}]
  %s5 = sld [smem:[#allocation0]]
  $region56: #{_device_forward.7} parent=0
    _
  %s7 = ssub.s32 1, %s5
  %s8 = scalar_select 0, %s7, %s5
  loop: start=0, step=1, limit=6
  $region2: #{_device_forward.7} parent=0 // loop_pre_header
    _
  $region3: #{_device_forward.7} parent=0 // loop_header
    %s10 = sphi 0, %s14
    %p11 = scmp.ge.s32.totalorder %s10, 6
    %s17 = sphi 0, %s29
    %s18 = sphi 0, %s25
    %s19 = sphi 0, %s17
    %s20 = sphi 0, %s18
    %s21 = sphi 0, %s19
    %s22 = sphi 0, %s20
    %s32 = sphi 0, %s34
    %s35 = sphi 0, %s32
    %s36 = sphi 0, %s35
    %s52 = sphi 0, %s36
    %s56 = sphi 0, %s56
    %s58 = sphi 0, %s56
    %s59 = sphi 0, %s58
    %s73 = sphi 0, %s59
    %s77 = sphi 0, %s77
    %s79 = sphi 0, %s77
    %s80 = sphi 0, %s79
    %s94 = sphi 0, %s80
    %s98 = sphi 0, %s98
    %s100 = sphi 0, %s98
    %s101 = sphi 0, %s100
    %s115 = sphi 0, %s101
    %s123 = sphi 0, %s125
    %s126 = sphi 0, %s123
    %s127 = sphi 0, %s126
    %s143 = sphi 0, %s127
  $region4: #{_device_forward.7} parent=0 // loop_header_branch
    %13 = sbr.rel (%p11) target = $region8
  $region5: #{_device_forward.7} parent=0 // loop_body
    %s15 = ssub.s32 %s10, 1
    %s16 = ssub.s32 %s10, 2
    %s23 = sadd.s32 1, %s18
    %p24 = scmp.ge.s32.totalorder %s23, 2
    %s25 = scalar_select %p24, 0, %s23
    %s26 = sadd.s32 1, %s17
    %s27 = scalar_select %p24, %s26, %s17
    %p28 = scmp.ge.s32.totalorder %s27, 2
    %s29 = scalar_select %p28, 0, %s27
    %s30 = ssub.s32 %s17, %s29
    %p31 = scmp.eq.s32.totalorder %s30, 0
    %s33 = sadd.s32 %s32, 1
    %s34 = scalar_select %p31, %s32, %s33
    %p37 = pneg %p31
    %p38 = scmp.eq.s32.totalorder %s10, 3
    %p39 = por %p37, %p38
    %p40 = scmp.ne.s32.totalorder %s32, %s35
    %p41 = scmp.eq.s32.totalorder %s10, 0
    %p42 = por %p40, %p41
    %p43 = scmp.ne.s32.totalorder %s32, %s35
    %p44 = scmp.eq.s32.totalorder %s15, 3
    %p45 = por %p43, %p44
    %p46 = scmp.ne.s32.totalorder %s35, %s36
    %p47 = scmp.eq.s32.totalorder %s15, 0
    %p48 = por %p46, %p47
    %p49 = scmp.ne.s32.totalorder %s35, %s36
    %p50 = scmp.eq.s32.totalorder %s16, 3
    %p51 = por %p49, %p50
    %p53 = scmp.ne.s32.totalorder %s36, %s52
    %p54 = scmp.eq.s32.totalorder %s16, 0
    %p55 = por %p53, %p54
    %s57 = sadd.s32 %s56, 1
    %p60 = scmp.eq.s32.totalorder %s10, 3
    %p61 = scmp.ne.s32.totalorder %s56, %s58
    %p62 = scmp.eq.s32.totalorder %s10, 0
    %p63 = por %p61, %p62
    %p64 = scmp.ne.s32.totalorder %s56, %s58
    %p65 = scmp.eq.s32.totalorder %s15, 3
    %p66 = por %p64, %p65
    %p67 = scmp.ne.s32.totalorder %s58, %s59
    %p68 = scmp.eq.s32.totalorder %s15, 0
    %p69 = por %p67, %p68
    %p70 = scmp.ne.s32.totalorder %s58, %s59
    %p71 = scmp.eq.s32.totalorder %s16, 3
    %p72 = por %p70, %p71
    %p74 = scmp.ne.s32.totalorder %s59, %s73
    %p75 = scmp.eq.s32.totalorder %s16, 0
    %p76 = por %p74, %p75
    %s78 = sadd.s32 %s77, 1
    %p81 = scmp.eq.s32.totalorder %s10, 3
    %p82 = scmp.ne.s32.totalorder %s77, %s79
    %p83 = scmp.eq.s32.totalorder %s10, 0
    %p84 = por %p82, %p83
    %p85 = scmp.ne.s32.totalorder %s77, %s79
    %p86 = scmp.eq.s32.totalorder %s15, 3
    %p87 = por %p85, %p86
    %p88 = scmp.ne.s32.totalorder %s79, %s80
    %p89 = scmp.eq.s32.totalorder %s15, 0
    %p90 = por %p88, %p89
    %p91 = scmp.ne.s32.totalorder %s79, %s80
    %p92 = scmp.eq.s32.totalorder %s16, 3
    %p93 = por %p91, %p92
    %p95 = scmp.ne.s32.totalorder %s80, %s94
    %p96 = scmp.eq.s32.totalorder %s16, 0
    %p97 = por %p95, %p96
    %s99 = sadd.s32 %s98, 1
    %p102 = scmp.eq.s32.totalorder %s10, 3
    %p103 = scmp.ne.s32.totalorder %s98, %s100
    %p104 = scmp.eq.s32.totalorder %s10, 0
    %p105 = por %p103, %p104
    %p106 = scmp.ne.s32.totalorder %s98, %s100
    %p107 = scmp.eq.s32.totalorder %s15, 3
    %p108 = por %p106, %p107
    %p109 = scmp.ne.s32.totalorder %s100, %s101
    %p110 = scmp.eq.s32.totalorder %s15, 0
    %p111 = por %p109, %p110
    %p112 = scmp.ne.s32.totalorder %s100, %s101
    %p113 = scmp.eq.s32.totalorder %s16, 3
    %p114 = por %p112, %p113
    %p116 = scmp.ne.s32.totalorder %s101, %s115
    %p117 = scmp.eq.s32.totalorder %s16, 0
    %p118 = por %p116, %p117
    %s119 = ssub.s32 %s17, %s29
    %s120 = ssub.s32 %s18, %s25
    %s121 = sor.u32 %s119, %s120
    %p122 = scmp.eq.s32.totalorder %s121, 0
    %s124 = sadd.s32 %s123, 1
    %s125 = scalar_select %p122, %s123, %s124
    %p128 = pneg %p122
    %p129 = scmp.eq.s32.totalorder %s10, 3
    %p130 = por %p128, %p129
    %p131 = scmp.ne.s32.totalorder %s123, %s126
    %p132 = scmp.eq.s32.totalorder %s10, 0
    %p133 = por %p131, %p132
    %p134 = scmp.ne.s32.totalorder %s123, %s126
    %p135 = scmp.eq.s32.totalorder %s15, 3
    %p136 = por %p134, %p135
    %p137 = scmp.ne.s32.totalorder %s126, %s127
    %p138 = scmp.eq.s32.totalorder %s15, 0
    %p139 = por %p137, %p138
    %p140 = scmp.ne.s32.totalorder %s126, %s127
    %p141 = scmp.eq.s32.totalorder %s16, 3
    %p142 = por %p140, %p141
    %p144 = scmp.ne.s32.totalorder %s127, %s143
    %p145 = scmp.eq.s32.totalorder %s16, 0
    %p146 = por %p144, %p145
    %p147 = scmp.le.s32.totalorder 1, %s10
    %p148 = scmp.lt.s32.totalorder %s10, 5
    %p149 = pnand %p147, %p148
    %p150 = pneg %p149
    // Predicated region
    $region9: #{_device_forward.7} parent=5 // pred_check
      _
    $region10: #{_device_forward.7} parent=5 // pred_check_branch
      %152 = sbr.rel (%p149) target = $region12
    $region11: #{_device_forward.7} parent=5 // pred_region
      %s153 = ssub.s32 %s10, 1
      // Predicated region
      $region13: #{_device_forward.7} parent=11 // pred_check
        %p154 = pneg %p69
      $region14: #{_device_forward.7} parent=11 // pred_check_branch
        %156 = sbr.rel (%p154) target = $region16
      $region15: #{_device_forward.7} parent=11 // pred_region
        _
      $region16: #{_device_forward.7} parent=11 // pred_fallthru
        _
      // Predicated region
      $region17: #{_device_forward.7} parent=11 // pred_check
        %p157 = pneg %p90
      $region18: #{_device_forward.7} parent=11 // pred_check_branch
        %159 = sbr.rel (%p157) target = $region20
      $region19: #{_device_forward.7} parent=11 // pred_region
        _
      $region20: #{_device_forward.7} parent=11 // pred_fallthru
        _
      // Predicated region
      $region21: #{_device_forward.7} parent=11 // pred_check
        %p160 = pneg %p111
      $region22: #{_device_forward.7} parent=11 // pred_check_branch
        %162 = sbr.rel (%p160) target = $region24
      $region23: #{_device_forward.7} parent=11 // pred_region
        _
      $region24: #{_device_forward.7} parent=11 // pred_fallthru
        _
    $region12: #{_device_forward.7} parent=5 // pred_fallthru
      _
    %p163 = scmp.lt.s32.totalorder %s10, 4
    // Predicated region
    $region25: #{_device_forward.7} parent=5 // pred_check
      %p164 = pneg %p163
    $region26: #{_device_forward.7} parent=5 // pred_check_branch
      %166 = sbr.rel (%p164) target = $region28
    $region27: #{_device_forward.7} parent=5 // pred_region
      // Predicated region
      $region29: #{_device_forward.7} parent=27 // pred_check
        %p167 = pneg %p42
      $region30: #{_device_forward.7} parent=27 // pred_check_branch
        %169 = sbr.rel (%p167) target = $region32
      $region31: #{_device_forward.7} parent=27 // pred_region
        %p170 = scmp.lt.s32.totalorder %s17, 1
        %s171 = scalar_select %p170, %s17, 1
        %s172 = smul.addr %s171, 2244
        %s173 = smul.addr %s172, 8
        %s174 = scalar_lea.vmem %s0, %s173
      $region32: #{_device_forward.7} parent=27 // pred_fallthru
        _
    $region28: #{_device_forward.7} parent=5 // pred_fallthru
      _
    %p175 = scmp.le.s32.totalorder 1, %s10
    %p176 = scmp.lt.s32.totalorder %s10, 5
    %p177 = pnand %p175, %p176
    %p178 = pneg %p177
    // Predicated region
    $region33: #{_device_forward.7} parent=5 // pred_check
      _
    $region34: #{_device_forward.7} parent=5 // pred_check_branch
      %180 = sbr.rel (%p177) target = $region36
    $region35: #{_device_forward.7} parent=5 // pred_region
      %s181 = ssub.s32 %s10, 1
      %p182 = scmp.lt.s32.totalorder %s19, 1
      %s183 = scalar_select %p182, %s19, 1
      %s184 = smul.addr %s183, 2244
      %s185 = smul.addr %s184, 8
      %s186 = scalar_lea.vmem %s0, %s185
      %p187 = pneg %p48
      %p188 = pneg %p45
      %p189 = pneg %p69
      %p190 = pneg %p66
      %p191 = pneg %p90
      %p192 = pneg %p87
      %p193 = pneg %p111
      %p194 = pneg %p108
      %p195 = pneg %p139
      %p196 = pneg %p136
      %s197 = smul.u32 65, %s20
      %p198 = scmp.lt.s32.totalorder %s19, 1
      %s199 = scalar_select %p198, %s19, 1
      %p200 = scmp.lt.s32.totalorder %s197, 129
      %s201 = scalar_select %p200, %s197, 129
      %s202 = smul.addr %s201, 17
      %s203 = smul.addr %s199, 2210
      %s204 = sadd.s32 %s202, %s203
      %s205 = smul.addr %s204, 8
      %s206 = scalar_lea.vmem %s4, %s205
      %p207 = scmp.lt.s32.totalorder %s19, 1
      %s208 = scalar_select %p207, %s19, 1
      %s209 = smul.addr %s208, 2244
      %s210 = smul.addr %s209, 8
      %s211 = scalar_lea.vmem %s0, %s210
      %s212 = smul.u32 65, %s20
      %p213 = scmp.lt.s32.totalorder %s19, 1
      %s214 = scalar_select %p213, %s19, 1
      %p215 = scmp.lt.s32.totalorder %s212, 129
      %s216 = scalar_select %p215, %s212, 129
      %s217 = smul.addr %s216, 17
      %s218 = smul.addr %s214, 2210
      %s219 = sadd.s32 %s217, %s218
      %s220 = smul.addr %s219, 8
      %s221 = scalar_lea.vmem %s4, %s220
      %s222 = smul.u32 65, %s20
      %s223 = smul.u32 %s20, 65
      %v224 = vld [vmem:[%s2] sm:$0x1]
      %v225 = vld [vmem:[%s3] sm:$0x1]
      %v226 = vld [vmem:[%s1] sm:$0xff]
      %v227 = vld [vmem:[%s1 + $0x8] sm:$0xff]
      %v228 = vld [vmem:[%s1 + $0x10] sm:$0xff]
      %v229 = vld [vmem:[%s1 + $0x18] sm:$0xff]
      %v230 = vld [vmem:[%s1 + $0x20] sm:$0xff]
      %v231 = vld [vmem:[%s1 + $0x28] sm:$0xff]
      %v232 = vld [vmem:[%s1 + $0x30] sm:$0xff]
      %v233 = vld [vmem:[%s1 + $0x38] sm:$0xff]
      %v234 = vld [vmem:[%s1 + $0x40] sm:$0xff]
      %v235 = vld [vmem:[%s1 + $0x48] sm:$0xff]
      %v236 = vld [vmem:[%s1 + $0x50] sm:$0xff]
      %v237 = vld [vmem:[%s1 + $0x58] sm:$0xff]
      %v238 = vld [vmem:[%s1 + $0x60] sm:$0xff]
      %v239 = vld [vmem:[%s1 + $0x68] sm:$0xff]
      %v240 = vld [vmem:[%s1 + $0x70] sm:$0xff]
      %v241 = vld [vmem:[%s1 + $0x78] sm:$0xff]
      %v242 = vld [vmem:[%s1 + $0x80] sm:$0xff]
      %v243 = vld [vmem:[%s1 + $0x88] sm:$0xff]
      %v244 = vld [vmem:[%s1 + $0x90] sm:$0xff]
      %v245 = vld [vmem:[%s1 + $0x98] sm:$0xff]
      %v246 = vld [vmem:[%s1 + $0xa0] sm:$0xff]
      %v247 = vld [vmem:[%s1 + $0xa8] sm:$0xff]
      %v248 = vld [vmem:[%s1 + $0xb0] sm:$0xff]
      %v249 = vld [vmem:[%s1 + $0xb8] sm:$0xff]
      %v250 = vld [vmem:[%s1 + $0xc0] sm:$0xff]
      %v251 = vld [vmem:[%s1 + $0xc8] sm:$0xff]
      %v252 = vld [vmem:[%s1 + $0xd0] sm:$0xff]
      %v253 = vld [vmem:[%s1 + $0xd8] sm:$0xff]
      %v254 = vld [vmem:[%s1 + $0xe0] sm:$0xff]
      %v255 = vld [vmem:[%s1 + $0xe8] sm:$0xff]
      %v256 = vld [vmem:[%s1 + $0xf0] sm:$0xff]
      %v257 = vld [vmem:[%s1 + $0xf8] sm:$0xff]
      %v258 = vld [vmem:[%s1 + $0x100] sm:$0xff]
      %v259 = vld [vmem:[%s1 + $0x108] sm:$0xff]
      %v260 = vld [vmem:[%s1 + $0x110] sm:$0xff]
      %v261 = vld [vmem:[%s1 + $0x118] sm:$0xff]
      loop: start=0, step=1, limit=65
      $region37: #{_device_forward.7} parent=35 // loop_pre_header
        _
      $region38: #{_device_forward.7} parent=35 // loop_header
        %s263 = sphi 0, %s267
        %p264 = scmp.ge.s32.totalorder %s263, 65
      $region39: #{_device_forward.7} parent=35 // loop_header_branch
        %266 = sbr.rel (%p264) target = $region43
      $region40: #{_device_forward.7} parent=35 // loop_body
        %s268 = sadd.s32 %s223, %s263
        %s269 = smul.u32 %s268, 136
        %s270 = scalar_lea.vmem %s211, %s269
        %v271 = vld [vmem:[%s270] sm:$0xff]
        %v272 = vld [vmem:[%s270 + $0x8] sm:$0xff]
        %v273 = vld [vmem:[%s270 + $0x10] sm:$0xff]
        %v274 = vld [vmem:[%s270 + $0x18] sm:$0xff]
        %v275 = vld [vmem:[%s270 + $0x20] sm:$0xff]
        %v276 = vld [vmem:[%s270 + $0x28] sm:$0xff]
        %v277 = vld [vmem:[%s270 + $0x30] sm:$0xff]
        %v278 = vld [vmem:[%s270 + $0x38] sm:$0xff]
        %v279 = vld [vmem:[%s270 + $0x40] sm:$0xff]
        %v280 = vld [vmem:[%s270 + $0x48] sm:$0xff]
        %v281 = vld [vmem:[%s270 + $0x50] sm:$0xff]
        %v282 = vld [vmem:[%s270 + $0x58] sm:$0xff]
        %v283 = vld [vmem:[%s270 + $0x60] sm:$0xff]
        %v284 = vld [vmem:[%s270 + $0x68] sm:$0xff]
        %v285 = vld [vmem:[%s270 + $0x70] sm:$0xff]
        %v286 = vld [vmem:[%s270 + $0x78] sm:$0xff]
        %v287 = vld [vmem:[%s270 + $0x80] sm:$0xf]
        %vm305 = vcmask 1046528
        %v306 = vrot.slane %v271, 1
        %v307 = vrot.slane %v272, 1
        %v308 = vsel %vm305, %v306, %v307
        %v309 = vrot.slane %v273, 1
        %v310 = vsel %vm305, %v307, %v309
        %v311 = vrot.slane %v274, 1
        %v312 = vsel %vm305, %v309, %v311
        %v313 = vrot.slane %v275, 1
        %v314 = vsel %vm305, %v311, %v313
        %v315 = vrot.slane %v276, 1
        %v316 = vsel %vm305, %v313, %v315
        %v317 = vrot.slane %v277, 1
        %v318 = vsel %vm305, %v315, %v317
        %v319 = vrot.slane %v278, 1
        %v320 = vsel %vm305, %v317, %v319
        %v321 = vrot.slane %v279, 1
        %v322 = vsel %vm305, %v319, %v321
        %v323 = vrot.slane %v280, 1
        %v324 = vsel %vm305, %v321, %v323
        %v325 = vrot.slane %v281, 1
        %v326 = vsel %vm305, %v323, %v325
        %v327 = vrot.slane %v282, 1
        %v328 = vsel %vm305, %v325, %v327
        %v329 = vrot.slane %v283, 1
        %v330 = vsel %vm305, %v327, %v329
        %v331 = vrot.slane %v284, 1
        %v332 = vsel %vm305, %v329, %v331
        %v333 = vrot.slane %v285, 1
        %v334 = vsel %vm305, %v331, %v333
        %v335 = vrot.slane %v286, 1
        %v336 = vsel %vm305, %v333, %v335
        %v337 = vrot.slane %v287, 1
        %v338 = vsel %vm305, %v335, %v337
        %339 = vrot.lane.b32.xlu0 %v308, 32
        %v340 = vpop.permute.xlu0 %339
        %341 = vrot.lane.b32.xlu0 %v310, 32
        %v342 = vpop.permute.xlu0 %341
        %343 = vrot.lane.b32.xlu0 %v312, 32
        %v344 = vpop.permute.xlu0 %343
        %345 = vrot.lane.b32.xlu0 %v314, 32
        %v346 = vpop.permute.xlu0 %345
        %347 = vrot.lane.b32.xlu0 %v316, 32
        %v348 = vpop.permute.xlu0 %347
        %349 = vrot.lane.b32.xlu0 %v318, 32
        %v350 = vpop.permute.xlu0 %349
        %351 = vrot.lane.b32.xlu0 %v320, 32
        %v352 = vpop.permute.xlu0 %351
        %353 = vrot.lane.b32.xlu0 %v322, 32
        %v354 = vpop.permute.xlu0 %353
        %355 = vrot.lane.b32.xlu0 %v324, 32
        %v356 = vpop.permute.xlu0 %355
        %357 = vrot.lane.b32.xlu0 %v326, 32
        %v358 = vpop.permute.xlu0 %357
        %359 = vrot.lane.b32.xlu0 %v328, 32
        %v360 = vpop.permute.xlu0 %359
        %361 = vrot.lane.b32.xlu0 %v330, 32
        %v362 = vpop.permute.xlu0 %361
        %363 = vrot.lane.b32.xlu0 %v332, 32
        %v364 = vpop.permute.xlu0 %363
        %365 = vrot.lane.b32.xlu0 %v334, 32
        %v366 = vpop.permute.xlu0 %365
        %367 = vrot.lane.b32.xlu0 %v336, 32
        %v368 = vpop.permute.xlu0 %367
        %369 = vrot.lane.b32.xlu0 %v338, 32
        %v370 = vpop.permute.xlu0 %369
        %371 = vrot.lane.b32.xlu0 %v337, 32
        %v372 = vpop.permute.xlu0 %371
        %vm390 = vcmask 1045504
        %v391 = vrot.slane %v271, 2
        %v392 = vrot.slane %v272, 2
        %v393 = vsel %vm390, %v391, %v392
        %v394 = vrot.slane %v273, 2
        %v395 = vsel %vm390, %v392, %v394
        %v396 = vrot.slane %v274, 2
        %v397 = vsel %vm390, %v394, %v396
        %v398 = vrot.slane %v275, 2
        %v399 = vsel %vm390, %v396, %v398
        %v400 = vrot.slane %v276, 2
        %v401 = vsel %vm390, %v398, %v400
        %v402 = vrot.slane %v277, 2
        %v403 = vsel %vm390, %v400, %v402
        %v404 = vrot.slane %v278, 2
        %v405 = vsel %vm390, %v402, %v404
        %v406 = vrot.slane %v279, 2
        %v407 = vsel %vm390, %v404, %v406
        %v408 = vrot.slane %v280, 2
        %v409 = vsel %vm390, %v406, %v408
        %v410 = vrot.slane %v281, 2
        %v411 = vsel %vm390, %v408, %v410
        %v412 = vrot.slane %v282, 2
        %v413 = vsel %vm390, %v410, %v412
        %v414 = vrot.slane %v283, 2
        %v415 = vsel %vm390, %v412, %v414
        %v416 = vrot.slane %v284, 2
        %v417 = vsel %vm390, %v414, %v416
        %v418 = vrot.slane %v285, 2
        %v419 = vsel %vm390, %v416, %v418
        %v420 = vrot.slane %v286, 2
        %v421 = vsel %vm390, %v418, %v420
        %v422 = vrot.slane %v287, 2
        %v423 = vsel %vm390, %v420, %v422
        %424 = vrot.lane.b32.xlu0 %v393, 64
        %v425 = vpop.permute.xlu0 %424
        %426 = vrot.lane.b32.xlu0 %v395, 64
        %v427 = vpop.permute.xlu0 %426
        %428 = vrot.lane.b32.xlu0 %v397, 64
        %v429 = vpop.permute.xlu0 %428
        %430 = vrot.lane.b32.xlu0 %v399, 64
        %v431 = vpop.permute.xlu0 %430
        %432 = vrot.lane.b32.xlu0 %v401, 64
        %v433 = vpop.permute.xlu0 %432
        %434 = vrot.lane.b32.xlu0 %v403, 64
        %v435 = vpop.permute.xlu0 %434
        %436 = vrot.lane.b32.xlu0 %v405, 64
        %v437 = vpop.permute.xlu0 %436
        %438 = vrot.lane.b32.xlu0 %v407, 64
        %v439 = vpop.permute.xlu0 %438
        %440 = vrot.lane.b32.xlu0 %v409, 64
        %v441 = vpop.permute.xlu0 %440
        %442 = vrot.lane.b32.xlu0 %v411, 64
        %v443 = vpop.permute.xlu0 %442
        %444 = vrot.lane.b32.xlu0 %v413, 64
        %v445 = vpop.permute.xlu0 %444
        %446 = vrot.lane.b32.xlu0 %v415, 64
        %v447 = vpop.permute.xlu0 %446
        %448 = vrot.lane.b32.xlu0 %v417, 64
        %v449 = vpop.permute.xlu0 %448
        %450 = vrot.lane.b32.xlu0 %v419, 64
        %v451 = vpop.permute.xlu0 %450
        %452 = vrot.lane.b32.xlu0 %v421, 64
        %v453 = vpop.permute.xlu0 %452
        %454 = vrot.lane.b32.xlu0 %v423, 64
        %v455 = vpop.permute.xlu0 %454
        %456 = vrot.lane.b32.xlu0 %v422, 64
        %v457 = vpop.permute.xlu0 %456
        %vm475 = vcmask 261120
        %v476 = vsel %vm475, %v271, %v340
        %v477 = vsel %vm475, %v272, %v342
        %v478 = vsel %vm475, %v273, %v344
        %v479 = vsel %vm475, %v274, %v346
        %v480 = vsel %vm475, %v275, %v348
        %v481 = vsel %vm475, %v276, %v350
        %v482 = vsel %vm475, %v277, %v352
        %v483 = vsel %vm475, %v278, %v354
        %v484 = vsel %vm475, %v279, %v356
        %v485 = vsel %vm475, %v280, %v358
        %v486 = vsel %vm475, %v281, %v360
        %v487 = vsel %vm475, %v282, %v362
        %v488 = vsel %vm475, %v283, %v364
        %v489 = vsel %vm475, %v284, %v366
        %v490 = vsel %vm475, %v285, %v368
        %v491 = vsel %vm475, %v286, %v370
        %v492 = vsel %vm475, %v287, %v372
        %vm493 = vcmask 523264
        %v494 = vsel %vm493, %v476, %v425
        %v495 = vsel %vm493, %v477, %v427
        %v496 = vsel %vm493, %v478, %v429
        %v497 = vsel %vm493, %v479, %v431
        %v498 = vsel %vm493, %v480, %v433
        %v499 = vsel %vm493, %v481, %v435
        %v500 = vsel %vm493, %v482, %v437
        %v501 = vsel %vm493, %v483, %v439
        %v502 = vsel %vm493, %v484, %v441
        %v503 = vsel %vm493, %v485, %v443
        %v504 = vsel %vm493, %v486, %v445
        %v505 = vsel %vm493, %v487, %v447
        %v506 = vsel %vm493, %v488, %v449
        %v507 = vsel %vm493, %v489, %v451
        %v508 = vsel %vm493, %v490, %v453
        %v509 = vsel %vm493, %v491, %v455
        %v510 = vsel %vm493, %v492, %v457
        %s511 = sadd.s32 %s268, 1
        %s512 = smul.u32 %s511, 136
        %s513 = scalar_lea.vmem %s211, %s512
        %v514 = vld [vmem:[%s513] sm:$0xff]
        %v515 = vld [vmem:[%s513 + $0x8] sm:$0xff]
        %v516 = vld [vmem:[%s513 + $0x10] sm:$0xff]
        %v517 = vld [vmem:[%s513 + $0x18] sm:$0xff]
        %v518 = vld [vmem:[%s513 + $0x20] sm:$0xff]
        %v519 = vld [vmem:[%s513 + $0x28] sm:$0xff]
        %v520 = vld [vmem:[%s513 + $0x30] sm:$0xff]
        %v521 = vld [vmem:[%s513 + $0x38] sm:$0xff]
        %v522 = vld [vmem:[%s513 + $0x40] sm:$0xff]
        %v523 = vld [vmem:[%s513 + $0x48] sm:$0xff]
        %v524 = vld [vmem:[%s513 + $0x50] sm:$0xff]
        %v525 = vld [vmem:[%s513 + $0x58] sm:$0xff]
        %v526 = vld [vmem:[%s513 + $0x60] sm:$0xff]
        %v527 = vld [vmem:[%s513 + $0x68] sm:$0xff]
        %v528 = vld [vmem:[%s513 + $0x70] sm:$0xff]
        %v529 = vld [vmem:[%s513 + $0x78] sm:$0xff]
        %v530 = vld [vmem:[%s513 + $0x80] sm:$0xf]
        %v548 = vrot.slane %v514, 1
        %v549 = vrot.slane %v515, 1
        %v550 = vsel %vm305, %v548, %v549
        %v551 = vrot.slane %v516, 1
        %v552 = vsel %vm305, %v549, %v551
        %v553 = vrot.slane %v517, 1
        %v554 = vsel %vm305, %v551, %v553
        %v555 = vrot.slane %v518, 1
        %v556 = vsel %vm305, %v553, %v555
        %v557 = vrot.slane %v519, 1
        %v558 = vsel %vm305, %v555, %v557
        %v559 = vrot.slane %v520, 1
        %v560 = vsel %vm305, %v557, %v559
        %v561 = vrot.slane %v521, 1
        %v562 = vsel %vm305, %v559, %v561
        %v563 = vrot.slane %v522, 1
        %v564 = vsel %vm305, %v561, %v563
        %v565 = vrot.slane %v523, 1
        %v566 = vsel %vm305, %v563, %v565
        %v567 = vrot.slane %v524, 1
        %v568 = vsel %vm305, %v565, %v567
        %v569 = vrot.slane %v525, 1
        %v570 = vsel %vm305, %v567, %v569
        %v571 = vrot.slane %v526, 1
        %v572 = vsel %vm305, %v569, %v571
        %v573 = vrot.slane %v527, 1
        %v574 = vsel %vm305, %v571, %v573
        %v575 = vrot.slane %v528, 1
        %v576 = vsel %vm305, %v573, %v575
        %v577 = vrot.slane %v529, 1
        %v578 = vsel %vm305, %v575, %v577
        %v579 = vrot.slane %v530, 1
        %v580 = vsel %vm305, %v577, %v579
        %581 = vrot.lane.b32.xlu0 %v550, 32
        %v582 = vpop.permute.xlu0 %581
        %583 = vrot.lane.b32.xlu0 %v552, 32
        %v584 = vpop.permute.xlu0 %583
        %585 = vrot.lane.b32.xlu0 %v554, 32
        %v586 = vpop.permute.xlu0 %585
        %587 = vrot.lane.b32.xlu0 %v556, 32
        %v588 = vpop.permute.xlu0 %587
        %589 = vrot.lane.b32.xlu0 %v558, 32
        %v590 = vpop.permute.xlu0 %589
        %591 = vrot.lane.b32.xlu0 %v560, 32
        %v592 = vpop.permute.xlu0 %591
        %593 = vrot.lane.b32.xlu0 %v562, 32
        %v594 = vpop.permute.xlu0 %593
        %595 = vrot.lane.b32.xlu0 %v564, 32
        %v596 = vpop.permute.xlu0 %595
        %597 = vrot.lane.b32.xlu0 %v566, 32
        %v598 = vpop.permute.xlu0 %597
        %599 = vrot.lane.b32.xlu0 %v568, 32
        %v600 = vpop.permute.xlu0 %599
        %601 = vrot.lane.b32.xlu0 %v570, 32
        %v602 = vpop.permute.xlu0 %601
        %603 = vrot.lane.b32.xlu0 %v572, 32
        %v604 = vpop.permute.xlu0 %603
        %605 = vrot.lane.b32.xlu0 %v574, 32
        %v606 = vpop.permute.xlu0 %605
        %607 = vrot.lane.b32.xlu0 %v576, 32
        %v608 = vpop.permute.xlu0 %607
        %609 = vrot.lane.b32.xlu0 %v578, 32
        %v610 = vpop.permute.xlu0 %609
        %611 = vrot.lane.b32.xlu0 %v580, 32
        %v612 = vpop.permute.xlu0 %611
        %613 = vrot.lane.b32.xlu0 %v579, 32
        %v614 = vpop.permute.xlu0 %613
        %v632 = vrot.slane %v514, 2
        %v633 = vrot.slane %v515, 2
        %v634 = vsel %vm390, %v632, %v633
        %v635 = vrot.slane %v516, 2
        %v636 = vsel %vm390, %v633, %v635
        %v637 = vrot.slane %v517, 2
        %v638 = vsel %vm390, %v635, %v637
        %v639 = vrot.slane %v518, 2
        %v640 = vsel %vm390, %v637, %v639
        %v641 = vrot.slane %v519, 2
        %v642 = vsel %vm390, %v639, %v641
        %v643 = vrot.slane %v520, 2
        %v644 = vsel %vm390, %v641, %v643
        %v645 = vrot.slane %v521, 2
        %v646 = vsel %vm390, %v643, %v645
        %v647 = vrot.slane %v522, 2
        %v648 = vsel %vm390, %v645, %v647
        %v649 = vrot.slane %v523, 2
        %v650 = vsel %vm390, %v647, %v649
        %v651 = vrot.slane %v524, 2
        %v652 = vsel %vm390, %v649, %v651
        %v653 = vrot.slane %v525, 2
        %v654 = vsel %vm390, %v651, %v653
        %v655 = vrot.slane %v526, 2
        %v656 = vsel %vm390, %v653, %v655
        %v657 = vrot.slane %v527, 2
        %v658 = vsel %vm390, %v655, %v657
        %v659 = vrot.slane %v528, 2
        %v660 = vsel %vm390, %v657, %v659
        %v661 = vrot.slane %v529, 2
        %v662 = vsel %vm390, %v659, %v661
        %v663 = vrot.slane %v530, 2
        %v664 = vsel %vm390, %v661, %v663
        %665 = vrot.lane.b32.xlu0 %v634, 64
        %v666 = vpop.permute.xlu0 %665
        %667 = vrot.lane.b32.xlu0 %v636, 64
        %v668 = vpop.permute.xlu0 %667
        %669 = vrot.lane.b32.xlu0 %v638, 64
        %v670 = vpop.permute.xlu0 %669
        %671 = vrot.lane.b32.xlu0 %v640, 64
        %v672 = vpop.permute.xlu0 %671
        %673 = vrot.lane.b32.xlu0 %v642, 64
        %v674 = vpop.permute.xlu0 %673
        %675 = vrot.lane.b32.xlu0 %v644, 64
        %v676 = vpop.permute.xlu0 %675
        %677 = vrot.lane.b32.xlu0 %v646, 64
        %v678 = vpop.permute.xlu0 %677
        %679 = vrot.lane.b32.xlu0 %v648, 64
        %v680 = vpop.permute.xlu0 %679
        %681 = vrot.lane.b32.xlu0 %v650, 64
        %v682 = vpop.permute.xlu0 %681
        %683 = vrot.lane.b32.xlu0 %v652, 64
        %v684 = vpop.permute.xlu0 %683
        %685 = vrot.lane.b32.xlu0 %v654, 64
        %v686 = vpop.permute.xlu0 %685
        %687 = vrot.lane.b32.xlu0 %v656, 64
        %v688 = vpop.permute.xlu0 %687
        %689 = vrot.lane.b32.xlu0 %v658, 64
        %v690 = vpop.permute.xlu0 %689
        %691 = vrot.lane.b32.xlu0 %v660, 64
        %v692 = vpop.permute.xlu0 %691
        %693 = vrot.lane.b32.xlu0 %v662, 64
        %v694 = vpop.permute.xlu0 %693
        %695 = vrot.lane.b32.xlu0 %v664, 64
        %v696 = vpop.permute.xlu0 %695
        %697 = vrot.lane.b32.xlu0 %v663, 64
        %v698 = vpop.permute.xlu0 %697
        %v716 = vsel %vm475, %v514, %v582
        %v717 = vsel %vm475, %v515, %v584
        %v718 = vsel %vm475, %v516, %v586
        %v719 = vsel %vm475, %v517, %v588
        %v720 = vsel %vm475, %v518, %v590
        %v721 = vsel %vm475, %v519, %v592
        %v722 = vsel %vm475, %v520, %v594
        %v723 = vsel %vm475, %v521, %v596
        %v724 = vsel %vm475, %v522, %v598
        %v725 = vsel %vm475, %v523, %v600
        %v726 = vsel %vm475, %v524, %v602
        %v727 = vsel %vm475, %v525, %v604
        %v728 = vsel %vm475, %v526, %v606
        %v729 = vsel %vm475, %v527, %v608
        %v730 = vsel %vm475, %v528, %v610
        %v731 = vsel %vm475, %v529, %v612
        %v732 = vsel %vm475, %v530, %v614
        %v733 = vsel %vm493, %v716, %v666
        %v734 = vsel %vm493, %v717, %v668
        %v735 = vsel %vm493, %v718, %v670
        %v736 = vsel %vm493, %v719, %v672
        %v737 = vsel %vm493, %v720, %v674
        %v738 = vsel %vm493, %v721, %v676
        %v739 = vsel %vm493, %v722, %v678
        %v740 = vsel %vm493, %v723, %v680
        %v741 = vsel %vm493, %v724, %v682
        %v742 = vsel %vm493, %v725, %v684
        %v743 = vsel %vm493, %v726, %v686
        %v744 = vsel %vm493, %v727, %v688
        %v745 = vsel %vm493, %v728, %v690
        %v746 = vsel %vm493, %v729, %v692
        %v747 = vsel %vm493, %v730, %v694
        %v748 = vsel %vm493, %v731, %v696
        %v749 = vsel %vm493, %v732, %v698
        %vm750 = vcmask 785408
        %v752 = vsel %vm750, %v733, 0
        %v755 = vsel %vm750, %v734, 0
        %v758 = vsel %vm750, %v735, 0
        %v761 = vsel %vm750, %v736, 0
        %v764 = vsel %vm750, %v737, 0
        %v767 = vsel %vm750, %v738, 0
        %v770 = vsel %vm750, %v739, 0
        %v773 = vsel %vm750, %v740, 0
        %v776 = vsel %vm750, %v741, 0
        %v779 = vsel %vm750, %v742, 0
        %v782 = vsel %vm750, %v743, 0
        %v785 = vsel %vm750, %v744, 0
        %v788 = vsel %vm750, %v745, 0
        %v791 = vsel %vm750, %v746, 0
        %v794 = vsel %vm750, %v747, 0
        %v797 = vsel %vm750, %v748, 0
        %v800 = vsel %vm750, %v749, 0
        %802 = vmatpush.msra.mxu0 0.0
        %803 = vmatpush.msra.mxu0 0.0
        %804 = vmatpush.msra.mxu0 0.0
        %805 = vmatpush.msra.mxu0 0.0
        %806 = vmatpush.msra.mxu0 %v249
        %807 = vmatpush.msra.mxu0 %v248
        %808 = vmatpush.msra.mxu0 %v247
        %809 = vmatpush.msra.mxu0 %v246
        %810 = vmatpush.msra.mxu0 %v245
        %811 = vmatpush.msra.mxu0 %v244
        %812 = vmatpush.msra.mxu0 %v243
        %813 = vmatpush.msra.mxu0 %v242
        %814 = vmatpush.msra.mxu0 %v241
        %815 = vmatpush.msra.mxu0 %v240
        %816 = vmatpush.msra.mxu0 %v239
        %817 = vmatpush.msra.mxu0 %v238
        %818 = vmatmul.f32.gmra.mxu0 %v752
        %v819 = vpop.f32.mrf.mxu0
        %v820 = vadd.f32 0.0, %v819
        %821 = vmatmul.f32.gmra.mxu0 %v755
        %v822 = vpop.f32.mrf.mxu0
        %v823 = vadd.f32 0.0, %v822
        %824 = vmatmul.f32.gmra.mxu0 %v758
        %v825 = vpop.f32.mrf.mxu0
        %v826 = vadd.f32 0.0, %v825
        %827 = vmatmul.f32.gmra.mxu0 %v761
        %v828 = vpop.f32.mrf.mxu0
        %v829 = vadd.f32 0.0, %v828
        %830 = vmatmul.f32.gmra.mxu0 %v764
        %v831 = vpop.f32.mrf.mxu0
        %v832 = vadd.f32 0.0, %v831
        %833 = vmatmul.f32.gmra.mxu0 %v767
        %v834 = vpop.f32.mrf.mxu0
        %v835 = vadd.f32 0.0, %v834
        %836 = vmatmul.f32.gmra.mxu0 %v770
        %v837 = vpop.f32.mrf.mxu0
        %v838 = vadd.f32 0.0, %v837
        %839 = vmatmul.f32.gmra.mxu0 %v773
        %v840 = vpop.f32.mrf.mxu0
        %v841 = vadd.f32 0.0, %v840
        %842 = vmatmul.f32.gmra.mxu0 %v776
        %v843 = vpop.f32.mrf.mxu0
        %v844 = vadd.f32 0.0, %v843
        %845 = vmatmul.f32.gmra.mxu0 %v779
        %v846 = vpop.f32.mrf.mxu0
        %v847 = vadd.f32 0.0, %v846
        %848 = vmatmul.f32.gmra.mxu0 %v782
        %v849 = vpop.f32.mrf.mxu0
        %v850 = vadd.f32 0.0, %v849
        %851 = vmatmul.f32.gmra.mxu0 %v785
        %v852 = vpop.f32.mrf.mxu0
        %v853 = vadd.f32 0.0, %v852
        %854 = vmatmul.f32.gmra.mxu0 %v788
        %v855 = vpop.f32.mrf.mxu0
        %v856 = vadd.f32 0.0, %v855
        %857 = vmatmul.f32.gmra.mxu0 %v791
        %v858 = vpop.f32.mrf.mxu0
        %v859 = vadd.f32 0.0, %v858
        %860 = vmatmul.f32.gmra.mxu0 %v794
        %v861 = vpop.f32.mrf.mxu0
        %v862 = vadd.f32 0.0, %v861
        %863 = vmatmul.f32.gmra.mxu0 %v797
        %v864 = vpop.f32.mrf.mxu0
        %v865 = vadd.f32 0.0, %v864
        %866 = vmatmul.f32.gmra.mxu0 %v800
        %v867 = vpop.f32.mrf.mxu0
        %v868 = vadd.f32 0.0, %v867
        %869 = vdwg.mxu0
        %v871 = vsel %vm750, %v494, 0
        %v874 = vsel %vm750, %v495, 0
        %v877 = vsel %vm750, %v496, 0
        %v880 = vsel %vm750, %v497, 0
        %v883 = vsel %vm750, %v498, 0
        %v886 = vsel %vm750, %v499, 0
        %v889 = vsel %vm750, %v500, 0
        %v892 = vsel %vm750, %v501, 0
        %v895 = vsel %vm750, %v502, 0
        %v898 = vsel %vm750, %v503, 0
        %v901 = vsel %vm750, %v504, 0
        %v904 = vsel %vm750, %v505, 0
        %v907 = vsel %vm750, %v506, 0
        %v910 = vsel %vm750, %v507, 0
        %v913 = vsel %vm750, %v508, 0
        %v916 = vsel %vm750, %v509, 0
        %v919 = vsel %vm750, %v510, 0
        %921 = vmatpush.msra.mxu0 0.0
        %922 = vmatpush.msra.mxu0 0.0
        %923 = vmatpush.msra.mxu0 0.0
        %924 = vmatpush.msra.mxu0 0.0
        %925 = vmatpush.msra.mxu0 %v237
        %926 = vmatpush.msra.mxu0 %v236
        %927 = vmatpush.msra.mxu0 %v235
        %928 = vmatpush.msra.mxu0 %v234
        %929 = vmatpush.msra.mxu0 %v233
        %930 = vmatpush.msra.mxu0 %v232
        %931 = vmatpush.msra.mxu0 %v231
        %932 = vmatpush.msra.mxu0 %v230
        %933 = vmatpush.msra.mxu0 %v229
        %934 = vmatpush.msra.mxu0 %v228
        %935 = vmatpush.msra.mxu0 %v227
        %936 = vmatpush.msra.mxu0 %v226
        %937 = vmatmul.f32.gmra.mxu0 %v871
        %v938 = vpop.f32.mrf.mxu0
        %v939 = vadd.f32 %v820, %v938
        %940 = vmatmul.f32.gmra.mxu0 %v874
        %v941 = vpop.f32.mrf.mxu0
        %v942 = vadd.f32 %v823, %v941
        %943 = vmatmul.f32.gmra.mxu0 %v877
        %v944 = vpop.f32.mrf.mxu0
        %v945 = vadd.f32 %v826, %v944
        %946 = vmatmul.f32.gmra.mxu0 %v880
        %v947 = vpop.f32.mrf.mxu0
        %v948 = vadd.f32 %v829, %v947
        %949 = vmatmul.f32.gmra.mxu0 %v883
        %v950 = vpop.f32.mrf.mxu0
        %v951 = vadd.f32 %v832, %v950
        %952 = vmatmul.f32.gmra.mxu0 %v886
        %v953 = vpop.f32.mrf.mxu0
        %v954 = vadd.f32 %v835, %v953
        %955 = vmatmul.f32.gmra.mxu0 %v889
        %v956 = vpop.f32.mrf.mxu0
        %v957 = vadd.f32 %v838, %v956
        %958 = vmatmul.f32.gmra.mxu0 %v892
        %v959 = vpop.f32.mrf.mxu0
        %v960 = vadd.f32 %v841, %v959
        %961 = vmatmul.f32.gmra.mxu0 %v895
        %v962 = vpop.f32.mrf.mxu0
        %v963 = vadd.f32 %v844, %v962
        %964 = vmatmul.f32.gmra.mxu0 %v898
        %v965 = vpop.f32.mrf.mxu0
        %v966 = vadd.f32 %v847, %v965
        %967 = vmatmul.f32.gmra.mxu0 %v901
        %v968 = vpop.f32.mrf.mxu0
        %v969 = vadd.f32 %v850, %v968
        %970 = vmatmul.f32.gmra.mxu0 %v904
        %v971 = vpop.f32.mrf.mxu0
        %v972 = vadd.f32 %v853, %v971
        %973 = vmatmul.f32.gmra.mxu0 %v907
        %v974 = vpop.f32.mrf.mxu0
        %v975 = vadd.f32 %v856, %v974
        %976 = vmatmul.f32.gmra.mxu0 %v910
        %v977 = vpop.f32.mrf.mxu0
        %v978 = vadd.f32 %v859, %v977
        %979 = vmatmul.f32.gmra.mxu0 %v913
        %v980 = vpop.f32.mrf.mxu0
        %v981 = vadd.f32 %v862, %v980
        %982 = vmatmul.f32.gmra.mxu0 %v916
        %v983 = vpop.f32.mrf.mxu0
        %v984 = vadd.f32 %v865, %v983
        %985 = vmatmul.f32.gmra.mxu0 %v919
        %v986 = vpop.f32.mrf.mxu0
        %v987 = vadd.f32 %v868, %v986
        %988 = vdwg.mxu0
        %s989 = sadd.s32 %s268, 2
        %s990 = smul.u32 %s989, 136
        %s991 = scalar_lea.vmem %s211, %s990
        %v992 = vld [vmem:[%s991] sm:$0xff]
        %v993 = vld [vmem:[%s991 + $0x8] sm:$0xff]
        %v994 = vld [vmem:[%s991 + $0x10] sm:$0xff]
        %v995 = vld [vmem:[%s991 + $0x18] sm:$0xff]
        %v996 = vld [vmem:[%s991 + $0x20] sm:$0xff]
        %v997 = vld [vmem:[%s991 + $0x28] sm:$0xff]
        %v998 = vld [vmem:[%s991 + $0x30] sm:$0xff]
        %v999 = vld [vmem:[%s991 + $0x38] sm:$0xff]
        %v1000 = vld [vmem:[%s991 + $0x40] sm:$0xff]
        %v1001 = vld [vmem:[%s991 + $0x48] sm:$0xff]
        %v1002 = vld [vmem:[%s991 + $0x50] sm:$0xff]
        %v1003 = vld [vmem:[%s991 + $0x58] sm:$0xff]
        %v1004 = vld [vmem:[%s991 + $0x60] sm:$0xff]
        %v1005 = vld [vmem:[%s991 + $0x68] sm:$0xff]
        %v1006 = vld [vmem:[%s991 + $0x70] sm:$0xff]
        %v1007 = vld [vmem:[%s991 + $0x78] sm:$0xff]
        %v1008 = vld [vmem:[%s991 + $0x80] sm:$0xf]
        %v1026 = vrot.slane %v992, 1
        %v1027 = vrot.slane %v993, 1
        %v1028 = vsel %vm305, %v1026, %v1027
        %v1029 = vrot.slane %v994, 1
        %v1030 = vsel %vm305, %v1027, %v1029
        %v1031 = vrot.slane %v995, 1
        %v1032 = vsel %vm305, %v1029, %v1031
        %v1033 = vrot.slane %v996, 1
        %v1034 = vsel %vm305, %v1031, %v1033
        %v1035 = vrot.slane %v997, 1
        %v1036 = vsel %vm305, %v1033, %v1035
        %v1037 = vrot.slane %v998, 1
        %v1038 = vsel %vm305, %v1035, %v1037
        %v1039 = vrot.slane %v999, 1
        %v1040 = vsel %vm305, %v1037, %v1039
        %v1041 = vrot.slane %v1000, 1
        %v1042 = vsel %vm305, %v1039, %v1041
        %v1043 = vrot.slane %v1001, 1
        %v1044 = vsel %vm305, %v1041, %v1043
        %v1045 = vrot.slane %v1002, 1
        %v1046 = vsel %vm305, %v1043, %v1045
        %v1047 = vrot.slane %v1003, 1
        %v1048 = vsel %vm305, %v1045, %v1047
        %v1049 = vrot.slane %v1004, 1
        %v1050 = vsel %vm305, %v1047, %v1049
        %v1051 = vrot.slane %v1005, 1
        %v1052 = vsel %vm305, %v1049, %v1051
        %v1053 = vrot.slane %v1006, 1
        %v1054 = vsel %vm305, %v1051, %v1053
        %v1055 = vrot.slane %v1007, 1
        %v1056 = vsel %vm305, %v1053, %v1055
        %v1057 = vrot.slane %v1008, 1
        %v1058 = vsel %vm305, %v1055, %v1057
        %1059 = vrot.lane.b32.xlu0 %v1028, 32
        %v1060 = vpop.permute.xlu0 %1059
        %1061 = vrot.lane.b32.xlu0 %v1030, 32
        %v1062 = vpop.permute.xlu0 %1061
        %1063 = vrot.lane.b32.xlu0 %v1032, 32
        %v1064 = vpop.permute.xlu0 %1063
        %1065 = vrot.lane.b32.xlu0 %v1034, 32
        %v1066 = vpop.permute.xlu0 %1065
        %1067 = vrot.lane.b32.xlu0 %v1036, 32
        %v1068 = vpop.permute.xlu0 %1067
        %1069 = vrot.lane.b32.xlu0 %v1038, 32
        %v1070 = vpop.permute.xlu0 %1069
        %1071 = vrot.lane.b32.xlu0 %v1040, 32
        %v1072 = vpop.permute.xlu0 %1071
        %1073 = vrot.lane.b32.xlu0 %v1042, 32
        %v1074 = vpop.permute.xlu0 %1073
        %1075 = vrot.lane.b32.xlu0 %v1044, 32
        %v1076 = vpop.permute.xlu0 %1075
        %1077 = vrot.lane.b32.xlu0 %v1046, 32
        %v1078 = vpop.permute.xlu0 %1077
        %1079 = vrot.lane.b32.xlu0 %v1048, 32
        %v1080 = vpop.permute.xlu0 %1079
        %1081 = vrot.lane.b32.xlu0 %v1050, 32
        %v1082 = vpop.permute.xlu0 %1081
        %1083 = vrot.lane.b32.xlu0 %v1052, 32
        %v1084 = vpop.permute.xlu0 %1083
        %1085 = vrot.lane.b32.xlu0 %v1054, 32
        %v1086 = vpop.permute.xlu0 %1085
        %1087 = vrot.lane.b32.xlu0 %v1056, 32
        %v1088 = vpop.permute.xlu0 %1087
        %1089 = vrot.lane.b32.xlu0 %v1058, 32
        %v1090 = vpop.permute.xlu0 %1089
        %1091 = vrot.lane.b32.xlu0 %v1057, 32
        %v1092 = vpop.permute.xlu0 %1091
        %v1110 = vrot.slane %v992, 2
        %v1111 = vrot.slane %v993, 2
        %v1112 = vsel %vm390, %v1110, %v1111
        %v1113 = vrot.slane %v994, 2
        %v1114 = vsel %vm390, %v1111, %v1113
        %v1115 = vrot.slane %v995, 2
        %v1116 = vsel %vm390, %v1113, %v1115
        %v1117 = vrot.slane %v996, 2
        %v1118 = vsel %vm390, %v1115, %v1117
        %v1119 = vrot.slane %v997, 2
        %v1120 = vsel %vm390, %v1117, %v1119
        %v1121 = vrot.slane %v998, 2
        %v1122 = vsel %vm390, %v1119, %v1121
        %v1123 = vrot.slane %v999, 2
        %v1124 = vsel %vm390, %v1121, %v1123
        %v1125 = vrot.slane %v1000, 2
        %v1126 = vsel %vm390, %v1123, %v1125
        %v1127 = vrot.slane %v1001, 2
        %v1128 = vsel %vm390, %v1125, %v1127
        %v1129 = vrot.slane %v1002, 2
        %v1130 = vsel %vm390, %v1127, %v1129
        %v1131 = vrot.slane %v1003, 2
        %v1132 = vsel %vm390, %v1129, %v1131
        %v1133 = vrot.slane %v1004, 2
        %v1134 = vsel %vm390, %v1131, %v1133
        %v1135 = vrot.slane %v1005, 2
        %v1136 = vsel %vm390, %v1133, %v1135
        %v1137 = vrot.slane %v1006, 2
        %v1138 = vsel %vm390, %v1135, %v1137
        %v1139 = vrot.slane %v1007, 2
        %v1140 = vsel %vm390, %v1137, %v1139
        %v1141 = vrot.slane %v1008, 2
        %v1142 = vsel %vm390, %v1139, %v1141
        %1143 = vrot.lane.b32.xlu0 %v1112, 64
        %v1144 = vpop.permute.xlu0 %1143
        %1145 = vrot.lane.b32.xlu0 %v1114, 64
        %v1146 = vpop.permute.xlu0 %1145
        %1147 = vrot.lane.b32.xlu0 %v1116, 64
        %v1148 = vpop.permute.xlu0 %1147
        %1149 = vrot.lane.b32.xlu0 %v1118, 64
        %v1150 = vpop.permute.xlu0 %1149
        %1151 = vrot.lane.b32.xlu0 %v1120, 64
        %v1152 = vpop.permute.xlu0 %1151
        %1153 = vrot.lane.b32.xlu0 %v1122, 64
        %v1154 = vpop.permute.xlu0 %1153
        %1155 = vrot.lane.b32.xlu0 %v1124, 64
        %v1156 = vpop.permute.xlu0 %1155
        %1157 = vrot.lane.b32.xlu0 %v1126, 64
        %v1158 = vpop.permute.xlu0 %1157
        %1159 = vrot.lane.b32.xlu0 %v1128, 64
        %v1160 = vpop.permute.xlu0 %1159
        %1161 = vrot.lane.b32.xlu0 %v1130, 64
        %v1162 = vpop.permute.xlu0 %1161
        %1163 = vrot.lane.b32.xlu0 %v1132, 64
        %v1164 = vpop.permute.xlu0 %1163
        %1165 = vrot.lane.b32.xlu0 %v1134, 64
        %v1166 = vpop.permute.xlu0 %1165
        %1167 = vrot.lane.b32.xlu0 %v1136, 64
        %v1168 = vpop.permute.xlu0 %1167
        %1169 = vrot.lane.b32.xlu0 %v1138, 64
        %v1170 = vpop.permute.xlu0 %1169
        %1171 = vrot.lane.b32.xlu0 %v1140, 64
        %v1172 = vpop.permute.xlu0 %1171
        %1173 = vrot.lane.b32.xlu0 %v1142, 64
        %v1174 = vpop.permute.xlu0 %1173
        %1175 = vrot.lane.b32.xlu0 %v1141, 64
        %v1176 = vpop.permute.xlu0 %1175
        %v1194 = vsel %vm475, %v992, %v1060
        %v1195 = vsel %vm475, %v993, %v1062
        %v1196 = vsel %vm475, %v994, %v1064
        %v1197 = vsel %vm475, %v995, %v1066
        %v1198 = vsel %vm475, %v996, %v1068
        %v1199 = vsel %vm475, %v997, %v1070
        %v1200 = vsel %vm475, %v998, %v1072
        %v1201 = vsel %vm475, %v999, %v1074
        %v1202 = vsel %vm475, %v1000, %v1076
        %v1203 = vsel %vm475, %v1001, %v1078
        %v1204 = vsel %vm475, %v1002, %v1080
        %v1205 = vsel %vm475, %v1003, %v1082
        %v1206 = vsel %vm475, %v1004, %v1084
        %v1207 = vsel %vm475, %v1005, %v1086
        %v1208 = vsel %vm475, %v1006, %v1088
        %v1209 = vsel %vm475, %v1007, %v1090
        %v1210 = vsel %vm475, %v1008, %v1092
        %v1211 = vsel %vm493, %v1194, %v1144
        %v1212 = vsel %vm493, %v1195, %v1146
        %v1213 = vsel %vm493, %v1196, %v1148
        %v1214 = vsel %vm493, %v1197, %v1150
        %v1215 = vsel %vm493, %v1198, %v1152
        %v1216 = vsel %vm493, %v1199, %v1154
        %v1217 = vsel %vm493, %v1200, %v1156
        %v1218 = vsel %vm493, %v1201, %v1158
        %v1219 = vsel %vm493, %v1202, %v1160
        %v1220 = vsel %vm493, %v1203, %v1162
        %v1221 = vsel %vm493, %v1204, %v1164
        %v1222 = vsel %vm493, %v1205, %v1166
        %v1223 = vsel %vm493, %v1206, %v1168
        %v1224 = vsel %vm493, %v1207, %v1170
        %v1225 = vsel %vm493, %v1208, %v1172
        %v1226 = vsel %vm493, %v1209, %v1174
        %v1227 = vsel %vm493, %v1210, %v1176
        %v1229 = vsel %vm750, %v1211, 0
        %v1232 = vsel %vm750, %v1212, 0
        %v1235 = vsel %vm750, %v1213, 0
        %v1238 = vsel %vm750, %v1214, 0
        %v1241 = vsel %vm750, %v1215, 0
        %v1244 = vsel %vm750, %v1216, 0
        %v1247 = vsel %vm750, %v1217, 0
        %v1250 = vsel %vm750, %v1218, 0
        %v1253 = vsel %vm750, %v1219, 0
        %v1256 = vsel %vm750, %v1220, 0
        %v1259 = vsel %vm750, %v1221, 0
        %v1262 = vsel %vm750, %v1222, 0
        %v1265 = vsel %vm750, %v1223, 0
        %v1268 = vsel %vm750, %v1224, 0
        %v1271 = vsel %vm750, %v1225, 0
        %v1274 = vsel %vm750, %v1226, 0
        %v1277 = vsel %vm750, %v1227, 0
        %1279 = vmatpush.msra.mxu0 0.0
        %1280 = vmatpush.msra.mxu0 0.0
        %1281 = vmatpush.msra.mxu0 0.0
        %1282 = vmatpush.msra.mxu0 0.0
        %1283 = vmatpush.msra.mxu0 %v261
        %1284 = vmatpush.msra.mxu0 %v260
        %1285 = vmatpush.msra.mxu0 %v259
        %1286 = vmatpush.msra.mxu0 %v258
        %1287 = vmatpush.msra.mxu0 %v257
        %1288 = vmatpush.msra.mxu0 %v256
        %1289 = vmatpush.msra.mxu0 %v255
        %1290 = vmatpush.msra.mxu0 %v254
        %1291 = vmatpush.msra.mxu0 %v253
        %1292 = vmatpush.msra.mxu0 %v252
        %1293 = vmatpush.msra.mxu0 %v251
        %1294 = vmatpush.msra.mxu0 %v250
        %1295 = vmatmul.f32.gmra.mxu0 %v1229
        %v1296 = vpop.f32.mrf.mxu0
        %v1297 = vadd.f32 0.0, %v1296
        %1298 = vmatmul.f32.gmra.mxu0 %v1232
        %v1299 = vpop.f32.mrf.mxu0
        %v1300 = vadd.f32 0.0, %v1299
        %1301 = vmatmul.f32.gmra.mxu0 %v1235
        %v1302 = vpop.f32.mrf.mxu0
        %v1303 = vadd.f32 0.0, %v1302
        %1304 = vmatmul.f32.gmra.mxu0 %v1238
        %v1305 = vpop.f32.mrf.mxu0
        %v1306 = vadd.f32 0.0, %v1305
        %1307 = vmatmul.f32.gmra.mxu0 %v1241
        %v1308 = vpop.f32.mrf.mxu0
        %v1309 = vadd.f32 0.0, %v1308
        %1310 = vmatmul.f32.gmra.mxu0 %v1244
        %v1311 = vpop.f32.mrf.mxu0
        %v1312 = vadd.f32 0.0, %v1311
        %1313 = vmatmul.f32.gmra.mxu0 %v1247
        %v1314 = vpop.f32.mrf.mxu0
        %v1315 = vadd.f32 0.0, %v1314
        %1316 = vmatmul.f32.gmra.mxu0 %v1250
        %v1317 = vpop.f32.mrf.mxu0
        %v1318 = vadd.f32 0.0, %v1317
        %1319 = vmatmul.f32.gmra.mxu0 %v1253
        %v1320 = vpop.f32.mrf.mxu0
        %v1321 = vadd.f32 0.0, %v1320
        %1322 = vmatmul.f32.gmra.mxu0 %v1256
        %v1323 = vpop.f32.mrf.mxu0
        %v1324 = vadd.f32 0.0, %v1323
        %1325 = vmatmul.f32.gmra.mxu0 %v1259
        %v1326 = vpop.f32.mrf.mxu0
        %v1327 = vadd.f32 0.0, %v1326
        %1328 = vmatmul.f32.gmra.mxu0 %v1262
        %v1329 = vpop.f32.mrf.mxu0
        %v1330 = vadd.f32 0.0, %v1329
        %1331 = vmatmul.f32.gmra.mxu0 %v1265
        %v1332 = vpop.f32.mrf.mxu0
        %v1333 = vadd.f32 0.0, %v1332
        %1334 = vmatmul.f32.gmra.mxu0 %v1268
        %v1335 = vpop.f32.mrf.mxu0
        %v1336 = vadd.f32 0.0, %v1335
        %1337 = vmatmul.f32.gmra.mxu0 %v1271
        %v1338 = vpop.f32.mrf.mxu0
        %v1339 = vadd.f32 0.0, %v1338
        %1340 = vmatmul.f32.gmra.mxu0 %v1274
        %v1341 = vpop.f32.mrf.mxu0
        %v1342 = vadd.f32 0.0, %v1341
        %1343 = vmatmul.f32.gmra.mxu0 %v1277
        %v1344 = vpop.f32.mrf.mxu0
        %v1345 = vadd.f32 0.0, %v1344
        %1346 = vdwg.mxu0
        %v1347 = vadd.f32 %v939, %v1297
        %v1348 = vadd.f32 %v942, %v1300
        %v1349 = vadd.f32 %v945, %v1303
        %v1350 = vadd.f32 %v948, %v1306
        %v1351 = vadd.f32 %v951, %v1309
        %v1352 = vadd.f32 %v954, %v1312
        %v1353 = vadd.f32 %v957, %v1315
        %v1354 = vadd.f32 %v960, %v1318
        %v1355 = vadd.f32 %v963, %v1321
        %v1356 = vadd.f32 %v966, %v1324
        %v1357 = vadd.f32 %v969, %v1327
        %v1358 = vadd.f32 %v972, %v1330
        %v1359 = vadd.f32 %v975, %v1333
        %v1360 = vadd.f32 %v978, %v1336
        %v1361 = vadd.f32 %v981, %v1339
        %v1362 = vadd.f32 %v984, %v1342
        %v1363 = vadd.f32 %v987, %v1345
        %v1365 = vperm.slane %v224, 0
        %v1367 = vmul.f32 %v1347, %v1365
        %v1368 = vmul.f32 %v1348, %v1365
        %v1369 = vmul.f32 %v1349, %v1365
        %v1370 = vmul.f32 %v1350, %v1365
        %v1371 = vmul.f32 %v1351, %v1365
        %v1372 = vmul.f32 %v1352, %v1365
        %v1373 = vmul.f32 %v1353, %v1365
        %v1374 = vmul.f32 %v1354, %v1365
        %v1375 = vmul.f32 %v1355, %v1365
        %v1376 = vmul.f32 %v1356, %v1365
        %v1377 = vmul.f32 %v1357, %v1365
        %v1378 = vmul.f32 %v1358, %v1365
        %v1379 = vmul.f32 %v1359, %v1365
        %v1380 = vmul.f32 %v1360, %v1365
        %v1381 = vmul.f32 %v1361, %v1365
        %v1382 = vmul.f32 %v1362, %v1365
        %v1383 = vmul.f32 %v1363, %v1365
        %v1385 = vperm.slane %v225, 0
        %v1387 = vadd.f32 %v1367, %v1385
        %v1388 = vadd.f32 %v1368, %v1385
        %v1389 = vadd.f32 %v1369, %v1385
        %v1390 = vadd.f32 %v1370, %v1385
        %v1391 = vadd.f32 %v1371, %v1385
        %v1392 = vadd.f32 %v1372, %v1385
        %v1393 = vadd.f32 %v1373, %v1385
        %v1394 = vadd.f32 %v1374, %v1385
        %v1395 = vadd.f32 %v1375, %v1385
        %v1396 = vadd.f32 %v1376, %v1385
        %v1397 = vadd.f32 %v1377, %v1385
        %v1398 = vadd.f32 %v1378, %v1385
        %v1399 = vadd.f32 %v1379, %v1385
        %v1400 = vadd.f32 %v1380, %v1385
        %v1401 = vadd.f32 %v1381, %v1385
        %v1402 = vadd.f32 %v1382, %v1385
        %v1403 = vadd.f32 %v1383, %v1385
        %v1404 = vmax.f32 %v1387, 0.0
        %v1405 = vmax.f32 %v1388, 0.0
        %v1406 = vmax.f32 %v1389, 0.0
        %v1407 = vmax.f32 %v1390, 0.0
        %v1408 = vmax.f32 %v1391, 0.0
        %v1409 = vmax.f32 %v1392, 0.0
        %v1410 = vmax.f32 %v1393, 0.0
        %v1411 = vmax.f32 %v1394, 0.0
        %v1412 = vmax.f32 %v1395, 0.0
        %v1413 = vmax.f32 %v1396, 0.0
        %v1414 = vmax.f32 %v1397, 0.0
        %v1415 = vmax.f32 %v1398, 0.0
        %v1416 = vmax.f32 %v1399, 0.0
        %v1417 = vmax.f32 %v1400, 0.0
        %v1418 = vmax.f32 %v1401, 0.0
        %v1419 = vmax.f32 %v1402, 0.0
        %v1420 = vmax.f32 %v1403, 0.0
        %s1421 = smul.u32 %s263, 136
        %s1422 = scalar_lea.vmem %s221, %s1421
        %1423 = vst.msk [vmem:[%s1422] sm:$0xff] %vm475, %v1404
        %1424 = vst.msk [vmem:[%s1422 + $0x8] sm:$0xff] %vm475, %v1405
        %1425 = vst.msk [vmem:[%s1422 + $0x10] sm:$0xff] %vm475, %v1406
        %1426 = vst.msk [vmem:[%s1422 + $0x18] sm:$0xff] %vm475, %v1407
        %1427 = vst.msk [vmem:[%s1422 + $0x20] sm:$0xff] %vm475, %v1408
        %1428 = vst.msk [vmem:[%s1422 + $0x28] sm:$0xff] %vm475, %v1409
        %1429 = vst.msk [vmem:[%s1422 + $0x30] sm:$0xff] %vm475, %v1410
        %1430 = vst.msk [vmem:[%s1422 + $0x38] sm:$0xff] %vm475, %v1411
        %1431 = vst.msk [vmem:[%s1422 + $0x40] sm:$0xff] %vm475, %v1412
        %1432 = vst.msk [vmem:[%s1422 + $0x48] sm:$0xff] %vm475, %v1413
        %1433 = vst.msk [vmem:[%s1422 + $0x50] sm:$0xff] %vm475, %v1414
        %1434 = vst.msk [vmem:[%s1422 + $0x58] sm:$0xff] %vm475, %v1415
        %1435 = vst.msk [vmem:[%s1422 + $0x60] sm:$0xff] %vm475, %v1416
        %1436 = vst.msk [vmem:[%s1422 + $0x68] sm:$0xff] %vm475, %v1417
        %1437 = vst.msk [vmem:[%s1422 + $0x70] sm:$0xff] %vm475, %v1418
        %1438 = vst.msk [vmem:[%s1422 + $0x78] sm:$0xff] %vm475, %v1419
        %vm1439 = vcmask 254976
        %1440 = vst.msk [vmem:[%s1422 + $0x80] sm:$0x3] %vm1439, %v1420
      $region41: #{_device_forward.7} parent=35 // loop_footer
        %s267 = sadd.s32 1, %s263
      $region42: #{_device_forward.7} parent=35 // loop_footer_branch
        %262 = sbr.rel target = $region38
      $region43: #{_device_forward.7} parent=35 // loop_exit
        _
      %s1441 = smul.u32 65, %s20
      %p1442 = scmp.lt.s32.totalorder %s19, 1
      %s1443 = scalar_select %p1442, %s19, 1
      %p1444 = scmp.lt.s32.totalorder %s1441, 129
      %s1445 = scalar_select %p1444, %s1441, 129
      %s1446 = smul.addr %s1445, 17
      %s1447 = smul.addr %s1443, 2210
      %s1448 = sadd.s32 %s1446, %s1447
      %s1449 = smul.addr %s1448, 8
      %s1450 = scalar_lea.vmem %s4, %s1449
      // Predicated region
      $region44: #{_device_forward.7} parent=35 // pred_check
        %p1451 = pneg %p136
      $region45: #{_device_forward.7} parent=35 // pred_check_branch
        %1453 = sbr.rel (%p1451) target = $region47
      $region46: #{_device_forward.7} parent=35 // pred_region
        %s1454 = smul.u32 65, %s20
      $region47: #{_device_forward.7} parent=35 // pred_fallthru
        _
    $region36: #{_device_forward.7} parent=5 // pred_fallthru
      _
    %p1455 = scmp.le.s32.totalorder 2, %s10
    // Predicated region
    $region48: #{_device_forward.7} parent=5 // pred_check
      %p1456 = pneg %p1455
    $region49: #{_device_forward.7} parent=5 // pred_check_branch
      %1458 = sbr.rel (%p1456) target = $region51
    $region50: #{_device_forward.7} parent=5 // pred_region
      %s1459 = ssub.s32 %s10, 2
      // Predicated region
      $region52: #{_device_forward.7} parent=50 // pred_check
        %p1460 = pneg %p142
      $region53: #{_device_forward.7} parent=50 // pred_check_branch
        %1462 = sbr.rel (%p1460) target = $region55
      $region54: #{_device_forward.7} parent=50 // pred_region
        %s1463 = smul.u32 65, %s22
        %p1464 = scmp.lt.s32.totalorder %s21, 1
        %s1465 = scalar_select %p1464, %s21, 1
        %p1466 = scmp.lt.s32.totalorder %s1463, 129
        %s1467 = scalar_select %p1466, %s1463, 129
        %s1468 = smul.addr %s1467, 17
        %s1469 = smul.addr %s1465, 2210
        %s1470 = sadd.s32 %s1468, %s1469
        %s1471 = smul.addr %s1470, 8
        %s1472 = scalar_lea.vmem %s4, %s1471
      $region55: #{_device_forward.7} parent=50 // pred_fallthru
        _
    $region51: #{_device_forward.7} parent=5 // pred_fallthru
      _
  $region6: #{_device_forward.7} parent=0 // loop_footer
    %s14 = sadd.s32 1, %s10
  $region7: #{_device_forward.7} parent=0 // loop_footer_branch
    %9 = sbr.rel target = $region3
  $region8: #{_device_forward.7} parent=0 // loop_exit
    _

// kernel: _device_forward.8
$region0: #{_device_forward.8}
  #allocation0 [shape = 'u32[]', space=smem, size = 0x4, offset = 0x4, fixed_abs, tag = 'smem constant byte address 0x4 - core index']
  #allocation1 [shape = 'u32[72,128]{1,0:T(1,128)}', space=vmem, size = 0x9000, scoped, tag = 'internal scratch']
  #allocation2 [shape = 'f32[1,1]{1,0:T(1,128)S(1)}', space=vmem, size = 0x200, scoped, tag = 'scoped memory for _device_forward.8']
  %s0 = inlined_call_operand.vmem [shape: f32[2,130,130,32], index: 0, kind: input, shape index: {}]
  %s1 = inlined_call_operand.vmem [shape: f32[1,288], index: 1, kind: input, shape index: {}]
  %s2 = inlined_call_operand.<no memory space> [shape: f32[1,1], index: 2, kind: input, shape index: {}]
  %s3 = inlined_call_operand.hbm [shape: f32[2,128,128], index: 3, kind: output, shape index: {0}]
  %s4 = inlined_call_operand.vmem [shape: f32[2,128,128], index: 4, kind: output, shape index: {1}]
  %s5 = inlined_call_operand.vmem [shape: f32[2,16,16], index: 5, kind: output, shape index: {2}]
  %6 = xla_tuple %s3, %s4, %s5
  %s7 = sld [smem:[#allocation0]]
  $region68: #{_device_forward.8} parent=0
    _
  %s9 = ssub.s32 1, %s7
  %s10 = scalar_select 0, %s9, %s7
  %v11 = vstv %s2
  %12 = vst [vmem:[#allocation2] sm:$0x1] %v11
  $region1: #{_device_forward.8} parent=0
    #allocation3 [shape = 'u8[131072]{0}', space=vmem, size = 0x20000, scoped, tag = 'output window, operand 0']
    #allocation4 [shape = 's32[2]{0}', space=sflag, size = 0x8, scoped, tag = 'scoped memory for _device_forward.8']
    %13 = vsyncpa [#allocation4], 0
    %s14 = scalar_lea.sflag [#allocation4], 1
    %15 = vsyncpa %s14, 0
    loop: start=0, step=1, limit=4
    $region2: #{_device_forward.8} parent=1 // loop_pre_header
      _
    $region3: #{_device_forward.8} parent=1 // loop_header
      %s17 = sphi 0, %s21
      %p18 = scmp.ge.s32.totalorder %s17, 4
      %s27 = sphi 0, %s29
      %s30 = sphi 0, %s27
      %s31 = sphi 0, %s30
      %s47 = sphi 0, %s31
      %s51 = sphi 0, %s51
      %s53 = sphi 0, %s51
      %s54 = sphi 0, %s53
      %s68 = sphi 0, %s54
      %s72 = sphi 0, %s72
      %s74 = sphi 0, %s72
      %s75 = sphi 0, %s74
      %s89 = sphi 0, %s75
      %s95 = sphi 0, %s97
      %s98 = sphi 0, %s95
      %s99 = sphi 0, %s98
      %s115 = sphi 0, %s99
      %s121 = sphi 0, %s123
      %s124 = sphi 0, %s121
      %s125 = sphi 0, %s124
      %s141 = sphi 0, %s125
      %s147 = sphi 0, %s149
      %s150 = sphi 0, %s147
      %s151 = sphi 0, %s150
      %s167 = sphi 0, %s151
    $region4: #{_device_forward.8} parent=1 // loop_header_branch
      %20 = sbr.rel (%p18) target = $region8
    $region5: #{_device_forward.8} parent=1 // loop_body
      %s22 = ssub.s32 %s17, 1
      %s23 = ssub.s32 %s17, 2
      %s24 = sadd.s32 %s17, 1
      %s25 = ssub.s32 %s17, %s24
      %p26 = scmp.eq.s32.totalorder %s25, 0
      %s28 = sadd.s32 %s27, 1
      %s29 = scalar_select %p26, %s27, %s28
      %p32 = pneg %p26
      %p33 = scmp.eq.s32.totalorder %s17, 1
      %p34 = por %p32, %p33
      %p35 = scmp.ne.s32.totalorder %s27, %s30
      %p36 = scmp.eq.s32.totalorder %s17, 0
      %p37 = por %p35, %p36
      %p38 = scmp.ne.s32.totalorder %s27, %s30
      %p39 = scmp.eq.s32.totalorder %s22, 1
      %p40 = por %p38, %p39
      %p41 = scmp.ne.s32.totalorder %s30, %s31
      %p42 = scmp.eq.s32.totalorder %s22, 0
      %p43 = por %p41, %p42
      %p44 = scmp.ne.s32.totalorder %s30, %s31
      %p45 = scmp.eq.s32.totalorder %s23, 1
      %p46 = por %p44, %p45
      %p48 = scmp.ne.s32.totalorder %s31, %s47
      %p49 = scmp.eq.s32.totalorder %s23, 0
      %p50 = por %p48, %p49
      %s52 = sadd.s32 %s51, 1
      %p55 = scmp.eq.s32.totalorder %s17, 1
      %p56 = scmp.ne.s32.totalorder %s51, %s53
      %p57 = scmp.eq.s32.totalorder %s17, 0
      %p58 = por %p56, %p57
      %p59 = scmp.ne.s32.totalorder %s51, %s53
      %p60 = scmp.eq.s32.totalorder %s22, 1
      %p61 = por %p59, %p60
      %p62 = scmp.ne.s32.totalorder %s53, %s54
      %p63 = scmp.eq.s32.totalorder %s22, 0
      %p64 = por %p62, %p63
      %p65 = scmp.ne.s32.totalorder %s53, %s54
      %p66 = scmp.eq.s32.totalorder %s23, 1
      %p67 = por %p65, %p66
      %p69 = scmp.ne.s32.totalorder %s54, %s68
      %p70 = scmp.eq.s32.totalorder %s23, 0
      %p71 = por %p69, %p70
      %s73 = sadd.s32 %s72, 1
      %p76 = scmp.eq.s32.totalorder %s17, 1
      %p77 = scmp.ne.s32.totalorder %s72, %s74
      %p78 = scmp.eq.s32.totalorder %s17, 0
      %p79 = por %p77, %p78
      %p80 = scmp.ne.s32.totalorder %s72, %s74
      %p81 = scmp.eq.s32.totalorder %s22, 1
      %p82 = por %p80, %p81
      %p83 = scmp.ne.s32.totalorder %s74, %s75
      %p84 = scmp.eq.s32.totalorder %s22, 0
      %p85 = por %p83, %p84
      %p86 = scmp.ne.s32.totalorder %s74, %s75
      %p87 = scmp.eq.s32.totalorder %s23, 1
      %p88 = por %p86, %p87
      %p90 = scmp.ne.s32.totalorder %s75, %s89
      %p91 = scmp.eq.s32.totalorder %s23, 0
      %p92 = por %p90, %p91
      %s93 = ssub.s32 %s17, %s24
      %p94 = scmp.eq.s32.totalorder %s93, 0
      %s96 = sadd.s32 %s95, 1
      %s97 = scalar_select %p94, %s95, %s96
      %p100 = pneg %p94
      %p101 = scmp.eq.s32.totalorder %s17, 1
      %p102 = por %p100, %p101
      %p103 = scmp.ne.s32.totalorder %s95, %s98
      %p104 = scmp.eq.s32.totalorder %s17, 0
      %p105 = por %p103, %p104
      %p106 = scmp.ne.s32.totalorder %s95, %s98
      %p107 = scmp.eq.s32.totalorder %s22, 1
      %p108 = por %p106, %p107
      %p109 = scmp.ne.s32.totalorder %s98, %s99
      %p110 = scmp.eq.s32.totalorder %s22, 0
      %p111 = por %p109, %p110
      %p112 = scmp.ne.s32.totalorder %s98, %s99
      %p113 = scmp.eq.s32.totalorder %s23, 1
      %p114 = por %p112, %p113
      %p116 = scmp.ne.s32.totalorder %s99, %s115
      %p117 = scmp.eq.s32.totalorder %s23, 0
      %p118 = por %p116, %p117
      %s119 = ssub.s32 %s17, %s24
      %p120 = scmp.eq.s32.totalorder %s119, 0
      %s122 = sadd.s32 %s121, 1
      %s123 = scalar_select %p120, %s121, %s122
      %p126 = pneg %p120
      %p127 = scmp.eq.s32.totalorder %s17, 1
      %p128 = por %p126, %p127
      %p129 = scmp.ne.s32.totalorder %s121, %s124
      %p130 = scmp.eq.s32.totalorder %s17, 0
      %p131 = por %p129, %p130
      %p132 = scmp.ne.s32.totalorder %s121, %s124
      %p133 = scmp.eq.s32.totalorder %s22, 1
      %p134 = por %p132, %p133
      %p135 = scmp.ne.s32.totalorder %s124, %s125
      %p136 = scmp.eq.s32.totalorder %s22, 0
      %p137 = por %p135, %p136
      %p138 = scmp.ne.s32.totalorder %s124, %s125
      %p139 = scmp.eq.s32.totalorder %s23, 1
      %p140 = por %p138, %p139
      %p142 = scmp.ne.s32.totalorder %s125, %s141
      %p143 = scmp.eq.s32.totalorder %s23, 0
      %p144 = por %p142, %p143
      %s145 = ssub.s32 %s17, %s24
      %p146 = scmp.eq.s32.totalorder %s145, 0
      %s148 = sadd.s32 %s147, 1
      %s149 = scalar_select %p146, %s147, %s148
      %p152 = pneg %p146
      %p153 = scmp.eq.s32.totalorder %s17, 1
      %p154 = por %p152, %p153
      %p155 = scmp.ne.s32.totalorder %s147, %s150
      %p156 = scmp.eq.s32.totalorder %s17, 0
      %p157 = por %p155, %p156
      %p158 = scmp.ne.s32.totalorder %s147, %s150
      %p159 = scmp.eq.s32.totalorder %s22, 1
      %p160 = por %p158, %p159
      %p161 = scmp.ne.s32.totalorder %s150, %s151
      %p162 = scmp.eq.s32.totalorder %s22, 0
      %p163 = por %p161, %p162
      %p164 = scmp.ne.s32.totalorder %s150, %s151
      %p165 = scmp.eq.s32.totalorder %s23, 1
      %p166 = por %p164, %p165
      %p168 = scmp.ne.s32.totalorder %s151, %s167
      %p169 = scmp.eq.s32.totalorder %s23, 0
      %p170 = por %p168, %p169
      %p171 = scmp.le.s32.totalorder 1, %s17
      %p172 = scmp.lt.s32.totalorder %s17, 3
      %p173 = pnand %p171, %p172
      %p174 = pneg %p173
      // Predicated region
      $region9: #{_device_forward.8} parent=5 // pred_check
        _
      $region10: #{_device_forward.8} parent=5 // pred_check_branch
        %176 = sbr.rel (%p173) target = $region12
      $region11: #{_device_forward.8} parent=5 // pred_region
        %s177 = ssub.s32 %s17, 1
        // Predicated region
        $region13: #{_device_forward.8} parent=11 // pred_check
          %p178 = pneg %p64
        $region14: #{_device_forward.8} parent=11 // pred_check_branch
          %180 = sbr.rel (%p178) target = $region16
        $region15: #{_device_forward.8} parent=11 // pred_region
          _
        $region16: #{_device_forward.8} parent=11 // pred_fallthru
          _
        // Predicated region
        $region17: #{_device_forward.8} parent=11 // pred_check
          %p181 = pneg %p85
        $region18: #{_device_forward.8} parent=11 // pred_check_branch
          %183 = sbr.rel (%p181) target = $region20
        $region19: #{_device_forward.8} parent=11 // pred_region
          _
        $region20: #{_device_forward.8} parent=11 // pred_fallthru
          _
      $region12: #{_device_forward.8} parent=5 // pred_fallthru
        _
      %p184 = scmp.lt.s32.totalorder %s17, 2
      // Predicated region
      $region21: #{_device_forward.8} parent=5 // pred_check
        %p185 = pneg %p184
      $region22: #{_device_forward.8} parent=5 // pred_check_branch
        %187 = sbr.rel (%p185) target = $region24
      $region23: #{_device_forward.8} parent=5 // pred_region
        // Predicated region
        $region25: #{_device_forward.8} parent=23 // pred_check
          %p188 = pneg %p37
        $region26: #{_device_forward.8} parent=23 // pred_check_branch
          %190 = sbr.rel (%p188) target = $region28
        $region27: #{_device_forward.8} parent=23 // pred_region
          %p191 = scmp.lt.s32.totalorder %s17, 1
          %s192 = scalar_select %p191, %s17, 1
          %s193 = smul.addr %s192, 2210
          %s194 = smul.addr %s193, 8
          %s195 = scalar_lea.vmem %s0, %s194
        $region28: #{_device_forward.8} parent=23 // pred_fallthru
          _
      $region24: #{_device_forward.8} parent=5 // pred_fallthru
        _
      %p196 = scmp.le.s32.totalorder 1, %s17
      %p197 = scmp.lt.s32.totalorder %s17, 3
      %p198 = pnand %p196, %p197
      %p199 = pneg %p198
      // Predicated region
      $region29: #{_device_forward.8} parent=5 // pred_check
        _
      $region30: #{_device_forward.8} parent=5 // pred_check_branch
        %201 = sbr.rel (%p198) target = $region32
      $region31: #{_device_forward.8} parent=5 // pred_region
        %s202 = ssub.s32 %s17, 1
        %p203 = scmp.lt.s32.totalorder %s22, 1
        %s204 = scalar_select %p203, %s22, 1
        %s205 = smul.addr %s204, 2210
        %s206 = smul.addr %s205, 8
        %s207 = scalar_lea.vmem %s0, %s206
        %p208 = pneg %p43
        %p209 = pneg %p40
        %p210 = pneg %p64
        %p211 = pneg %p61
        %p212 = pneg %p85
        %p213 = pneg %p82
        %p214 = pneg %p111
        %p215 = pneg %p108
        %s216 = sand.u32 %s98, 1
        %s217 = scalar_lea.sflag [#allocation4], %s216
        %s218 = sand.u32 %s98, 1
        %s219 = smul.addr %s218, 128
        %s220 = scalar_lea.vmem [#allocation3], %s219
        %p221 = pneg %p137
        %p222 = pneg %p134
        %p223 = scmp.lt.s32.totalorder %s22, 1
        %s224 = scalar_select %p223, %s22, 1
        %s225 = smul.addr %s224, 16
        %s226 = smul.addr %s225, 8
        %s227 = scalar_lea.vmem %s4, %s226
        %p228 = pneg %p163
        %p229 = pneg %p160
        %p230 = scmp.lt.s32.totalorder %s22, 1
        %s231 = scalar_select %p230, %s22, 1
        %s232 = smul.addr %s231, 2
        %s233 = smul.addr %s232, 8
        %s234 = scalar_lea.vmem %s5, %s233
        %p235 = scmp.lt.s32.totalorder %s22, 1
        %s236 = scalar_select %p235, %s22, 1
        %s237 = smul.addr %s236, 2210
        %s238 = smul.addr %s237, 8
        %s239 = scalar_lea.vmem %s0, %s238
        %p240 = scmp.lt.s32.totalorder %s22, 1
        %s241 = scalar_select %p240, %s22, 1
        %s242 = smul.addr %s241, 16
        %s243 = smul.addr %s242, 8
        %s244 = scalar_lea.vmem %s4, %s243
        %p245 = scmp.lt.s32.totalorder %s22, 1
        %s246 = scalar_select %p245, %s22, 1
        %s247 = smul.addr %s246, 2
        %s248 = smul.addr %s247, 8
        %s249 = scalar_lea.vmem %s5, %s248
        %v250 = vld [vmem:[%s1] sm:$0x7]
        %v251 = vld [vmem:[#allocation2] sm:$0x1]
        loop: start=0, step=1, limit=128
        $region33: #{_device_forward.8} parent=31 // loop_pre_header
          _
        $region34: #{_device_forward.8} parent=31 // loop_header
          %s253 = sphi 0, %s257
          %p254 = scmp.ge.s32.totalorder %s253, 128
        $region35: #{_device_forward.8} parent=31 // loop_header_branch
          %256 = sbr.rel (%p254) target = $region39
        $region36: #{_device_forward.8} parent=31 // loop_body
          %s258 = smul.u32 %s253, 136
          %s259 = scalar_lea.vmem %s239, %s258
          %v260 = vld [vmem:[%s259] sm:$0xff]
          %v261 = vld [vmem:[%s259 + $0x8] sm:$0xff]
          %v262 = vld [vmem:[%s259 + $0x10] sm:$0xff]
          %v263 = vld [vmem:[%s259 + $0x18] sm:$0xff]
          %v264 = vld [vmem:[%s259 + $0x20] sm:$0xff]
          %v265 = vld [vmem:[%s259 + $0x28] sm:$0xff]
          %v266 = vld [vmem:[%s259 + $0x30] sm:$0xff]
          %v267 = vld [vmem:[%s259 + $0x38] sm:$0xff]
          %v268 = vld [vmem:[%s259 + $0x40] sm:$0xff]
          %v269 = vld [vmem:[%s259 + $0x48] sm:$0xff]
          %v270 = vld [vmem:[%s259 + $0x50] sm:$0xff]
          %v271 = vld [vmem:[%s259 + $0x58] sm:$0xff]
          %v272 = vld [vmem:[%s259 + $0x60] sm:$0xff]
          %v273 = vld [vmem:[%s259 + $0x68] sm:$0xff]
          %v274 = vld [vmem:[%s259 + $0x70] sm:$0xff]
          %v275 = vld [vmem:[%s259 + $0x78] sm:$0xff]
          %v276 = vld [vmem:[%s259 + $0x80] sm:$0x3]
          %s277 = sadd.s32 %s253, 1
          %s278 = smul.u32 %s277, 136
          %s279 = scalar_lea.vmem %s239, %s278
          %v280 = vld [vmem:[%s279] sm:$0xff]
          %v281 = vld [vmem:[%s279 + $0x8] sm:$0xff]
          %v282 = vld [vmem:[%s279 + $0x10] sm:$0xff]
          %v283 = vld [vmem:[%s279 + $0x18] sm:$0xff]
          %v284 = vld [vmem:[%s279 + $0x20] sm:$0xff]
          %v285 = vld [vmem:[%s279 + $0x28] sm:$0xff]
          %v286 = vld [vmem:[%s279 + $0x30] sm:$0xff]
          %v287 = vld [vmem:[%s279 + $0x38] sm:$0xff]
          %v288 = vld [vmem:[%s279 + $0x40] sm:$0xff]
          %v289 = vld [vmem:[%s279 + $0x48] sm:$0xff]
          %v290 = vld [vmem:[%s279 + $0x50] sm:$0xff]
          %v291 = vld [vmem:[%s279 + $0x58] sm:$0xff]
          %v292 = vld [vmem:[%s279 + $0x60] sm:$0xff]
          %v293 = vld [vmem:[%s279 + $0x68] sm:$0xff]
          %v294 = vld [vmem:[%s279 + $0x70] sm:$0xff]
          %v295 = vld [vmem:[%s279 + $0x78] sm:$0xff]
          %v296 = vld [vmem:[%s279 + $0x80] sm:$0x3]
          %s297 = sadd.s32 %s253, 2
          %s298 = smul.u32 %s297, 136
          %s299 = scalar_lea.vmem %s239, %s298
          %v300 = vld [vmem:[%s299] sm:$0xff]
          %v301 = vld [vmem:[%s299 + $0x8] sm:$0xff]
          %v302 = vld [vmem:[%s299 + $0x10] sm:$0xff]
          %v303 = vld [vmem:[%s299 + $0x18] sm:$0xff]
          %v304 = vld [vmem:[%s299 + $0x20] sm:$0xff]
          %v305 = vld [vmem:[%s299 + $0x28] sm:$0xff]
          %v306 = vld [vmem:[%s299 + $0x30] sm:$0xff]
          %v307 = vld [vmem:[%s299 + $0x38] sm:$0xff]
          %v308 = vld [vmem:[%s299 + $0x40] sm:$0xff]
          %v309 = vld [vmem:[%s299 + $0x48] sm:$0xff]
          %v310 = vld [vmem:[%s299 + $0x50] sm:$0xff]
          %v311 = vld [vmem:[%s299 + $0x58] sm:$0xff]
          %v312 = vld [vmem:[%s299 + $0x60] sm:$0xff]
          %v313 = vld [vmem:[%s299 + $0x68] sm:$0xff]
          %v314 = vld [vmem:[%s299 + $0x70] sm:$0xff]
          %v315 = vld [vmem:[%s299 + $0x78] sm:$0xff]
          %v316 = vld [vmem:[%s299 + $0x80] sm:$0x3]
          %vm334 = vcmask 1046528
          %v335 = vrot.slane %v260, 1
          %v336 = vrot.slane %v261, 1
          %v337 = vsel %vm334, %v335, %v336
          %v338 = vrot.slane %v262, 1
          %v339 = vsel %vm334, %v336, %v338
          %v340 = vrot.slane %v263, 1
          %v341 = vsel %vm334, %v338, %v340
          %v342 = vrot.slane %v264, 1
          %v343 = vsel %vm334, %v340, %v342
          %v344 = vrot.slane %v265, 1
          %v345 = vsel %vm334, %v342, %v344
          %v346 = vrot.slane %v266, 1
          %v347 = vsel %vm334, %v344, %v346
          %v348 = vrot.slane %v267, 1
          %v349 = vsel %vm334, %v346, %v348
          %v350 = vrot.slane %v268, 1
          %v351 = vsel %vm334, %v348, %v350
          %v352 = vrot.slane %v269, 1
          %v353 = vsel %vm334, %v350, %v352
          %v354 = vrot.slane %v270, 1
          %v355 = vsel %vm334, %v352, %v354
          %v356 = vrot.slane %v271, 1
          %v357 = vsel %vm334, %v354, %v356
          %v358 = vrot.slane %v272, 1
          %v359 = vsel %vm334, %v356, %v358
          %v360 = vrot.slane %v273, 1
          %v361 = vsel %vm334, %v358, %v360
          %v362 = vrot.slane %v274, 1
          %v363 = vsel %vm334, %v360, %v362
          %v364 = vrot.slane %v275, 1
          %v365 = vsel %vm334, %v362, %v364
          %v366 = vrot.slane %v276, 1
          %v367 = vsel %vm334, %v364, %v366
          %368 = vrot.lane.b32.xlu0 %v337, 32
          %v369 = vpop.permute.xlu0 %368
          %370 = vrot.lane.b32.xlu0 %v339, 32
          %v371 = vpop.permute.xlu0 %370
          %372 = vrot.lane.b32.xlu0 %v341, 32
          %v373 = vpop.permute.xlu0 %372
          %374 = vrot.lane.b32.xlu0 %v343, 32
          %v375 = vpop.permute.xlu0 %374
          %376 = vrot.lane.b32.xlu0 %v345, 32
          %v377 = vpop.permute.xlu0 %376
          %378 = vrot.lane.b32.xlu0 %v347, 32
          %v379 = vpop.permute.xlu0 %378
          %380 = vrot.lane.b32.xlu0 %v349, 32
          %v381 = vpop.permute.xlu0 %380
          %382 = vrot.lane.b32.xlu0 %v351, 32
          %v383 = vpop.permute.xlu0 %382
          %384 = vrot.lane.b32.xlu0 %v353, 32
          %v385 = vpop.permute.xlu0 %384
          %386 = vrot.lane.b32.xlu0 %v355, 32
          %v387 = vpop.permute.xlu0 %386
          %388 = vrot.lane.b32.xlu0 %v357, 32
          %v389 = vpop.permute.xlu0 %388
          %390 = vrot.lane.b32.xlu0 %v359, 32
          %v391 = vpop.permute.xlu0 %390
          %392 = vrot.lane.b32.xlu0 %v361, 32
          %v393 = vpop.permute.xlu0 %392
          %394 = vrot.lane.b32.xlu0 %v363, 32
          %v395 = vpop.permute.xlu0 %394
          %396 = vrot.lane.b32.xlu0 %v365, 32
          %v397 = vpop.permute.xlu0 %396
          %398 = vrot.lane.b32.xlu0 %v367, 32
          %v399 = vpop.permute.xlu0 %398
          %vm416 = vcmask 1045504
          %v417 = vrot.slane %v260, 2
          %v418 = vrot.slane %v261, 2
          %v419 = vsel %vm416, %v417, %v418
          %v420 = vrot.slane %v262, 2
          %v421 = vsel %vm416, %v418, %v420
          %v422 = vrot.slane %v263, 2
          %v423 = vsel %vm416, %v420, %v422
          %v424 = vrot.slane %v264, 2
          %v425 = vsel %vm416, %v422, %v424
          %v426 = vrot.slane %v265, 2
          %v427 = vsel %vm416, %v424, %v426
          %v428 = vrot.slane %v266, 2
          %v429 = vsel %vm416, %v426, %v428
          %v430 = vrot.slane %v267, 2
          %v431 = vsel %vm416, %v428, %v430
          %v432 = vrot.slane %v268, 2
          %v433 = vsel %vm416, %v430, %v432
          %v434 = vrot.slane %v269, 2
          %v435 = vsel %vm416, %v432, %v434
          %v436 = vrot.slane %v270, 2
          %v437 = vsel %vm416, %v434, %v436
          %v438 = vrot.slane %v271, 2
          %v439 = vsel %vm416, %v436, %v438
          %v440 = vrot.slane %v272, 2
          %v441 = vsel %vm416, %v438, %v440
          %v442 = vrot.slane %v273, 2
          %v443 = vsel %vm416, %v440, %v442
          %v444 = vrot.slane %v274, 2
          %v445 = vsel %vm416, %v442, %v444
          %v446 = vrot.slane %v275, 2
          %v447 = vsel %vm416, %v444, %v446
          %v448 = vrot.slane %v276, 2
          %v449 = vsel %vm416, %v446, %v448
          %450 = vrot.lane.b32.xlu0 %v419, 64
          %v451 = vpop.permute.xlu0 %450
          %452 = vrot.lane.b32.xlu0 %v421, 64
          %v453 = vpop.permute.xlu0 %452
          %454 = vrot.lane.b32.xlu0 %v423, 64
          %v455 = vpop.permute.xlu0 %454
          %456 = vrot.lane.b32.xlu0 %v425, 64
          %v457 = vpop.permute.xlu0 %456
          %458 = vrot.lane.b32.xlu0 %v427, 64
          %v459 = vpop.permute.xlu0 %458
          %460 = vrot.lane.b32.xlu0 %v429, 64
          %v461 = vpop.permute.xlu0 %460
          %462 = vrot.lane.b32.xlu0 %v431, 64
          %v463 = vpop.permute.xlu0 %462
          %464 = vrot.lane.b32.xlu0 %v433, 64
          %v465 = vpop.permute.xlu0 %464
          %466 = vrot.lane.b32.xlu0 %v435, 64
          %v467 = vpop.permute.xlu0 %466
          %468 = vrot.lane.b32.xlu0 %v437, 64
          %v469 = vpop.permute.xlu0 %468
          %470 = vrot.lane.b32.xlu0 %v439, 64
          %v471 = vpop.permute.xlu0 %470
          %472 = vrot.lane.b32.xlu0 %v441, 64
          %v473 = vpop.permute.xlu0 %472
          %474 = vrot.lane.b32.xlu0 %v443, 64
          %v475 = vpop.permute.xlu0 %474
          %476 = vrot.lane.b32.xlu0 %v445, 64
          %v477 = vpop.permute.xlu0 %476
          %478 = vrot.lane.b32.xlu0 %v447, 64
          %v479 = vpop.permute.xlu0 %478
          %480 = vrot.lane.b32.xlu0 %v449, 64
          %v481 = vpop.permute.xlu0 %480
          %514 = vrot.lane.b32.xlu0 %v280, 96
          %v515 = vpop.permute.xlu0 %514
          %516 = vrot.lane.b32.xlu0 %v281, 96
          %v517 = vpop.permute.xlu0 %516
          %518 = vrot.lane.b32.xlu0 %v282, 96
          %v519 = vpop.permute.xlu0 %518
          %520 = vrot.lane.b32.xlu0 %v283, 96
          %v521 = vpop.permute.xlu0 %520
          %522 = vrot.lane.b32.xlu0 %v284, 96
          %v523 = vpop.permute.xlu0 %522
          %524 = vrot.lane.b32.xlu0 %v285, 96
          %v525 = vpop.permute.xlu0 %524
          %526 = vrot.lane.b32.xlu0 %v286, 96
          %v527 = vpop.permute.xlu0 %526
          %528 = vrot.lane.b32.xlu0 %v287, 96
          %v529 = vpop.permute.xlu0 %528
          %530 = vrot.lane.b32.xlu0 %v288, 96
          %v531 = vpop.permute.xlu0 %530
          %532 = vrot.lane.b32.xlu0 %v289, 96
          %v533 = vpop.permute.xlu0 %532
          %534 = vrot.lane.b32.xlu0 %v290, 96
          %v535 = vpop.permute.xlu0 %534
          %536 = vrot.lane.b32.xlu0 %v291, 96
          %v537 = vpop.permute.xlu0 %536
          %538 = vrot.lane.b32.xlu0 %v292, 96
          %v539 = vpop.permute.xlu0 %538
          %540 = vrot.lane.b32.xlu0 %v293, 96
          %v541 = vpop.permute.xlu0 %540
          %542 = vrot.lane.b32.xlu0 %v294, 96
          %v543 = vpop.permute.xlu0 %542
          %544 = vrot.lane.b32.xlu0 %v295, 96
          %v545 = vpop.permute.xlu0 %544
          %v563 = vrot.slane %v280, 1
          %v564 = vrot.slane %v281, 1
          %v565 = vsel %vm334, %v563, %v564
          %v566 = vrot.slane %v282, 1
          %v567 = vsel %vm334, %v564, %v566
          %v568 = vrot.slane %v283, 1
          %v569 = vsel %vm334, %v566, %v568
          %v570 = vrot.slane %v284, 1
          %v571 = vsel %vm334, %v568, %v570
          %v572 = vrot.slane %v285, 1
          %v573 = vsel %vm334, %v570, %v572
          %v574 = vrot.slane %v286, 1
          %v575 = vsel %vm334, %v572, %v574
          %v576 = vrot.slane %v287, 1
          %v577 = vsel %vm334, %v574, %v576
          %v578 = vrot.slane %v288, 1
          %v579 = vsel %vm334, %v576, %v578
          %v580 = vrot.slane %v289, 1
          %v581 = vsel %vm334, %v578, %v580
          %v582 = vrot.slane %v290, 1
          %v583 = vsel %vm334, %v580, %v582
          %v584 = vrot.slane %v291, 1
          %v585 = vsel %vm334, %v582, %v584
          %v586 = vrot.slane %v292, 1
          %v587 = vsel %vm334, %v584, %v586
          %v588 = vrot.slane %v293, 1
          %v589 = vsel %vm334, %v586, %v588
          %v590 = vrot.slane %v294, 1
          %v591 = vsel %vm334, %v588, %v590
          %v592 = vrot.slane %v295, 1
          %v593 = vsel %vm334, %v590, %v592
          %v594 = vrot.slane %v296, 1
          %v595 = vsel %vm334, %v592, %v594
          %v612 = vrot.slane %v280, 2
          %v613 = vrot.slane %v281, 2
          %v614 = vsel %vm416, %v612, %v613
          %v615 = vrot.slane %v282, 2
          %v616 = vsel %vm416, %v613, %v615
          %v617 = vrot.slane %v283, 2
          %v618 = vsel %vm416, %v615, %v617
          %v619 = vrot.slane %v284, 2
          %v620 = vsel %vm416, %v617, %v619
          %v621 = vrot.slane %v285, 2
          %v622 = vsel %vm416, %v619, %v621
          %v623 = vrot.slane %v286, 2
          %v624 = vsel %vm416, %v621, %v623
          %v625 = vrot.slane %v287, 2
          %v626 = vsel %vm416, %v623, %v625
          %v627 = vrot.slane %v288, 2
          %v628 = vsel %vm416, %v625, %v627
          %v629 = vrot.slane %v289, 2
          %v630 = vsel %vm416, %v627, %v629
          %v631 = vrot.slane %v290, 2
          %v632 = vsel %vm416, %v629, %v631
          %v633 = vrot.slane %v291, 2
          %v634 = vsel %vm416, %v631, %v633
          %v635 = vrot.slane %v292, 2
          %v636 = vsel %vm416, %v633, %v635
          %v637 = vrot.slane %v293, 2
          %v638 = vsel %vm416, %v635, %v637
          %v639 = vrot.slane %v294, 2
          %v640 = vsel %vm416, %v637, %v639
          %v641 = vrot.slane %v295, 2
          %v642 = vsel %vm416, %v639, %v641
          %v643 = vrot.slane %v296, 2
          %v644 = vsel %vm416, %v641, %v643
          %645 = vrot.lane.b32.xlu0 %v614, 32
          %v646 = vpop.permute.xlu0 %645
          %647 = vrot.lane.b32.xlu0 %v616, 32
          %v648 = vpop.permute.xlu0 %647
          %649 = vrot.lane.b32.xlu0 %v618, 32
          %v650 = vpop.permute.xlu0 %649
          %651 = vrot.lane.b32.xlu0 %v620, 32
          %v652 = vpop.permute.xlu0 %651
          %653 = vrot.lane.b32.xlu0 %v622, 32
          %v654 = vpop.permute.xlu0 %653
          %655 = vrot.lane.b32.xlu0 %v624, 32
          %v656 = vpop.permute.xlu0 %655
          %657 = vrot.lane.b32.xlu0 %v626, 32
          %v658 = vpop.permute.xlu0 %657
          %659 = vrot.lane.b32.xlu0 %v628, 32
          %v660 = vpop.permute.xlu0 %659
          %661 = vrot.lane.b32.xlu0 %v630, 32
          %v662 = vpop.permute.xlu0 %661
          %663 = vrot.lane.b32.xlu0 %v632, 32
          %v664 = vpop.permute.xlu0 %663
          %665 = vrot.lane.b32.xlu0 %v634, 32
          %v666 = vpop.permute.xlu0 %665
          %667 = vrot.lane.b32.xlu0 %v636, 32
          %v668 = vpop.permute.xlu0 %667
          %669 = vrot.lane.b32.xlu0 %v638, 32
          %v670 = vpop.permute.xlu0 %669
          %671 = vrot.lane.b32.xlu0 %v640, 32
          %v672 = vpop.permute.xlu0 %671
          %673 = vrot.lane.b32.xlu0 %v642, 32
          %v674 = vpop.permute.xlu0 %673
          %675 = vrot.lane.b32.xlu0 %v644, 32
          %v676 = vpop.permute.xlu0 %675
          %709 = vrot.lane.b32.xlu0 %v300, 64
          %v710 = vpop.permute.xlu0 %709
          %711 = vrot.lane.b32.xlu0 %v301, 64
          %v712 = vpop.permute.xlu0 %711
          %713 = vrot.lane.b32.xlu0 %v302, 64
          %v714 = vpop.permute.xlu0 %713
          %715 = vrot.lane.b32.xlu0 %v303, 64
          %v716 = vpop.permute.xlu0 %715
          %717 = vrot.lane.b32.xlu0 %v304, 64
          %v718 = vpop.permute.xlu0 %717
          %719 = vrot.lane.b32.xlu0 %v305, 64
          %v720 = vpop.permute.xlu0 %719
          %721 = vrot.lane.b32.xlu0 %v306, 64
          %v722 = vpop.permute.xlu0 %721
          %723 = vrot.lane.b32.xlu0 %v307, 64
          %v724 = vpop.permute.xlu0 %723
          %725 = vrot.lane.b32.xlu0 %v308, 64
          %v726 = vpop.permute.xlu0 %725
          %727 = vrot.lane.b32.xlu0 %v309, 64
          %v728 = vpop.permute.xlu0 %727
          %729 = vrot.lane.b32.xlu0 %v310, 64
          %v730 = vpop.permute.xlu0 %729
          %731 = vrot.lane.b32.xlu0 %v311, 64
          %v732 = vpop.permute.xlu0 %731
          %733 = vrot.lane.b32.xlu0 %v312, 64
          %v734 = vpop.permute.xlu0 %733
          %735 = vrot.lane.b32.xlu0 %v313, 64
          %v736 = vpop.permute.xlu0 %735
          %737 = vrot.lane.b32.xlu0 %v314, 64
          %v738 = vpop.permute.xlu0 %737
          %739 = vrot.lane.b32.xlu0 %v315, 64
          %v740 = vpop.permute.xlu0 %739
          %v758 = vrot.slane %v300, 1
          %v759 = vrot.slane %v301, 1
          %v760 = vsel %vm334, %v758, %v759
          %v761 = vrot.slane %v302, 1
          %v762 = vsel %vm334, %v759, %v761
          %v763 = vrot.slane %v303, 1
          %v764 = vsel %vm334, %v761, %v763
          %v765 = vrot.slane %v304, 1
          %v766 = vsel %vm334, %v763, %v765
          %v767 = vrot.slane %v305, 1
          %v768 = vsel %vm334, %v765, %v767
          %v769 = vrot.slane %v306, 1
          %v770 = vsel %vm334, %v767, %v769
          %v771 = vrot.slane %v307, 1
          %v772 = vsel %vm334, %v769, %v771
          %v773 = vrot.slane %v308, 1
          %v774 = vsel %vm334, %v771, %v773
          %v775 = vrot.slane %v309, 1
          %v776 = vsel %vm334, %v773, %v775
          %v777 = vrot.slane %v310, 1
          %v778 = vsel %vm334, %v775, %v777
          %v779 = vrot.slane %v311, 1
          %v780 = vsel %vm334, %v777, %v779
          %v781 = vrot.slane %v312, 1
          %v782 = vsel %vm334, %v779, %v781
          %v783 = vrot.slane %v313, 1
          %v784 = vsel %vm334, %v781, %v783
          %v785 = vrot.slane %v314, 1
          %v786 = vsel %vm334, %v783, %v785
          %v787 = vrot.slane %v315, 1
          %v788 = vsel %vm334, %v785, %v787
          %v789 = vrot.slane %v316, 1
          %v790 = vsel %vm334, %v787, %v789
          %791 = vrot.lane.b32.xlu0 %v760, 96
          %v792 = vpop.permute.xlu0 %791
          %793 = vrot.lane.b32.xlu0 %v762, 96
          %v794 = vpop.permute.xlu0 %793
          %795 = vrot.lane.b32.xlu0 %v764, 96
          %v796 = vpop.permute.xlu0 %795
          %797 = vrot.lane.b32.xlu0 %v766, 96
          %v798 = vpop.permute.xlu0 %797
          %799 = vrot.lane.b32.xlu0 %v768, 96
          %v800 = vpop.permute.xlu0 %799
          %801 = vrot.lane.b32.xlu0 %v770, 96
          %v802 = vpop.permute.xlu0 %801
          %803 = vrot.lane.b32.xlu0 %v772, 96
          %v804 = vpop.permute.xlu0 %803
          %805 = vrot.lane.b32.xlu0 %v774, 96
          %v806 = vpop.permute.xlu0 %805
          %807 = vrot.lane.b32.xlu0 %v776, 96
          %v808 = vpop.permute.xlu0 %807
          %809 = vrot.lane.b32.xlu0 %v778, 96
          %v810 = vpop.permute.xlu0 %809
          %811 = vrot.lane.b32.xlu0 %v780, 96
          %v812 = vpop.permute.xlu0 %811
          %813 = vrot.lane.b32.xlu0 %v782, 96
          %v814 = vpop.permute.xlu0 %813
          %815 = vrot.lane.b32.xlu0 %v784, 96
          %v816 = vpop.permute.xlu0 %815
          %817 = vrot.lane.b32.xlu0 %v786, 96
          %v818 = vpop.permute.xlu0 %817
          %819 = vrot.lane.b32.xlu0 %v788, 96
          %v820 = vpop.permute.xlu0 %819
          %821 = vrot.lane.b32.xlu0 %v790, 96
          %v822 = vpop.permute.xlu0 %821
          %v839 = vrot.slane %v300, 2
          %v840 = vrot.slane %v301, 2
          %v841 = vsel %vm416, %v839, %v840
          %v842 = vrot.slane %v302, 2
          %v843 = vsel %vm416, %v840, %v842
          %v844 = vrot.slane %v303, 2
          %v845 = vsel %vm416, %v842, %v844
          %v846 = vrot.slane %v304, 2
          %v847 = vsel %vm416, %v844, %v846
          %v848 = vrot.slane %v305, 2
          %v849 = vsel %vm416, %v846, %v848
          %v850 = vrot.slane %v306, 2
          %v851 = vsel %vm416, %v848, %v850
          %v852 = vrot.slane %v307, 2
          %v853 = vsel %vm416, %v850, %v852
          %v854 = vrot.slane %v308, 2
          %v855 = vsel %vm416, %v852, %v854
          %v856 = vrot.slane %v309, 2
          %v857 = vsel %vm416, %v854, %v856
          %v858 = vrot.slane %v310, 2
          %v859 = vsel %vm416, %v856, %v858
          %v860 = vrot.slane %v311, 2
          %v861 = vsel %vm416, %v858, %v860
          %v862 = vrot.slane %v312, 2
          %v863 = vsel %vm416, %v860, %v862
          %v864 = vrot.slane %v313, 2
          %v865 = vsel %vm416, %v862, %v864
          %v866 = vrot.slane %v314, 2
          %v867 = vsel %vm416, %v864, %v866
          %v868 = vrot.slane %v315, 2
          %v869 = vsel %vm416, %v866, %v868
          %v870 = vrot.slane %v316, 2
          %v871 = vsel %vm416, %v868, %v870
          %vm872 = vcmask 261120
          %v873 = vsel %vm872, %v260, %v369
          %v874 = vsel %vm872, %v261, %v371
          %v875 = vsel %vm872, %v262, %v373
          %v876 = vsel %vm872, %v263, %v375
          %v877 = vsel %vm872, %v264, %v377
          %v878 = vsel %vm872, %v265, %v379
          %v879 = vsel %vm872, %v266, %v381
          %v880 = vsel %vm872, %v267, %v383
          %v881 = vsel %vm872, %v268, %v385
          %v882 = vsel %vm872, %v269, %v387
          %v883 = vsel %vm872, %v270, %v389
          %v884 = vsel %vm872, %v271, %v391
          %v885 = vsel %vm872, %v272, %v393
          %v886 = vsel %vm872, %v273, %v395
          %v887 = vsel %vm872, %v274, %v397
          %v888 = vsel %vm872, %v275, %v399
          %vm889 = vcmask 523264
          %v890 = vsel %vm889, %v873, %v451
          %v891 = vsel %vm889, %v874, %v453
          %v892 = vsel %vm889, %v875, %v455
          %v893 = vsel %vm889, %v876, %v457
          %v894 = vsel %vm889, %v877, %v459
          %v895 = vsel %vm889, %v878, %v461
          %v896 = vsel %vm889, %v879, %v463
          %v897 = vsel %vm889, %v880, %v465
          %v898 = vsel %vm889, %v881, %v467
          %v899 = vsel %vm889, %v882, %v469
          %v900 = vsel %vm889, %v883, %v471
          %v901 = vsel %vm889, %v884, %v473
          %v902 = vsel %vm889, %v885, %v475
          %v903 = vsel %vm889, %v886, %v477
          %v904 = vsel %vm889, %v887, %v479
          %v905 = vsel %vm889, %v888, %v481
          %vm906 = vcmask 785408
          %v907 = vsel %vm906, %v890, %v515
          %v908 = vsel %vm906, %v891, %v517
          %v909 = vsel %vm906, %v892, %v519
          %v910 = vsel %vm906, %v893, %v521
          %v911 = vsel %vm906, %v894, %v523
          %v912 = vsel %vm906, %v895, %v525
          %v913 = vsel %vm906, %v896, %v527
          %v914 = vsel %vm906, %v897, %v529
          %v915 = vsel %vm906, %v898, %v531
          %v916 = vsel %vm906, %v899, %v533
          %v917 = vsel %vm906, %v900, %v535
          %v918 = vsel %vm906, %v901, %v537
          %v919 = vsel %vm906, %v902, %v539
          %v920 = vsel %vm906, %v903, %v541
          %v921 = vsel %vm906, %v904, %v543
          %v922 = vsel %vm906, %v905, %v545
          %v923 = vsel %vm872, %v565, %v646
          %v924 = vsel %vm872, %v567, %v648
          %v925 = vsel %vm872, %v569, %v650
          %v926 = vsel %vm872, %v571, %v652
          %v927 = vsel %vm872, %v573, %v654
          %v928 = vsel %vm872, %v575, %v656
          %v929 = vsel %vm872, %v577, %v658
          %v930 = vsel %vm872, %v579, %v660
          %v931 = vsel %vm872, %v581, %v662
          %v932 = vsel %vm872, %v583, %v664
          %v933 = vsel %vm872, %v585, %v666
          %v934 = vsel %vm872, %v587, %v668
          %v935 = vsel %vm872, %v589, %v670
          %v936 = vsel %vm872, %v591, %v672
          %v937 = vsel %vm872, %v593, %v674
          %v938 = vsel %vm872, %v595, %v676
          %v939 = vsel %vm889, %v923, %v710
          %v940 = vsel %vm889, %v924, %v712
          %v941 = vsel %vm889, %v925, %v714
          %v942 = vsel %vm889, %v926, %v716
          %v943 = vsel %vm889, %v927, %v718
          %v944 = vsel %vm889, %v928, %v720
          %v945 = vsel %vm889, %v929, %v722
          %v946 = vsel %vm889, %v930, %v724
          %v947 = vsel %vm889, %v931, %v726
          %v948 = vsel %vm889, %v932, %v728
          %v949 = vsel %vm889, %v933, %v730
          %v950 = vsel %vm889, %v934, %v732
          %v951 = vsel %vm889, %v935, %v734
          %v952 = vsel %vm889, %v936, %v736
          %v953 = vsel %vm889, %v937, %v738
          %v954 = vsel %vm889, %v938, %v740
          %v955 = vsel %vm906, %v939, %v792
          %v956 = vsel %vm906, %v940, %v794
          %v957 = vsel %vm906, %v941, %v796
          %v958 = vsel %vm906, %v942, %v798
          %v959 = vsel %vm906, %v943, %v800
          %v960 = vsel %vm906, %v944, %v802
          %v961 = vsel %vm906, %v945, %v804
          %v962 = vsel %vm906, %v946, %v806
          %v963 = vsel %vm906, %v947, %v808
          %v964 = vsel %vm906, %v948, %v810
          %v965 = vsel %vm906, %v949, %v812
          %v966 = vsel %vm906, %v950, %v814
          %v967 = vsel %vm906, %v951, %v816
          %v968 = vsel %vm906, %v952, %v818
          %v969 = vsel %vm906, %v953, %v820
          %v970 = vsel %vm906, %v954, %v822
          %972 = vset.pattern.permute.xlu0 0
          %973 = vperm.xlu0 %972, %v251
          %v974 = vpop.permute.xlu0 %973
          %v976 = vperm.slane %v974, 0
          %v978 = vperm.slane %v250, 0
          %v979 = vperm.slane %v250, 1
          %v980 = vperm.slane %v250, 2
          %v983 = vsel %vm872, %v980, 0
          %v985 = vsel %vm872, %v841, 0
          %v987 = vsel %vm872, %v843, 0
          %v989 = vsel %vm872, %v845, 0
          %v991 = vsel %vm872, %v847, 0
          %v993 = vsel %vm872, %v849, 0
          %v995 = vsel %vm872, %v851, 0
          %v997 = vsel %vm872, %v853, 0
          %v999 = vsel %vm872, %v855, 0
          %v1001 = vsel %vm872, %v857, 0
          %v1003 = vsel %vm872, %v859, 0
          %v1005 = vsel %vm872, %v861, 0
          %v1007 = vsel %vm872, %v863, 0
          %v1009 = vsel %vm872, %v865, 0
          %v1011 = vsel %vm872, %v867, 0
          %v1013 = vsel %vm872, %v869, 0
          %v1015 = vsel %vm872, %v871, 0
          %1017 = vmatpush.xpose.msra.mxu0 %v922
          %1018 = vmatpush.xpose.msra.mxu0 %v921
          %1019 = vmatpush.xpose.msra.mxu0 %v920
          %1020 = vmatpush.xpose.msra.mxu0 %v919
          %1021 = vmatpush.xpose.msra.mxu0 %v918
          %1022 = vmatpush.xpose.msra.mxu0 %v917
          %1023 = vmatpush.xpose.msra.mxu0 %v916
          %1024 = vmatpush.xpose.msra.mxu0 %v915
          %1025 = vmatpush.xpose.msra.mxu0 %v914
          %1026 = vmatpush.xpose.msra.mxu0 %v913
          %1027 = vmatpush.xpose.msra.mxu0 %v912
          %1028 = vmatpush.xpose.msra.mxu0 %v911
          %1029 = vmatpush.xpose.msra.mxu0 %v910
          %1030 = vmatpush.xpose.msra.mxu0 %v909
          %1031 = vmatpush.xpose.msra.mxu0 %v908
          %1032 = vmatpush.xpose.msra.mxu0 %v907
          %1033 = vmatmul.f32.gmra.mxu0 %v978
          %v1034 = vpop.f32.mrf.mxu0
          %v1035 = vadd.f32 %v976, %v1034
          %1036 = vdwg.mxu0
          %1037 = vmatpush.xpose.msra.mxu0 %v970
          %1038 = vmatpush.xpose.msra.mxu0 %v969
          %1039 = vmatpush.xpose.msra.mxu0 %v968
          %1040 = vmatpush.xpose.msra.mxu0 %v967
          %1041 = vmatpush.xpose.msra.mxu0 %v966
          %1042 = vmatpush.xpose.msra.mxu0 %v965
          %1043 = vmatpush.xpose.msra.mxu0 %v964
          %1044 = vmatpush.xpose.msra.mxu0 %v963
          %1045 = vmatpush.xpose.msra.mxu0 %v962
          %1046 = vmatpush.xpose.msra.mxu0 %v961
          %1047 = vmatpush.xpose.msra.mxu0 %v960
          %1048 = vmatpush.xpose.msra.mxu0 %v959
          %1049 = vmatpush.xpose.msra.mxu0 %v958
          %1050 = vmatpush.xpose.msra.mxu0 %v957
          %1051 = vmatpush.xpose.msra.mxu0 %v956
          %1052 = vmatpush.xpose.msra.mxu0 %v955
          %1053 = vmatmul.f32.gmra.mxu0 %v979
          %v1054 = vpop.f32.mrf.mxu0
          %v1055 = vadd.f32 %v1035, %v1054
          %1056 = vdwg.mxu0
          %1057 = vmatpush.xpose.msra.mxu0 %v1015
          %1058 = vmatpush.xpose.msra.mxu0 %v1013
          %1059 = vmatpush.xpose.msra.mxu0 %v1011
          %1060 = vmatpush.xpose.msra.mxu0 %v1009
          %1061 = vmatpush.xpose.msra.mxu0 %v1007
          %1062 = vmatpush.xpose.msra.mxu0 %v1005
          %1063 = vmatpush.xpose.msra.mxu0 %v1003
          %1064 = vmatpush.xpose.msra.mxu0 %v1001
          %1065 = vmatpush.xpose.msra.mxu0 %v999
          %1066 = vmatpush.xpose.msra.mxu0 %v997
          %1067 = vmatpush.xpose.msra.mxu0 %v995
          %1068 = vmatpush.xpose.msra.mxu0 %v993
          %1069 = vmatpush.xpose.msra.mxu0 %v991
          %1070 = vmatpush.xpose.msra.mxu0 %v989
          %1071 = vmatpush.xpose.msra.mxu0 %v987
          %1072 = vmatpush.xpose.msra.mxu0 %v985
          %1073 = vmatmul.f32.gmra.mxu0 %v983
          %v1074 = vpop.f32.mrf.mxu0
          %v1075 = vadd.f32 %v1055, %v1074
          %1076 = vdwg.mxu0
          %s1077 = scalar_lea.vmem %s220, %s253 [#allocation3]
          %1078 = vst [vmem:[%s1077] sm:$0x1] %v1075
          %v1079 = vxor.u32 %v1075, 2147483648
          %v1080 = vmul.f32 %v1079, 1.442695
          %v1081 = vpow.pop %v1080
          %v1082 = vadd.f32 %v1081, 1.0
          %v1083 = vrcp.pop %v1082
          %v1084 = vmul.f32 %v1082, %v1083
          %v1085 = vsub.f32 1.0, %v1084
          %v1086 = vmul.f32 %v1083, %v1085
          %v1087 = vadd.f32 %v1083, %v1086
          %vm1088 = vweird.f32 %v1082
          %vm1089 = vweird.f32 %v1083
          %vm1090 = vmor %vm1088, %vm1089
          %v1091 = vsel %vm1090, %v1083, %v1087
          %v1092 = vand.u32 2147483647, %v1082
          %vm1093 = vcmp.eq.f32.partialorder %v1092, 8.507059e+37
          %v1094 = vand.u32 %v1082, 2147483648
          %v1095 = vor.u32 1.1754944e-38, %v1094
          %v1096 = vsel %vm1093, %v1095, %v1091
          %v1097 = vmul.f32 1.0, %v1096
          %s1098 = scalar_lea.vmem %s244, %s253
          %1099 = vst [vmem:[%s1098] sm:$0x1] %v1097
        $region37: #{_device_forward.8} parent=31 // loop_footer
          %s257 = sadd.s32 1, %s253
        $region38: #{_device_forward.8} parent=31 // loop_footer_branch
          %252 = sbr.rel target = $region34
        $region39: #{_device_forward.8} parent=31 // loop_exit
          _
        %v1100 = vld [vmem:[%s244] sm:$0xff]
        %v1101 = vld [vmem:[%s244 + $0x8] sm:$0xff]
        %v1102 = vld [vmem:[%s244 + $0x10] sm:$0xff]
        %v1103 = vld [vmem:[%s244 + $0x18] sm:$0xff]
        %v1104 = vld [vmem:[%s244 + $0x20] sm:$0xff]
        %v1105 = vld [vmem:[%s244 + $0x28] sm:$0xff]
        %v1106 = vld [vmem:[%s244 + $0x30] sm:$0xff]
        %v1107 = vld [vmem:[%s244 + $0x38] sm:$0xff]
        %v1108 = vld [vmem:[%s244 + $0x40] sm:$0xff]
        %v1109 = vld [vmem:[%s244 + $0x48] sm:$0xff]
        %v1110 = vld [vmem:[%s244 + $0x50] sm:$0xff]
        %v1111 = vld [vmem:[%s244 + $0x58] sm:$0xff]
        %v1112 = vld [vmem:[%s244 + $0x60] sm:$0xff]
        %v1113 = vld [vmem:[%s244 + $0x68] sm:$0xff]
        %v1114 = vld [vmem:[%s244 + $0x70] sm:$0xff]
        %v1115 = vld [vmem:[%s244 + $0x78] sm:$0xff]
        %v1116 = vrot.slane %v1100, 4
        %v1117 = vmax.f32 %v1100, %v1116
        %v1118 = vrot.slane %v1117, 2
        %v1119 = vmax.f32 %v1117, %v1118
        %v1120 = vrot.slane %v1119, 1
        %v1121 = vmax.f32 %v1119, %v1120
        %v1122 = vrot.slane %v1101, 4
        %v1123 = vmax.f32 %v1101, %v1122
        %v1124 = vrot.slane %v1123, 2
        %v1125 = vmax.f32 %v1123, %v1124
        %v1126 = vrot.slane %v1125, 1
        %v1127 = vmax.f32 %v1125, %v1126
        %v1128 = vrot.slane %v1102, 4
        %v1129 = vmax.f32 %v1102, %v1128
        %v1130 = vrot.slane %v1129, 2
        %v1131 = vmax.f32 %v1129, %v1130
        %v1132 = vrot.slane %v1131, 1
        %v1133 = vmax.f32 %v1131, %v1132
        %v1134 = vrot.slane %v1103, 4
        %v1135 = vmax.f32 %v1103, %v1134
        %v1136 = vrot.slane %v1135, 2
        %v1137 = vmax.f32 %v1135, %v1136
        %v1138 = vrot.slane %v1137, 1
        %v1139 = vmax.f32 %v1137, %v1138
        %v1140 = vrot.slane %v1104, 4
        %v1141 = vmax.f32 %v1104, %v1140
        %v1142 = vrot.slane %v1141, 2
        %v1143 = vmax.f32 %v1141, %v1142
        %v1144 = vrot.slane %v1143, 1
        %v1145 = vmax.f32 %v1143, %v1144
        %v1146 = vrot.slane %v1105, 4
        %v1147 = vmax.f32 %v1105, %v1146
        %v1148 = vrot.slane %v1147, 2
        %v1149 = vmax.f32 %v1147, %v1148
        %v1150 = vrot.slane %v1149, 1
        %v1151 = vmax.f32 %v1149, %v1150
        %v1152 = vrot.slane %v1106, 4
        %v1153 = vmax.f32 %v1106, %v1152
        %v1154 = vrot.slane %v1153, 2
        %v1155 = vmax.f32 %v1153, %v1154
        %v1156 = vrot.slane %v1155, 1
        %v1157 = vmax.f32 %v1155, %v1156
        %v1158 = vrot.slane %v1107, 4
        %v1159 = vmax.f32 %v1107, %v1158
        %v1160 = vrot.slane %v1159, 2
        %v1161 = vmax.f32 %v1159, %v1160
        %v1162 = vrot.slane %v1161, 1
        %v1163 = vmax.f32 %v1161, %v1162
        %v1164 = vrot.slane %v1108, 4
        %v1165 = vmax.f32 %v1108, %v1164
        %v1166 = vrot.slane %v1165, 2
        %v1167 = vmax.f32 %v1165, %v1166
        %v1168 = vrot.slane %v1167, 1
        %v1169 = vmax.f32 %v1167, %v1168
        %v1170 = vrot.slane %v1109, 4
        %v1171 = vmax.f32 %v1109, %v1170
        %v1172 = vrot.slane %v1171, 2
        %v1173 = vmax.f32 %v1171, %v1172
        %v1174 = vrot.slane %v1173, 1
        %v1175 = vmax.f32 %v1173, %v1174
        %v1176 = vrot.slane %v1110, 4
        %v1177 = vmax.f32 %v1110, %v1176
        %v1178 = vrot.slane %v1177, 2
        %v1179 = vmax.f32 %v1177, %v1178
        %v1180 = vrot.slane %v1179, 1
        %v1181 = vmax.f32 %v1179, %v1180
        %v1182 = vrot.slane %v1111, 4
        %v1183 = vmax.f32 %v1111, %v1182
        %v1184 = vrot.slane %v1183, 2
        %v1185 = vmax.f32 %v1183, %v1184
        %v1186 = vrot.slane %v1185, 1
        %v1187 = vmax.f32 %v1185, %v1186
        %v1188 = vrot.slane %v1112, 4
        %v1189 = vmax.f32 %v1112, %v1188
        %v1190 = vrot.slane %v1189, 2
        %v1191 = vmax.f32 %v1189, %v1190
        %v1192 = vrot.slane %v1191, 1
        %v1193 = vmax.f32 %v1191, %v1192
        %v1194 = vrot.slane %v1113, 4
        %v1195 = vmax.f32 %v1113, %v1194
        %v1196 = vrot.slane %v1195, 2
        %v1197 = vmax.f32 %v1195, %v1196
        %v1198 = vrot.slane %v1197, 1
        %v1199 = vmax.f32 %v1197, %v1198
        %v1200 = vrot.slane %v1114, 4
        %v1201 = vmax.f32 %v1114, %v1200
        %v1202 = vrot.slane %v1201, 2
        %v1203 = vmax.f32 %v1201, %v1202
        %v1204 = vrot.slane %v1203, 1
        %v1205 = vmax.f32 %v1203, %v1204
        %v1206 = vrot.slane %v1115, 4
        %v1207 = vmax.f32 %v1115, %v1206
        %v1208 = vrot.slane %v1207, 2
        %v1209 = vmax.f32 %v1207, %v1208
        %v1210 = vrot.slane %v1209, 1
        %v1211 = vmax.f32 %v1209, %v1210
        %vm1228 = vcmask 1041409
        %v1229 = vsel %vm1228, %v1127, %v1121
        %vm1230 = vcmask 1042434
        %v1231 = vsel %vm1230, %v1133, %v1229
        %vm1232 = vcmask 1043459
        %v1233 = vsel %vm1232, %v1139, %v1231
        %vm1234 = vcmask 1044484
        %v1235 = vsel %vm1234, %v1145, %v1233
        %vm1236 = vcmask 1045509
        %v1237 = vsel %vm1236, %v1151, %v1235
        %vm1238 = vcmask 1046534
        %v1239 = vsel %vm1238, %v1157, %v1237
        %vm1240 = vcmask 1047559
        %v1241 = vsel %vm1240, %v1163, %v1239
        %v1242 = vsel %vm1228, %v1175, %v1169
        %v1243 = vsel %vm1230, %v1181, %v1242
        %v1244 = vsel %vm1232, %v1187, %v1243
        %v1245 = vsel %vm1234, %v1193, %v1244
        %v1246 = vsel %vm1236, %v1199, %v1245
        %v1247 = vsel %vm1238, %v1205, %v1246
        %v1248 = vsel %vm1240, %v1211, %v1247
        %1251 = vxpose.xlu0.b32.start [1/16] %v1241, 128
        %1252 = vxpose.xlu0.b32.cont [2/16] %v1248, 128
        %1253 = vxpose.xlu0.b32.cont [3/16] 0.0, 128
        %1254 = vxpose.xlu0.b32.cont [4/16] 0.0, 128
        %1255 = vxpose.xlu0.b32.cont [5/16] 0.0, 128
        %1256 = vxpose.xlu0.b32.cont [6/16] 0.0, 128
        %1257 = vxpose.xlu0.b32.cont [7/16] 0.0, 128
        %1258 = vxpose.xlu0.b32.cont [8/16] 0.0, 128
        %1259 = vxpose.xlu0.b32.cont [9/16] 0.0, 128
        %1260 = vxpose.xlu0.b32.cont [10/16] 0.0, 128
        %1261 = vxpose.xlu0.b32.cont [11/16] 0.0, 128
        %1262 = vxpose.xlu0.b32.cont [12/16] 0.0, 128
        %1263 = vxpose.xlu0.b32.cont [13/16] 0.0, 128
        %1264 = vxpose.xlu0.b32.cont [14/16] 0.0, 128
        %1265 = vxpose.xlu0.b32.cont [15/16] 0.0, 128
        %1266 = vxpose.xlu0.b32.end [16/16] 0.0, 128
        %v1267 = vpop.trf.xlu0
        %v1268 = vpop.trf.xlu0
        %v1269 = vpop.trf.xlu0
        %v1270 = vpop.trf.xlu0
        %v1271 = vpop.trf.xlu0
        %v1272 = vpop.trf.xlu0
        %v1273 = vpop.trf.xlu0
        %v1274 = vpop.trf.xlu0
        %v1275 = vpop.trf.xlu0
        %v1276 = vpop.trf.xlu0
        %v1277 = vpop.trf.xlu0
        %v1278 = vpop.trf.xlu0
        %v1279 = vpop.trf.xlu0
        %v1280 = vpop.trf.xlu0
        %v1281 = vpop.trf.xlu0
        %v1282 = vpop.trf.xlu0
        %vm1283 = vcmask 130048
        %v1284 = vsel %vm1283, %v1267, -inf
        %v1285 = vrot.slane %v1284, 4
        %v1286 = vmax.f32 %v1284, %v1285
        %v1287 = vrot.slane %v1286, 2
        %v1288 = vmax.f32 %v1286, %v1287
        %v1289 = vrot.slane %v1288, 1
        %v1290 = vmax.f32 %v1288, %v1289
        %v1291 = vsel %vm1283, %v1268, -inf
        %v1292 = vrot.slane %v1291, 4
        %v1293 = vmax.f32 %v1291, %v1292
        %v1294 = vrot.slane %v1293, 2
        %v1295 = vmax.f32 %v1293, %v1294
        %v1296 = vrot.slane %v1295, 1
        %v1297 = vmax.f32 %v1295, %v1296
        %v1298 = vsel %vm1283, %v1269, -inf
        %v1299 = vrot.slane %v1298, 4
        %v1300 = vmax.f32 %v1298, %v1299
        %v1301 = vrot.slane %v1300, 2
        %v1302 = vmax.f32 %v1300, %v1301
        %v1303 = vrot.slane %v1302, 1
        %v1304 = vmax.f32 %v1302, %v1303
        %v1305 = vsel %vm1283, %v1270, -inf
        %v1306 = vrot.slane %v1305, 4
        %v1307 = vmax.f32 %v1305, %v1306
        %v1308 = vrot.slane %v1307, 2
        %v1309 = vmax.f32 %v1307, %v1308
        %v1310 = vrot.slane %v1309, 1
        %v1311 = vmax.f32 %v1309, %v1310
        %v1312 = vsel %vm1283, %v1271, -inf
        %v1313 = vrot.slane %v1312, 4
        %v1314 = vmax.f32 %v1312, %v1313
        %v1315 = vrot.slane %v1314, 2
        %v1316 = vmax.f32 %v1314, %v1315
        %v1317 = vrot.slane %v1316, 1
        %v1318 = vmax.f32 %v1316, %v1317
        %v1319 = vsel %vm1283, %v1272, -inf
        %v1320 = vrot.slane %v1319, 4
        %v1321 = vmax.f32 %v1319, %v1320
        %v1322 = vrot.slane %v1321, 2
        %v1323 = vmax.f32 %v1321, %v1322
        %v1324 = vrot.slane %v1323, 1
        %v1325 = vmax.f32 %v1323, %v1324
        %v1326 = vsel %vm1283, %v1273, -inf
        %v1327 = vrot.slane %v1326, 4
        %v1328 = vmax.f32 %v1326, %v1327
        %v1329 = vrot.slane %v1328, 2
        %v1330 = vmax.f32 %v1328, %v1329
        %v1331 = vrot.slane %v1330, 1
        %v1332 = vmax.f32 %v1330, %v1331
        %v1333 = vsel %vm1283, %v1274, -inf
        %v1334 = vrot.slane %v1333, 4
        %v1335 = vmax.f32 %v1333, %v1334
        %v1336 = vrot.slane %v1335, 2
        %v1337 = vmax.f32 %v1335, %v1336
        %v1338 = vrot.slane %v1337, 1
        %v1339 = vmax.f32 %v1337, %v1338
        %v1340 = vsel %vm1283, %v1275, -inf
        %v1341 = vrot.slane %v1340, 4
        %v1342 = vmax.f32 %v1340, %v1341
        %v1343 = vrot.slane %v1342, 2
        %v1344 = vmax.f32 %v1342, %v1343
        %v1345 = vrot.slane %v1344, 1
        %v1346 = vmax.f32 %v1344, %v1345
        %v1347 = vsel %vm1283, %v1276, -inf
        %v1348 = vrot.slane %v1347, 4
        %v1349 = vmax.f32 %v1347, %v1348
        %v1350 = vrot.slane %v1349, 2
        %v1351 = vmax.f32 %v1349, %v1350
        %v1352 = vrot.slane %v1351, 1
        %v1353 = vmax.f32 %v1351, %v1352
        %v1354 = vsel %vm1283, %v1277, -inf
        %v1355 = vrot.slane %v1354, 4
        %v1356 = vmax.f32 %v1354, %v1355
        %v1357 = vrot.slane %v1356, 2
        %v1358 = vmax.f32 %v1356, %v1357
        %v1359 = vrot.slane %v1358, 1
        %v1360 = vmax.f32 %v1358, %v1359
        %v1361 = vsel %vm1283, %v1278, -inf
        %v1362 = vrot.slane %v1361, 4
        %v1363 = vmax.f32 %v1361, %v1362
        %v1364 = vrot.slane %v1363, 2
        %v1365 = vmax.f32 %v1363, %v1364
        %v1366 = vrot.slane %v1365, 1
        %v1367 = vmax.f32 %v1365, %v1366
        %v1368 = vsel %vm1283, %v1279, -inf
        %v1369 = vrot.slane %v1368, 4
        %v1370 = vmax.f32 %v1368, %v1369
        %v1371 = vrot.slane %v1370, 2
        %v1372 = vmax.f32 %v1370, %v1371
        %v1373 = vrot.slane %v1372, 1
        %v1374 = vmax.f32 %v1372, %v1373
        %v1375 = vsel %vm1283, %v1280, -inf
        %v1376 = vrot.slane %v1375, 4
        %v1377 = vmax.f32 %v1375, %v1376
        %v1378 = vrot.slane %v1377, 2
        %v1379 = vmax.f32 %v1377, %v1378
        %v1380 = vrot.slane %v1379, 1
        %v1381 = vmax.f32 %v1379, %v1380
        %v1382 = vsel %vm1283, %v1281, -inf
        %v1383 = vrot.slane %v1382, 4
        %v1384 = vmax.f32 %v1382, %v1383
        %v1385 = vrot.slane %v1384, 2
        %v1386 = vmax.f32 %v1384, %v1385
        %v1387 = vrot.slane %v1386, 1
        %v1388 = vmax.f32 %v1386, %v1387
        %v1389 = vsel %vm1283, %v1282, -inf
        %v1390 = vrot.slane %v1389, 4
        %v1391 = vmax.f32 %v1389, %v1390
        %v1392 = vrot.slane %v1391, 2
        %v1393 = vmax.f32 %v1391, %v1392
        %v1394 = vrot.slane %v1393, 1
        %v1395 = vmax.f32 %v1393, %v1394
        %v1412 = vsel %vm1228, %v1297, %v1290
        %v1413 = vsel %vm1230, %v1304, %v1412
        %v1414 = vsel %vm1232, %v1311, %v1413
        %v1415 = vsel %vm1234, %v1318, %v1414
        %v1416 = vsel %vm1236, %v1325, %v1415
        %v1417 = vsel %vm1238, %v1332, %v1416
        %v1418 = vsel %vm1240, %v1339, %v1417
        %v1419 = vsel %vm1228, %v1353, %v1346
        %v1420 = vsel %vm1230, %v1360, %v1419
        %v1421 = vsel %vm1232, %v1367, %v1420
        %v1422 = vsel %vm1234, %v1374, %v1421
        %v1423 = vsel %vm1236, %v1381, %v1422
        %v1424 = vsel %vm1238, %v1388, %v1423
        %v1425 = vsel %vm1240, %v1395, %v1424
        %1428 = vxpose.xlu0.b32.start [1/16] %v1418, 128
        %1429 = vxpose.xlu0.b32.cont [2/16] %v1425, 128
        %1430 = vxpose.xlu0.b32.cont [3/16] 0.0, 128
        %1431 = vxpose.xlu0.b32.cont [4/16] 0.0, 128
        %1432 = vxpose.xlu0.b32.cont [5/16] 0.0, 128
        %1433 = vxpose.xlu0.b32.cont [6/16] 0.0, 128
        %1434 = vxpose.xlu0.b32.cont [7/16] 0.0, 128
        %1435 = vxpose.xlu0.b32.cont [8/16] 0.0, 128
        %1436 = vxpose.xlu0.b32.cont [9/16] 0.0, 128
        %1437 = vxpose.xlu0.b32.cont [10/16] 0.0, 128
        %1438 = vxpose.xlu0.b32.cont [11/16] 0.0, 128
        %1439 = vxpose.xlu0.b32.cont [12/16] 0.0, 128
        %1440 = vxpose.xlu0.b32.cont [13/16] 0.0, 128
        %1441 = vxpose.xlu0.b32.cont [14/16] 0.0, 128
        %1442 = vxpose.xlu0.b32.cont [15/16] 0.0, 128
        %1443 = vxpose.xlu0.b32.end [16/16] 0.0, 128
        %v1444 = vpop.trf.xlu0
        %v1445 = vpop.trf.xlu0
        %v1446 = vpop.trf.xlu0
        %v1447 = vpop.trf.xlu0
        %v1448 = vpop.trf.xlu0
        %v1449 = vpop.trf.xlu0
        %v1450 = vpop.trf.xlu0
        %v1451 = vpop.trf.xlu0
        %v1452 = vpop.trf.xlu0
        %v1453 = vpop.trf.xlu0
        %v1454 = vpop.trf.xlu0
        %v1455 = vpop.trf.xlu0
        %v1456 = vpop.trf.xlu0
        %v1457 = vpop.trf.xlu0
        %v1458 = vpop.trf.xlu0
        %v1459 = vpop.trf.xlu0
        %1460 = vst.msk [vmem:[%s249] sm:$0xff] %vm1283, %v1444
        %1461 = vst.msk [vmem:[%s249 + $0x8] sm:$0xff] %vm1283, %v1445
        %s1462 = sand.u32 %s98, 1
        %s1463 = scalar_lea.sflag [#allocation4], %s1462
        %s1464 = sand.u32 %s98, 1
        %s1465 = smul.addr %s1464, 128
        %s1466 = scalar_lea.vmem [#allocation3], %s1465
        %p1467 = scmp.lt.s32.totalorder %s22, 1
        %s1468 = scalar_select %p1467, %s22, 1
        %s1469 = smul.addr %s1468, 16
        %s1470 = smul.addr %s1469, 8
        %s1471 = scalar_lea.vmem %s4, %s1470
        %p1472 = scmp.lt.s32.totalorder %s22, 1
        %s1473 = scalar_select %p1472, %s22, 1
        %s1474 = smul.addr %s1473, 2
        %s1475 = smul.addr %s1474, 8
        %s1476 = scalar_lea.vmem %s5, %s1475
        // Predicated region
        $region40: #{_device_forward.8} parent=31 // pred_check
          %p1477 = pneg %p108
        $region41: #{_device_forward.8} parent=31 // pred_check_branch
          %1479 = sbr.rel (%p1477) target = $region43
        $region42: #{_device_forward.8} parent=31 // pred_region
          %1481 = vsyncadd %s1463, 0
          %s1482 = smul.addr %s22, 16
          %s1483 = smul.addr %s1482, 8
          %s1484 = scalar_lea.hbm %s3, %s1483
          %s1485 = sshll.u32 %s1466, 4
          %s1486 = int_to_ptr.vmem [resolvable:$true] %s1485
          %s1487 = sshll.u32 %s1484, 4
          %s1488 = int_to_ptr.hbm [resolvable:$true] %s1487
          %1493 = dma.vmem_to_hbm [thread:$0]  %s1486, 2048, %s1488, %s1463, 128, 128, 8
        $region43: #{_device_forward.8} parent=31 // pred_fallthru
          _
        // Predicated region
        $region44: #{_device_forward.8} parent=31 // pred_check
          %p1494 = pneg %p134
        $region45: #{_device_forward.8} parent=31 // pred_check_branch
          %1496 = sbr.rel (%p1494) target = $region47
        $region46: #{_device_forward.8} parent=31 // pred_region
          _
        $region47: #{_device_forward.8} parent=31 // pred_fallthru
          _
        // Predicated region
        $region48: #{_device_forward.8} parent=31 // pred_check
          %p1497 = pneg %p160
        $region49: #{_device_forward.8} parent=31 // pred_check_branch
          %1499 = sbr.rel (%p1497) target = $region51
        $region50: #{_device_forward.8} parent=31 // pred_region
          _
        $region51: #{_device_forward.8} parent=31 // pred_fallthru
          _
      $region32: #{_device_forward.8} parent=5 // pred_fallthru
        _
      %p1500 = scmp.le.s32.totalorder 2, %s17
      // Predicated region
      $region52: #{_device_forward.8} parent=5 // pred_check
        %p1501 = pneg %p1500
      $region53: #{_device_forward.8} parent=5 // pred_check_branch
        %1503 = sbr.rel (%p1501) target = $region55
      $region54: #{_device_forward.8} parent=5 // pred_region
        %s1504 = ssub.s32 %s17, 2
        // Predicated region
        $region56: #{_device_forward.8} parent=54 // pred_check
          %p1505 = pneg %p114
        $region57: #{_device_forward.8} parent=54 // pred_check_branch
          %1507 = sbr.rel (%p1505) target = $region59
        $region58: #{_device_forward.8} parent=54 // pred_region
          %s1508 = sand.u32 %s99, 1
          %s1509 = scalar_lea.sflag [#allocation4], %s1508
          %s1510 = sand.u32 %s99, 1
          %s1511 = smul.addr %s1510, 128
          %s1512 = scalar_lea.vmem [#allocation3], %s1511
          %1514 = dma.done %s1509, 2048
        $region59: #{_device_forward.8} parent=54 // pred_fallthru
          _
        // Predicated region
        $region60: #{_device_forward.8} parent=54 // pred_check
          %p1515 = pneg %p140
        $region61: #{_device_forward.8} parent=54 // pred_check_branch
          %1517 = sbr.rel (%p1515) target = $region63
        $region62: #{_device_forward.8} parent=54 // pred_region
          %p1518 = scmp.lt.s32.totalorder %s23, 1
          %s1519 = scalar_select %p1518, %s23, 1
          %s1520 = smul.addr %s1519, 16
          %s1521 = smul.addr %s1520, 8
          %s1522 = scalar_lea.vmem %s4, %s1521
        $region63: #{_device_forward.8} parent=54 // pred_fallthru
          _
        // Predicated region
        $region64: #{_device_forward.8} parent=54 // pred_check
          %p1523 = pneg %p166
        $region65: #{_device_forward.8} parent=54 // pred_check_branch
          %1525 = sbr.rel (%p1523) target = $region67
        $region66: #{_device_forward.8} parent=54 // pred_region
          %p1526 = scmp.lt.s32.totalorder %s23, 1
          %s1527 = scalar_select %p1526, %s23, 1
          %s1528 = smul.addr %s1527, 2
          %s1529 = smul.addr %s1528, 8
          %s1530 = scalar_lea.vmem %s5, %s1529
        $region67: #{_device_forward.8} parent=54 // pred_fallthru
          _
      $region55: #{_device_forward.8} parent=5 // pred_fallthru
        _
    $region6: #{_device_forward.8} parent=1 // loop_footer
      %s21 = sadd.s32 1, %s17
    $region7: #{_device_forward.8} parent=1 // loop_footer_branch
      %16 = sbr.rel target = $region3
    $region8: #{_device_forward.8} parent=1 // loop_exit
      _
    %1531 = vsyncpa [#allocation4], 1
    %s1532 = scalar_lea.sflag [#allocation4], 1
    %1533 = vsyncpa %s1532, 1

// kernel: _device_forward.9
$region0: #{_device_forward.9}
  #allocation0 [shape = 'u32[]', space=smem, size = 0x4, offset = 0x4, fixed_abs, tag = 'smem constant byte address 0x4 - core index']
  #allocation1 [shape = 'u32[72,128]{1,0:T(1,128)}', space=vmem, size = 0x9000, scoped, tag = 'internal scratch']
  #allocation2 [shape = 's32[1]{0}', space=sflag, size = 0x4, scoped, tag = 'scoped memory for _device_forward.9']
  #allocation3 [shape = 'u8[512]{0}', space=smem, size = 0x200, scoped, tag = 'prefetched SMEM operand 0']
  #allocation4 [shape = 'u8[512]{0}', space=smem, size = 0x200, scoped, tag = 'prefetched SMEM operand 1']
  #allocation5 [shape = 'u8[512]{0}', space=smem, size = 0x200, scoped, tag = 'prefetched SMEM operand 2']
  %s0 = inlined_call_operand.vmem [shape: s32[32], index: 0, kind: input, shape index: {}]
  %s1 = inlined_call_operand.vmem [shape: s32[32], index: 1, kind: input, shape index: {}]
  %s2 = inlined_call_operand.vmem [shape: s32[32], index: 2, kind: input, shape index: {}]
  %s3 = inlined_call_operand.vmem [shape: f32[2,128,128], index: 3, kind: input, shape index: {}]
  %s4 = inlined_call_operand.vmem [shape: f32[32,1,128], index: 4, kind: output, shape index: {}]
  %s5 = sld [smem:[#allocation0]]
  $region37: #{_device_forward.9} parent=0
    _
  %s7 = ssub.s32 1, %s5
  %s8 = scalar_select 0, %s7, %s5
  %s10 = sshll.u32 %s0, 4
  %s11 = int_to_ptr.vmem [resolvable:$true] %s10
  %13 = dma.vmem_to_smem %s11, 16, [#allocation3], [#allocation2]
  %s15 = sshll.u32 %s1, 4
  %s16 = int_to_ptr.vmem [resolvable:$true] %s15
  %18 = dma.vmem_to_smem %s16, 16, [#allocation4], [#allocation2]
  %s20 = sshll.u32 %s2, 4
  %s21 = int_to_ptr.vmem [resolvable:$true] %s20
  %23 = dma.vmem_to_smem %s21, 16, [#allocation5], [#allocation2]
  %25 = dma.done [#allocation2], 48
  %26 = sfence
  loop: start=0, step=1, limit=34
  $region2: #{_device_forward.9} parent=0 // loop_pre_header
    _
  $region3: #{_device_forward.9} parent=0 // loop_header
    %s28 = sphi 0, %s32
    %p29 = scmp.ge.s32.totalorder %s28, 34
    %s40 = sphi 0, %s42
    %s43 = sphi 0, %s40
    %s44 = sphi 0, %s43
    %s60 = sphi 0, %s44
    %s66 = sphi 0, %s68
    %s69 = sphi 0, %s66
    %s70 = sphi 0, %s69
    %s86 = sphi 0, %s70
  $region4: #{_device_forward.9} parent=0 // loop_header_branch
    %31 = sbr.rel (%p29) target = $region8
  $region5: #{_device_forward.9} parent=0 // loop_body
    %s33 = ssub.s32 %s28, 1
    %s34 = ssub.s32 %s28, 2
    %s35 = sadd.s32 %s28, 1
    %s36 = sld [smem:[#allocation3 + %s28]]
    %s37 = sld [smem:[#allocation3 + %s35]]
    %s38 = ssub.s32 %s36, %s37
    %p39 = scmp.eq.s32.totalorder %s38, 0
    %s41 = sadd.s32 %s40, 1
    %s42 = scalar_select %p39, %s40, %s41
    %p45 = pneg %p39
    %p46 = scmp.eq.s32.totalorder %s28, 31
    %p47 = por %p45, %p46
    %p48 = scmp.ne.s32.totalorder %s40, %s43
    %p49 = scmp.eq.s32.totalorder %s28, 0
    %p50 = por %p48, %p49
    %p51 = scmp.ne.s32.totalorder %s40, %s43
    %p52 = scmp.eq.s32.totalorder %s33, 31
    %p53 = por %p51, %p52
    %p54 = scmp.ne.s32.totalorder %s43, %s44
    %p55 = scmp.eq.s32.totalorder %s33, 0
    %p56 = por %p54, %p55
    %p57 = scmp.ne.s32.totalorder %s43, %s44
    %p58 = scmp.eq.s32.totalorder %s34, 31
    %p59 = por %p57, %p58
    %p61 = scmp.ne.s32.totalorder %s44, %s60
    %p62 = scmp.eq.s32.totalorder %s34, 0
    %p63 = por %p61, %p62
    %s64 = ssub.s32 %s28, %s35
    %p65 = scmp.eq.s32.totalorder %s64, 0
    %s67 = sadd.s32 %s66, 1
    %s68 = scalar_select %p65, %s66, %s67
    %p71 = pneg %p65
    %p72 = scmp.eq.s32.totalorder %s28, 31
    %p73 = por %p71, %p72
    %p74 = scmp.ne.s32.totalorder %s66, %s69
    %p75 = scmp.eq.s32.totalorder %s28, 0
    %p76 = por %p74, %p75
    %p77 = scmp.ne.s32.totalorder %s66, %s69
    %p78 = scmp.eq.s32.totalorder %s33, 31
    %p79 = por %p77, %p78
    %p80 = scmp.ne.s32.totalorder %s69, %s70
    %p81 = scmp.eq.s32.totalorder %s33, 0
    %p82 = por %p80, %p81
    %p83 = scmp.ne.s32.totalorder %s69, %s70
    %p84 = scmp.eq.s32.totalorder %s34, 31
    %p85 = por %p83, %p84
    %p87 = scmp.ne.s32.totalorder %s70, %s86
    %p88 = scmp.eq.s32.totalorder %s34, 0
    %p89 = por %p87, %p88
    %p90 = scmp.le.s32.totalorder 1, %s28
    %p91 = scmp.lt.s32.totalorder %s28, 33
    %p92 = pnand %p90, %p91
    %p93 = pneg %p92
    // Predicated region
    $region9: #{_device_forward.9} parent=5 // pred_check
      _
    $region10: #{_device_forward.9} parent=5 // pred_check_branch
      %95 = sbr.rel (%p92) target = $region12
    $region11: #{_device_forward.9} parent=5 // pred_region
      %s96 = ssub.s32 %s28, 1
    $region12: #{_device_forward.9} parent=5 // pred_fallthru
      _
    %p97 = scmp.lt.s32.totalorder %s28, 32
    // Predicated region
    $region13: #{_device_forward.9} parent=5 // pred_check
      %p98 = pneg %p97
    $region14: #{_device_forward.9} parent=5 // pred_check_branch
      %100 = sbr.rel (%p98) target = $region16
    $region15: #{_device_forward.9} parent=5 // pred_region
      // Predicated region
      $region17: #{_device_forward.9} parent=15 // pred_check
        %p101 = pneg %p50
      $region18: #{_device_forward.9} parent=15 // pred_check_branch
        %103 = sbr.rel (%p101) target = $region20
      $region19: #{_device_forward.9} parent=15 // pred_region
        %s104 = sld [smem:[#allocation3 + %s28]]
        %p105 = scmp.lt.s32.totalorder %s104, 1
        %s106 = scalar_select %p105, %s104, 1
        %s107 = smul.addr %s106, 16
        %s108 = smul.addr %s107, 8
        %s109 = scalar_lea.vmem %s3, %s108
        %s110 = sld [smem:[#allocation3 + %s28]]
      $region20: #{_device_forward.9} parent=15 // pred_fallthru
        _
    $region16: #{_device_forward.9} parent=5 // pred_fallthru
      _
    %p111 = scmp.le.s32.totalorder 1, %s28
    %p112 = scmp.lt.s32.totalorder %s28, 33
    %p113 = pnand %p111, %p112
    %p114 = pneg %p113
    // Predicated region
    $region21: #{_device_forward.9} parent=5 // pred_check
      _
    $region22: #{_device_forward.9} parent=5 // pred_check_branch
      %116 = sbr.rel (%p113) target = $region24
    $region23: #{_device_forward.9} parent=5 // pred_region
      %s117 = ssub.s32 %s28, 1
      %s118 = sld [smem:[#allocation3 + %s33]]
      %p119 = scmp.lt.s32.totalorder %s118, 1
      %s120 = scalar_select %p119, %s118, 1
      %s121 = smul.addr %s120, 16
      %s122 = smul.addr %s121, 8
      %s123 = scalar_lea.vmem %s3, %s122
      %p124 = pneg %p56
      %p125 = pneg %p53
      %p126 = pneg %p82
      %p127 = pneg %p79
      %p128 = scmp.lt.s32.totalorder %s33, 31
      %s129 = scalar_select %p128, %s33, 31
      %s130 = scalar_lea.vmem %s4, %s129
      %s131 = sld [smem:[#allocation3 + %s33]]
      %p132 = scmp.lt.s32.totalorder %s131, 1
      %s133 = scalar_select %p132, %s131, 1
      %s134 = smul.addr %s133, 16
      %s135 = smul.addr %s134, 8
      %s136 = scalar_lea.vmem %s3, %s135
      %s137 = sld [smem:[#allocation3 + %s33]]
      %p138 = scmp.lt.s32.totalorder %s33, 31
      %s139 = scalar_select %p138, %s33, 31
      %s140 = scalar_lea.vmem %s4, %s139
      %s141 = sld [smem:[#allocation4 + %s33]]
      %s142 = sld [smem:[#allocation5 + %s33]]
      %s143 = smul.u32 %s141, 8
      %s144 = scalar_lea.vmem %s136, %s143
      %v145 = vld [vmem:[%s144] sm:$0xff]
      %v146 = vlaneseq
      %v147 = vand.u32 %v146, 127
      %v148 = vlaneseq
      %v149 = vshrl.u32 %v148, 7
      %s150 = smul.u32 %s142, 8
      %v151 = vstv %s150
      %vm152 = vcmp.ge.s32.totalorder %v147, %v151
      %s153 = sadd.s32 %s142, 1
      %s154 = smul.u32 %s153, 8
      %v155 = vstv %s154
      %vm156 = vcmp.lt.s32.totalorder %v147, %v155
      %vm157 = vmand %vm152, %vm156
      %v158 = vsel %vm157, %v145, 0.0
      %v159 = vcvt.s32.f32 %v147
      %v160 = vmul.f32 %v159, 0.007874016
      %v161 = vstv %s143
      %v162 = vadd.s32 %v149, %v161
      %v163 = vcvt.s32.f32 %v162
      %v164 = vmul.f32 %v163, 0.007874016
      %165 = vadd.xlane.f32.xlu0 %v158
      %v166 = vpop.xlane.xlu0 %165
      %v167 = vrot.slane %v166, 4
      %v168 = vadd.f32 %v166, %v167
      %v169 = vrot.slane %v168, 2
      %v170 = vadd.f32 %v168, %v169
      %v171 = vrot.slane %v170, 1
      %v172 = vadd.f32 %v170, %v171
      %v173 = vrcp.pop %v172
      %v174 = vmul.f32 %v172, %v173
      %v175 = vsub.f32 1.0, %v174
      %v176 = vmul.f32 %v173, %v175
      %v177 = vadd.f32 %v173, %v176
      %vm178 = vweird.f32 %v172
      %vm179 = vweird.f32 %v173
      %vm180 = vmor %vm178, %vm179
      %v181 = vsel %vm180, %v173, %v177
      %v182 = vand.u32 2147483647, %v172
      %vm183 = vcmp.eq.f32.partialorder %v182, 8.507059e+37
      %v184 = vand.u32 %v172, 2147483648
      %v185 = vor.u32 1.1754944e-38, %v184
      %v186 = vsel %vm183, %v185, %v181
      %v187 = vmul.f32 %v160, %v158
      %188 = vadd.xlane.f32.xlu0 %v187
      %v189 = vpop.xlane.xlu0 %188
      %v190 = vrot.slane %v189, 4
      %v191 = vadd.f32 %v189, %v190
      %v192 = vrot.slane %v191, 2
      %v193 = vadd.f32 %v191, %v192
      %v194 = vrot.slane %v193, 1
      %v195 = vadd.f32 %v193, %v194
      %v196 = vmul.f32 %v195, %v186
      %v197 = vmul.f32 %v164, %v158
      %198 = vadd.xlane.f32.xlu0 %v197
      %v199 = vpop.xlane.xlu0 %198
      %v200 = vrot.slane %v199, 4
      %v201 = vadd.f32 %v199, %v200
      %v202 = vrot.slane %v201, 2
      %v203 = vadd.f32 %v201, %v202
      %v204 = vrot.slane %v203, 1
      %v205 = vadd.f32 %v203, %v204
      %v206 = vmul.f32 %v205, %v186
      %vm207 = vcmp.eq.s32.totalorder %v147, 0
      %v208 = vsel %vm207, %v196, 0.0
      %vm209 = vcmp.eq.s32.totalorder %v147, 1
      %v210 = vsel %vm209, %v206, 0.0
      %v211 = vadd.f32 %v208, %v210
      %212 = vst [vmem:[%s140] sm:$0x1] %v211
      %p213 = scmp.lt.s32.totalorder %s33, 31
      %s214 = scalar_select %p213, %s33, 31
      %s215 = scalar_lea.vmem %s4, %s214
      // Predicated region
      $region25: #{_device_forward.9} parent=23 // pred_check
        %p216 = pneg %p79
      $region26: #{_device_forward.9} parent=23 // pred_check_branch
        %218 = sbr.rel (%p216) target = $region28
      $region27: #{_device_forward.9} parent=23 // pred_region
        _
      $region28: #{_device_forward.9} parent=23 // pred_fallthru
        _
    $region24: #{_device_forward.9} parent=5 // pred_fallthru
      _
    %p219 = scmp.le.s32.totalorder 2, %s28
    // Predicated region
    $region29: #{_device_forward.9} parent=5 // pred_check
      %p220 = pneg %p219
    $region30: #{_device_forward.9} parent=5 // pred_check_branch
      %222 = sbr.rel (%p220) target = $region32
    $region31: #{_device_forward.9} parent=5 // pred_region
      %s223 = ssub.s32 %s28, 2
      // Predicated region
      $region33: #{_device_forward.9} parent=31 // pred_check
        %p224 = pneg %p85
      $region34: #{_device_forward.9} parent=31 // pred_check_branch
        %226 = sbr.rel (%p224) target = $region36
      $region35: #{_device_forward.9} parent=31 // pred_region
        %p227 = scmp.lt.s32.totalorder %s34, 31
        %s228 = scalar_select %p227, %s34, 31
        %s229 = scalar_lea.vmem %s4, %s228
      $region36: #{_device_forward.9} parent=31 // pred_fallthru
        _
    $region32: #{_device_forward.9} parent=5 // pred_fallthru
      _
  $region6: #{_device_forward.9} parent=0 // loop_footer
    %s32 = sadd.s32 1, %s28
  $region7: #{_device_forward.9} parent=0 // loop_footer_branch
    %27 = sbr.rel target = $region3
  $region8: #{_device_forward.9} parent=0 // loop_exit
    _

</llo_original>
